<compile_context>
chip_gen: v7x
topology: tpu7x:2x2x1
jax: 0.10.0
libtpu: 0.0.40
codegen_flags: <defaults>
</compile_context>

<pallas_src>
import jax
import jax.numpy as jnp
import numpy as np
from jax.experimental import pallas as pl
from jax.experimental.pallas import tpu as pltpu

_EPS = 1e-5
_HALO = 8                          # sublane-aligned halo on each side (>= max K//2)
_LANE = 128                        # channel padding target (lane width)
_VMEM_LIMIT = 48 * 1024 * 1024     # fits v5e/v6e (128 MiB) and v7x (64 MiB)


def _round_up(n, m):
    return (n + m - 1) // m * m


def _compiler_params():
    return pltpu.CompilerParams(dimension_semantics=("parallel",),
                                vmem_limit_bytes=_VMEM_LIMIT)


# ------------------------------ in-kernel helpers ----------------------------

def _conv_same(pad_ref, x2d, w_ref):
    """'same' zero-padded 1-D conv: x2d (L, Ci) bf16 * w_ref (K, Ci, Co) -> (L, Co) f32.

    Uses a sublane-aligned padded VMEM scratch; only the halo rows are zeroed
    (the interior is fully overwritten every step).  One bf16 MXU matmul per tap
    with f32 accumulation.
    """
    K, Ci, _ = w_ref.shape
    P = K // 2
    L = x2d.shape[0]
    pad_ref[0:_HALO, :] = jnp.zeros((_HALO, Ci), pad_ref.dtype)
    pad_ref[_HALO + L:_HALO + L + _HALO, :] = jnp.zeros((_HALO, Ci), pad_ref.dtype)
    pad_ref[_HALO:_HALO + L, :] = x2d
    acc = jnp.dot(pad_ref[_HALO - P:_HALO - P + L, :], w_ref[0],
                  preferred_element_type=jnp.float32)
    for k in range(1, K):                       # static unrolled taps
        s = _HALO - P + k
        acc = acc + jnp.dot(pad_ref[s:s + L, :], w_ref[k],
                            preferred_element_type=jnp.float32)
    return acc


def _partial_stats(h):
    """Per-tile per-channel [sum ; sum-of-squares] of h (L, C) f32 -> (2, C) f32."""
    return jnp.concatenate(
        [jnp.sum(h, axis=0, keepdims=True),
         jnp.sum(h * h, axis=0, keepdims=True)], axis=0)


# ----------------------------------- kernels ---------------------------------

def _conv_x_shortcut_kernel(x_ref, wx_ref, ws_ref,
                            h1_ref, hs_ref, st1_ref, sts_ref, pad_ref):
    x2d = x_ref[0]                                                   # (L, Cip) bf16
    hs = jnp.dot(x2d, ws_ref[0], preferred_element_type=jnp.float32)  # 1x1 shortcut
    h1 = _conv_same(pad_ref, x2d, wx_ref)                             # conv_x (k=7)
    h1_ref[0] = h1.astype(h1_ref.dtype)
    hs_ref[0] = hs.astype(hs_ref.dtype)
    st1_ref[0] = _partial_stats(h1)
    sts_ref[0] = _partial_stats(hs)


def _bn_relu_conv_kernel(h_ref, a_ref, b_ref, w_ref, o_ref, st_ref, pad_ref):
    h = h_ref[0].astype(jnp.float32)                                  # (L, C)
    y = jnp.maximum(h * a_ref[...] + b_ref[...], 0.0)                 # fused BN + ReLU
    o = _conv_same(pad_ref, y.astype(pad_ref.dtype), w_ref)
    o_ref[0] = o.astype(o_ref.dtype)
    st_ref[0] = _partial_stats(o)


def _bn_add_relu_kernel(h3_ref, hs_ref, a3_ref, b3_ref, as_ref, bs_ref, o_ref):
    h3 = h3_ref[0].astype(jnp.float32)
    hs = hs_ref[0].astype(jnp.float32)
    o = jnp.maximum(h3 * a3_ref[...] + b3_ref[...]
                    + hs * as_ref[...] + bs_ref[...], 0.0)
    o_ref[0] = o.astype(o_ref.dtype)


# ----------------------------------- wrapper ----------------------------------

def _affine_from_stats(stats, gamma_p, beta_p, count):
    """Reduce per-tile partials and fold batch-stat BN into y = h*a + b (per channel)."""
    s = jnp.sum(stats.astype(jnp.float32), axis=0)          # (2, Cp)
    mean = s[0] / count
    var = jnp.maximum(s[1] / count - mean * mean, 0.0)       # one-pass biased var
    a = gamma_p * jax.lax.rsqrt(var + _EPS)
    b = beta_p - mean * a
    return a[None, :], b[None, :]                            # (1, Cp) f32 each


def resnet_block_forward(x_ncl, params):
    """x_ncl: (B, Cin, L) float32 (PyTorch NCL).  Returns (B, Cout, L) float32."""
    B, Cin, L = x_ncl.shape
    Cout = params["wx"].shape[2]
    Cip = _round_up(Cin, _LANE)
    Cop = _round_up(Cout, _LANE)

    # NCL -> NLC, lane-dense channel padding, bf16 activations for the MXU.
    x = jnp.transpose(x_ncl, (0, 2, 1)).astype(jnp.float32)
    x = jnp.pad(x, ((0, 0), (0, 0), (0, Cip - Cin))).astype(jnp.bfloat16)

    def pad_w(w):                                            # (K, ci, co) -> padded bf16
        K, ci, co = w.shape
        return jnp.pad(w, ((0, 0), (0, _round_up(ci, _LANE) - ci),
                           (0, _round_up(co, _LANE) - co))).astype(jnp.bfloat16)

    def pad_v(v):                                            # (1, co) -> (Cop,) f32
        return jnp.pad(v[0], (0, Cop - v.shape[1])).astype(jnp.float32)

    wx, wy, wz, ws = (pad_w(params[k]) for k in ("wx", "wy", "wz", "ws"))
    # NOTE: conv biases (bx/by/bz/bs) are intentionally not used: BatchNorm with
    # batch statistics subtracts the per-channel mean right after the conv, so a
    # constant per-channel bias cancels exactly.
    gx, bex = pad_v(params["gx"]), pad_v(params["bex"])
    gy, bey = pad_v(params["gy"]), pad_v(params["bey"])
    gz, bez = pad_v(params["gz"]), pad_v(params["bez"])
    gs, bes = pad_v(params["gs"]), pad_v(params["bes"])

    count = float(B * L)
    grid = (B,)
    act_in = lambda C: pl.BlockSpec((1, L, C), lambda b: (b, 0, 0))
    st_spec = pl.BlockSpec((1, 2, Cop), lambda b: (b, 0, 0))
    vec_spec = pl.BlockSpec((1, Cop), lambda b: (0, 0))
    w_spec = lambda K, Ci: pl.BlockSpec((K, Ci, Cop), lambda b: (0, 0, 0))
    act_shape = lambda: jax.ShapeDtypeStruct((B, L, Cop), jnp.bfloat16)
    st_shape = jax.ShapeDtypeStruct((B, 2, Cop), jnp.float32)

    # ---- k1: conv_x (k=7) + shortcut 1x1 conv, per-tile BN partial stats -----
    h1, hs, st1, sts = pl.pallas_call(
        _conv_x_shortcut_kernel,
        grid=grid,
        in_specs=[act_in(Cip), w_spec(7, Cip), w_spec(1, Cip)],
        out_specs=(act_in(Cop), act_in(Cop), st_spec, st_spec),
        out_shape=(act_shape(), act_shape(), st_shape, st_shape),
        scratch_shapes=[pltpu.VMEM((L + 2 * _HALO, Cip), jnp.bfloat16)],
        compiler_params=_compiler_params(),
        cost_estimate=pl.CostEstimate(
            flops=2 * B * L * Cip * Cop * 8, transcendentals=0,
            bytes_accessed=2 * B * L * (Cip + 2 * Cop) + 2 * 8 * Cip * Cop),
    )(x, wx, ws)

    a1, b1 = _affine_from_stats(st1, gx, bex, count)

    # ---- k2 / k3: fused BN-affine + ReLU + conv (k=5, then k=3) --------------
    def bn_relu_conv(h, a, b, w, K):
        return pl.pallas_call(
            _bn_relu_conv_kernel,
            grid=grid,
            in_specs=[act_in(Cop), vec_spec, vec_spec, w_spec(K, Cop)],
            out_specs=(act_in(Cop), st_spec),
            out_shape=(act_shape(), st_shape),
            scratch_shapes=[pltpu.VMEM((L + 2 * _HALO, Cop), jnp.bfloat16)],
            compiler_params=_compiler_params(),
            cost_estimate=pl.CostEstimate(
                flops=2 * B * L * Cop * Cop * K, transcendentals=0,
                bytes_accessed=4 * B * L * Cop + 2 * K * Cop * Cop),
        )(h, a, b, w)

    h2, st2 = bn_relu_conv(h1, a1, b1, wy, 5)
    a2, b2 = _affine_from_stats(st2, gy, bey, count)

    h3, st3 = bn_relu_conv(h2, a2, b2, wz, 3)
    a3, b3 = _affine_from_stats(st3, gz, bez, count)
    asc, bsc = _affine_from_stats(sts, gs, bes, count)

    # ---- k4: bn_z-affine + bn_shortcut-affine + residual add + ReLU ----------
    out = pl.pallas_call(
        _bn_add_relu_kernel,
        grid=grid,
        in_specs=[act_in(Cop), act_in(Cop), vec_spec, vec_spec, vec_spec, vec_spec],
        out_specs=pl.BlockSpec((1, L, Cop), lambda b: (b, 0, 0)),
        out_shape=jax.ShapeDtypeStruct((B, L, Cop), jnp.float32),
        compiler_params=_compiler_params(),
        cost_estimate=pl.CostEstimate(
            flops=6 * B * L * Cop, transcendentals=0,
            bytes_accessed=8 * B * L * Cop),
    )(h3, hs, a3, b3, asc, bsc)

    # drop channel padding, NLC -> NCL
    return jnp.transpose(out[:, :, :Cout], (0, 2, 1))


# ----------------------------- deterministic parameters -----------------------

def init_params(key, in_channels, out_channels):
    """Weights stored as (K, Cin, Cout) (= PyTorch (Cout, Cin, K) transposed)."""
    ks = iter(jax.random.split(key, 16))

    def w(shape):
        return 0.1 * jax.random.normal(next(ks), shape, jnp.float32)

    def bn():
        g = 1.0 + 0.1 * jax.random.normal(next(ks), (1, out_channels), jnp.float32)
        b = 0.1 * jax.random.normal(next(ks), (1, out_channels), jnp.float32)
        return g, b

    p = {}
    p["wx"] = w((7, in_channels, out_channels))
    p["bx"] = w((1, out_channels))
    p["gx"], p["bex"] = bn()
    p["wy"] = w((5, out_channels, out_channels))
    p["by"] = w((1, out_channels))
    p["gy"], p["bey"] = bn()
    p["wz"] = w((3, out_channels, out_channels))
    p["bz"] = w((1, out_channels))
    p["gz"], p["bez"] = bn()
    if in_channels < out_channels:        # expand -> 1x1 shortcut conv
        p["ws"] = w((1, in_channels, out_channels))
        p["bs"] = w((1, out_channels))
    else:                                 # identity shortcut (requires Cin == Cout)
        assert in_channels == out_channels, "identity shortcut needs Cin == Cout"
        p["ws"] = jnp.eye(in_channels, dtype=jnp.float32)[None]
        p["bs"] = jnp.zeros((1, in_channels), jnp.float32)
    p["gs"], p["bes"] = bn()
    return p


# --------------------------------- pure-JAX reference -------------------------

def _conv1d_ref(x, w, b):  # x: (B, L, Cin) NLC
    K = w.shape[0]
    P = K // 2
    B, L, _ = x.shape
    xp = jnp.pad(x, ((0, 0), (P, P), (0, 0)))
    acc = jnp.zeros((B, L, w.shape[2]), jnp.float32)
    for k in range(K):
        acc = acc + jnp.einsum("blc,cd->bld", xp[:, k:k + L, :], w[k])
    return acc + b[None]


def _bn_ref(h, g, be):
    mean = h.mean(axis=(0, 1), keepdims=True)
    var = jnp.square(h - mean).mean(axis=(0, 1), keepdims=True)
    return (h - mean) / jnp.sqrt(var + _EPS) * g[None] + be[None]


def resnet_block_ref(x_ncl, params):
    x = jnp.transpose(x_ncl, (0, 2, 1))
    out = jax.nn.relu(_bn_ref(_conv1d_ref(x, params["wx"], params["bx"]),
                              params["gx"], params["bex"]))
    out = jax.nn.relu(_bn_ref(_conv1d_ref(out, params["wy"], params["by"]),
                              params["gy"], params["bey"]))
    out = _bn_ref(_conv1d_ref(out, params["wz"], params["bz"]),
                  params["gz"], params["bez"])
    sc = _conv1d_ref(x, params["ws"], params["bs"])
    sc = _bn_ref(sc, params["gs"], params["bes"])
    return jnp.transpose(jax.nn.relu(out + sc), (0, 2, 1))


if __name__ == "__main__":
    B, Cin, Cout, L = 2, 4, 8, 16  # expand=True (Cin < Cout)

    root = jax.random.PRNGKey(0)
    k_param, k_input = jax.random.split(root)
    params = init_params(k_param, Cin, Cout)
    x = jax.random.normal(k_input, (B, Cin, L), jnp.float32)  # NCL like PyTorch

    out = jax.block_until_ready(jax.jit(resnet_block_forward)(x, params))
    ref = jax.block_until_ready(resnet_block_ref(x, params))

    assert out.shape == (B, Cout, L), out.shape
    # bf16 MXU path -> slightly looser tolerance than a pure-f32 comparison.
    np.testing.assert_allclose(np.asarray(out), np.asarray(ref),
                               rtol=2e-2, atol=2e-2)
    print("KERNEL_OK")
</pallas_src>

<mosaic_0001>
module attributes {stable_mosaic.version = 11 : i64} {
  func.func @_bn_relu_conv_kernel(%arg0: i32, %arg1: memref<1x16x128xbf16, #tpu.memory_space<vmem>>, %arg2: memref<1x128xf32, #tpu.memory_space<vmem>>, %arg3: memref<1x128xf32, #tpu.memory_space<vmem>>, %arg4: memref<3x128x128xbf16, #tpu.memory_space<vmem>>, %arg5: memref<1x16x128xbf16, #tpu.memory_space<vmem>>, %arg6: memref<1x2x128xf32, #tpu.memory_space<vmem>>, %arg7: memref<32x128xbf16, #tpu.memory_space<vmem>>) attributes {dimension_semantics = [#tpu.dimension_semantics<parallel>], iteration_bounds = array<i64: 2>, scalar_prefetch = 0 : i64, scratch_operands = 1 : i64, tpu.core_type = #tpu.core_type<tc>, window_params = [{transform_indices = @transform_0, window_bounds = array<i64: 1, 16, 128>}, {pipeline_mode = #tpu.pipeline_mode<synchronous>, transform_indices = @transform_1, window_bounds = array<i64: 1, 128>}, {pipeline_mode = #tpu.pipeline_mode<synchronous>, transform_indices = @transform_2, window_bounds = array<i64: 1, 128>}, {pipeline_mode = #tpu.pipeline_mode<synchronous>, transform_indices = @transform_3, window_bounds = array<i64: 3, 128, 128>}, {transform_indices = @transform_4, window_bounds = array<i64: 1, 16, 128>}, {transform_indices = @transform_5, window_bounds = array<i64: 1, 2, 128>}]} {
    %c0 = arith.constant 0 : index
    %c0_0 = arith.constant 0 : index
    %c0_1 = arith.constant 0 : index
    %0 = vector.load %arg1[%c0, %c0_0, %c0_1] : memref<1x16x128xbf16, #tpu.memory_space<vmem>>, vector<1x16x128xbf16>
    %1 = vector.shape_cast %0 : vector<1x16x128xbf16> to vector<16x128xbf16>
    %2 = arith.extf %1 : vector<16x128xbf16> to vector<16x128xf32>
    %c0_2 = arith.constant 0 : index
    %c0_3 = arith.constant 0 : index
    %3 = vector.load %arg2[%c0_2, %c0_3] : memref<1x128xf32, #tpu.memory_space<vmem>>, vector<1x128xf32>
    %4 = vector.broadcast %3 : vector<1x128xf32> to vector<16x128xf32>
    %5 = arith.mulf %2, %4 : vector<16x128xf32>
    %c0_4 = arith.constant 0 : index
    %c0_5 = arith.constant 0 : index
    %6 = vector.load %arg3[%c0_4, %c0_5] : memref<1x128xf32, #tpu.memory_space<vmem>>, vector<1x128xf32>
    %7 = vector.broadcast %6 : vector<1x128xf32> to vector<16x128xf32>
    %8 = arith.addf %5, %7 : vector<16x128xf32>
    %cst = arith.constant 0.000000e+00 : f32
    %9 = vector.broadcast %cst : f32 to vector<16x128xf32>
    %10 = arith.maximumf %8, %9 : vector<16x128xf32>
    %11 = arith.truncf %10 : vector<16x128xf32> to vector<16x128xbf16>
    %cst_6 = arith.constant 0.000000e+00 : bf16
    %12 = vector.broadcast %cst_6 : bf16 to vector<8x128xbf16>
    %c0_7 = arith.constant 0 : index
    %c0_8 = arith.constant 0 : index
    %13 = vector.load %arg7[%c0_7, %c0_8] : memref<32x128xbf16, #tpu.memory_space<vmem>>, vector<8x128xbf16>
    tpu.vector_store %arg7[%c0_7, %c0_8], %12 {strides = array<i32>} : memref<32x128xbf16, #tpu.memory_space<vmem>>, vector<8x128xbf16>,
    %cst_9 = arith.constant 0.000000e+00 : bf16
    %14 = vector.broadcast %cst_9 : bf16 to vector<8x128xbf16>
    %c24 = arith.constant 24 : index
    %c0_10 = arith.constant 0 : index
    %15 = vector.load %arg7[%c24, %c0_10] : memref<32x128xbf16, #tpu.memory_space<vmem>>, vector<8x128xbf16>
    tpu.vector_store %arg7[%c24, %c0_10], %14 {strides = array<i32>} : memref<32x128xbf16, #tpu.memory_space<vmem>>, vector<8x128xbf16>,
    %c8 = arith.constant 8 : index
    %c0_11 = arith.constant 0 : index
    %16 = vector.load %arg7[%c8, %c0_11] : memref<32x128xbf16, #tpu.memory_space<vmem>>, vector<16x128xbf16>
    tpu.vector_store %arg7[%c8, %c0_11], %11 {strides = array<i32>} : memref<32x128xbf16, #tpu.memory_space<vmem>>, vector<16x128xbf16>,
    %c7 = arith.constant 7 : index
    %c0_12 = arith.constant 0 : index
    %17 = vector.load %arg7[%c7, %c0_12] : memref<32x128xbf16, #tpu.memory_space<vmem>>, vector<16x128xbf16>
    %c0_13 = arith.constant 0 : index
    %c0_14 = arith.constant 0 : index
    %c0_15 = arith.constant 0 : index
    %18 = vector.load %arg4[%c0_13, %c0_14, %c0_15] : memref<3x128x128xbf16, #tpu.memory_space<vmem>>, vector<1x128x128xbf16>
    %19 = vector.shape_cast %18 : vector<1x128x128xbf16> to vector<128x128xbf16>
    %cst_16 = arith.constant dense<0.000000e+00> : vector<16x128xf32>
    %20 = tpu.matmul %17, %19, %cst_16 {dimension_numbers = #tpu.dot_dimension_numbers<[1], [0], [0], [1], [0, 0, 1, 1], [], []>} : vector<16x128xbf16>, vector<128x128xbf16>, vector<16x128xf32> -> vector<16x128xf32>
    %c8_17 = arith.constant 8 : index
    %c0_18 = arith.constant 0 : index
    %21 = vector.load %arg7[%c8_17, %c0_18] : memref<32x128xbf16, #tpu.memory_space<vmem>>, vector<16x128xbf16>
    %c1 = arith.constant 1 : index
    %c0_19 = arith.constant 0 : index
    %c0_20 = arith.constant 0 : index
    %22 = vector.load %arg4[%c1, %c0_19, %c0_20] : memref<3x128x128xbf16, #tpu.memory_space<vmem>>, vector<1x128x128xbf16>
    %23 = vector.shape_cast %22 : vector<1x128x128xbf16> to vector<128x128xbf16>
    %cst_21 = arith.constant dense<0.000000e+00> : vector<16x128xf32>
    %24 = tpu.matmul %21, %23, %cst_21 {dimension_numbers = #tpu.dot_dimension_numbers<[1], [0], [0], [1], [0, 0, 1, 1], [], []>} : vector<16x128xbf16>, vector<128x128xbf16>, vector<16x128xf32> -> vector<16x128xf32>
    %25 = arith.addf %20, %24 : vector<16x128xf32>
    %c9 = arith.constant 9 : index
    %c0_22 = arith.constant 0 : index
    %26 = vector.load %arg7[%c9, %c0_22] : memref<32x128xbf16, #tpu.memory_space<vmem>>, vector<16x128xbf16>
    %c2 = arith.constant 2 : index
    %c0_23 = arith.constant 0 : index
    %c0_24 = arith.constant 0 : index
    %27 = vector.load %arg4[%c2, %c0_23, %c0_24] : memref<3x128x128xbf16, #tpu.memory_space<vmem>>, vector<1x128x128xbf16>
    %28 = vector.shape_cast %27 : vector<1x128x128xbf16> to vector<128x128xbf16>
    %cst_25 = arith.constant dense<0.000000e+00> : vector<16x128xf32>
    %29 = tpu.matmul %26, %28, %cst_25 {dimension_numbers = #tpu.dot_dimension_numbers<[1], [0], [0], [1], [0, 0, 1, 1], [], []>} : vector<16x128xbf16>, vector<128x128xbf16>, vector<16x128xf32> -> vector<16x128xf32>
    %30 = arith.addf %25, %29 : vector<16x128xf32>
    %31 = arith.truncf %30 : vector<16x128xf32> to vector<16x128xbf16>
    %c0_26 = arith.constant 0 : index
    %c0_27 = arith.constant 0 : index
    %c0_28 = arith.constant 0 : index
    %32 = vector.load %arg5[%c0_26, %c0_27, %c0_28] : memref<1x16x128xbf16, #tpu.memory_space<vmem>>, vector<1x16x128xbf16>
    %33 = vector.shape_cast %32 : vector<1x16x128xbf16> to vector<16x128xbf16>
    %34 = vector.shape_cast %31 : vector<16x128xbf16> to vector<1x16x128xbf16>
    tpu.vector_store %arg5[%c0_26, %c0_27, %c0_28], %34 {strides = array<i32>} : memref<1x16x128xbf16, #tpu.memory_space<vmem>>, vector<1x16x128xbf16>,
    %cst_29 = arith.constant dense<0.000000e+00> : vector<128xf32>
    %35 = vector.multi_reduction <add>, %30, %cst_29 [0] : vector<16x128xf32> to vector<128xf32>
    %36 = vector.shape_cast %35 : vector<128xf32> to vector<1x128xf32>
    %37 = arith.mulf %30, %30 : vector<16x128xf32>
    %cst_30 = arith.constant dense<0.000000e+00> : vector<128xf32>
    %38 = vector.multi_reduction <add>, %37, %cst_30 [0] : vector<16x128xf32> to vector<128xf32>
    %39 = vector.shape_cast %38 : vector<128xf32> to vector<1x128xf32>
    %40 = tpu.concatenate %36, %39 in 0 : vector<1x128xf32>, vector<1x128xf32> -> vector<2x128xf32>
    %c0_31 = arith.constant 0 : index
    %c0_32 = arith.constant 0 : index
    %c0_33 = arith.constant 0 : index
    %41 = vector.load %arg6[%c0_31, %c0_32, %c0_33] : memref<1x2x128xf32, #tpu.memory_space<vmem>>, vector<1x2x128xf32>
    %42 = vector.shape_cast %41 : vector<1x2x128xf32> to vector<2x128xf32>
    %43 = vector.shape_cast %40 : vector<2x128xf32> to vector<1x2x128xf32>
    tpu.vector_store %arg6[%c0_31, %c0_32, %c0_33], %43 {strides = array<i32>} : memref<1x2x128xf32, #tpu.memory_space<vmem>>, vector<1x2x128xf32>,
    return
  }
  func.func @transform_0(%arg0: i32) -> (i32, i32, i32) {
    %c0_i32 = arith.constant 0 : i32
    %c0_i32_0 = arith.constant 0 : i32
    %c0_i32_1 = arith.constant 0 : i32
    return %arg0, %c0_i32, %c0_i32_0 : i32, i32, i32
  }
  func.func @transform_1(%arg0: i32) -> (i32, i32) {
    %c0_i32 = arith.constant 0 : i32
    %c0_i32_0 = arith.constant 0 : i32
    %c0_i32_1 = arith.constant 0 : i32
    return %c0_i32, %c0_i32_0 : i32, i32
  }
  func.func @transform_2(%arg0: i32) -> (i32, i32) {
    %c0_i32 = arith.constant 0 : i32
    %c0_i32_0 = arith.constant 0 : i32
    %c0_i32_1 = arith.constant 0 : i32
    return %c0_i32, %c0_i32_0 : i32, i32
  }
  func.func @transform_3(%arg0: i32) -> (i32, i32, i32) {
    %c0_i32 = arith.constant 0 : i32
    %c0_i32_0 = arith.constant 0 : i32
    %c0_i32_1 = arith.constant 0 : i32
    %c0_i32_2 = arith.constant 0 : i32
    return %c0_i32, %c0_i32_0, %c0_i32_1 : i32, i32, i32
  }
  func.func @transform_4(%arg0: i32) -> (i32, i32, i32) {
    %c0_i32 = arith.constant 0 : i32
    %c0_i32_0 = arith.constant 0 : i32
    %c0_i32_1 = arith.constant 0 : i32
    return %arg0, %c0_i32, %c0_i32_0 : i32, i32, i32
  }
  func.func @transform_5(%arg0: i32) -> (i32, i32, i32) {
    %c0_i32 = arith.constant 0 : i32
    %c0_i32_0 = arith.constant 0 : i32
    %c0_i32_1 = arith.constant 0 : i32
    return %arg0, %c0_i32, %c0_i32_0 : i32, i32, i32
  }
}

module attributes {stable_mosaic.version = 11 : i64} {
  func.func @_conv_x_shortcut_kernel(%arg0: i32, %arg1: memref<1x16x128xbf16, #tpu.memory_space<vmem>>, %arg2: memref<7x128x128xbf16, #tpu.memory_space<vmem>>, %arg3: memref<1x128x128xbf16, #tpu.memory_space<vmem>>, %arg4: memref<1x16x128xbf16, #tpu.memory_space<vmem>>, %arg5: memref<1x16x128xbf16, #tpu.memory_space<vmem>>, %arg6: memref<1x2x128xf32, #tpu.memory_space<vmem>>, %arg7: memref<1x2x128xf32, #tpu.memory_space<vmem>>, %arg8: memref<32x128xbf16, #tpu.memory_space<vmem>>) attributes {dimension_semantics = [#tpu.dimension_semantics<parallel>], iteration_bounds = array<i64: 2>, scalar_prefetch = 0 : i64, scratch_operands = 1 : i64, tpu.core_type = #tpu.core_type<tc>, window_params = [{transform_indices = @transform_0, window_bounds = array<i64: 1, 16, 128>}, {pipeline_mode = #tpu.pipeline_mode<synchronous>, transform_indices = @transform_1, window_bounds = array<i64: 7, 128, 128>}, {pipeline_mode = #tpu.pipeline_mode<synchronous>, transform_indices = @transform_2, window_bounds = array<i64: 1, 128, 128>}, {transform_indices = @transform_3, window_bounds = array<i64: 1, 16, 128>}, {transform_indices = @transform_4, window_bounds = array<i64: 1, 16, 128>}, {transform_indices = @transform_5, window_bounds = array<i64: 1, 2, 128>}, {transform_indices = @transform_6, window_bounds = array<i64: 1, 2, 128>}]} {
    %c0 = arith.constant 0 : index
    %c0_0 = arith.constant 0 : index
    %c0_1 = arith.constant 0 : index
    %0 = vector.load %arg1[%c0, %c0_0, %c0_1] : memref<1x16x128xbf16, #tpu.memory_space<vmem>>, vector<1x16x128xbf16>
    %1 = vector.shape_cast %0 : vector<1x16x128xbf16> to vector<16x128xbf16>
    %c0_2 = arith.constant 0 : index
    %c0_3 = arith.constant 0 : index
    %c0_4 = arith.constant 0 : index
    %2 = vector.load %arg3[%c0_2, %c0_3, %c0_4] : memref<1x128x128xbf16, #tpu.memory_space<vmem>>, vector<1x128x128xbf16>
    %3 = vector.shape_cast %2 : vector<1x128x128xbf16> to vector<128x128xbf16>
    %cst = arith.constant dense<0.000000e+00> : vector<16x128xf32>
    %4 = tpu.matmul %1, %3, %cst {dimension_numbers = #tpu.dot_dimension_numbers<[1], [0], [0], [1], [0, 0, 1, 1], [], []>} : vector<16x128xbf16>, vector<128x128xbf16>, vector<16x128xf32> -> vector<16x128xf32>
    %cst_5 = arith.constant 0.000000e+00 : bf16
    %5 = vector.broadcast %cst_5 : bf16 to vector<8x128xbf16>
    %c0_6 = arith.constant 0 : index
    %c0_7 = arith.constant 0 : index
    %6 = vector.load %arg8[%c0_6, %c0_7] : memref<32x128xbf16, #tpu.memory_space<vmem>>, vector<8x128xbf16>
    tpu.vector_store %arg8[%c0_6, %c0_7], %5 {strides = array<i32>} : memref<32x128xbf16, #tpu.memory_space<vmem>>, vector<8x128xbf16>,
    %cst_8 = arith.constant 0.000000e+00 : bf16
    %7 = vector.broadcast %cst_8 : bf16 to vector<8x128xbf16>
    %c24 = arith.constant 24 : index
    %c0_9 = arith.constant 0 : index
    %8 = vector.load %arg8[%c24, %c0_9] : memref<32x128xbf16, #tpu.memory_space<vmem>>, vector<8x128xbf16>
    tpu.vector_store %arg8[%c24, %c0_9], %7 {strides = array<i32>} : memref<32x128xbf16, #tpu.memory_space<vmem>>, vector<8x128xbf16>,
    %c8 = arith.constant 8 : index
    %c0_10 = arith.constant 0 : index
    %9 = vector.load %arg8[%c8, %c0_10] : memref<32x128xbf16, #tpu.memory_space<vmem>>, vector<16x128xbf16>
    tpu.vector_store %arg8[%c8, %c0_10], %1 {strides = array<i32>} : memref<32x128xbf16, #tpu.memory_space<vmem>>, vector<16x128xbf16>,
    %c5 = arith.constant 5 : index
    %c0_11 = arith.constant 0 : index
    %10 = vector.load %arg8[%c5, %c0_11] : memref<32x128xbf16, #tpu.memory_space<vmem>>, vector<16x128xbf16>
    %c0_12 = arith.constant 0 : index
    %c0_13 = arith.constant 0 : index
    %c0_14 = arith.constant 0 : index
    %11 = vector.load %arg2[%c0_12, %c0_13, %c0_14] : memref<7x128x128xbf16, #tpu.memory_space<vmem>>, vector<1x128x128xbf16>
    %12 = vector.shape_cast %11 : vector<1x128x128xbf16> to vector<128x128xbf16>
    %cst_15 = arith.constant dense<0.000000e+00> : vector<16x128xf32>
    %13 = tpu.matmul %10, %12, %cst_15 {dimension_numbers = #tpu.dot_dimension_numbers<[1], [0], [0], [1], [0, 0, 1, 1], [], []>} : vector<16x128xbf16>, vector<128x128xbf16>, vector<16x128xf32> -> vector<16x128xf32>
    %c6 = arith.constant 6 : index
    %c0_16 = arith.constant 0 : index
    %14 = vector.load %arg8[%c6, %c0_16] : memref<32x128xbf16, #tpu.memory_space<vmem>>, vector<16x128xbf16>
    %c1 = arith.constant 1 : index
    %c0_17 = arith.constant 0 : index
    %c0_18 = arith.constant 0 : index
    %15 = vector.load %arg2[%c1, %c0_17, %c0_18] : memref<7x128x128xbf16, #tpu.memory_space<vmem>>, vector<1x128x128xbf16>
    %16 = vector.shape_cast %15 : vector<1x128x128xbf16> to vector<128x128xbf16>
    %cst_19 = arith.constant dense<0.000000e+00> : vector<16x128xf32>
    %17 = tpu.matmul %14, %16, %cst_19 {dimension_numbers = #tpu.dot_dimension_numbers<[1], [0], [0], [1], [0, 0, 1, 1], [], []>} : vector<16x128xbf16>, vector<128x128xbf16>, vector<16x128xf32> -> vector<16x128xf32>
    %18 = arith.addf %13, %17 : vector<16x128xf32>
    %c7 = arith.constant 7 : index
    %c0_20 = arith.constant 0 : index
    %19 = vector.load %arg8[%c7, %c0_20] : memref<32x128xbf16, #tpu.memory_space<vmem>>, vector<16x128xbf16>
    %c2 = arith.constant 2 : index
    %c0_21 = arith.constant 0 : index
    %c0_22 = arith.constant 0 : index
    %20 = vector.load %arg2[%c2, %c0_21, %c0_22] : memref<7x128x128xbf16, #tpu.memory_space<vmem>>, vector<1x128x128xbf16>
    %21 = vector.shape_cast %20 : vector<1x128x128xbf16> to vector<128x128xbf16>
    %cst_23 = arith.constant dense<0.000000e+00> : vector<16x128xf32>
    %22 = tpu.matmul %19, %21, %cst_23 {dimension_numbers = #tpu.dot_dimension_numbers<[1], [0], [0], [1], [0, 0, 1, 1], [], []>} : vector<16x128xbf16>, vector<128x128xbf16>, vector<16x128xf32> -> vector<16x128xf32>
    %23 = arith.addf %18, %22 : vector<16x128xf32>
    %c8_24 = arith.constant 8 : index
    %c0_25 = arith.constant 0 : index
    %24 = vector.load %arg8[%c8_24, %c0_25] : memref<32x128xbf16, #tpu.memory_space<vmem>>, vector<16x128xbf16>
    %c3 = arith.constant 3 : index
    %c0_26 = arith.constant 0 : index
    %c0_27 = arith.constant 0 : index
    %25 = vector.load %arg2[%c3, %c0_26, %c0_27] : memref<7x128x128xbf16, #tpu.memory_space<vmem>>, vector<1x128x128xbf16>
    %26 = vector.shape_cast %25 : vector<1x128x128xbf16> to vector<128x128xbf16>
    %cst_28 = arith.constant dense<0.000000e+00> : vector<16x128xf32>
    %27 = tpu.matmul %24, %26, %cst_28 {dimension_numbers = #tpu.dot_dimension_numbers<[1], [0], [0], [1], [0, 0, 1, 1], [], []>} : vector<16x128xbf16>, vector<128x128xbf16>, vector<16x128xf32> -> vector<16x128xf32>
    %28 = arith.addf %23, %27 : vector<16x128xf32>
    %c9 = arith.constant 9 : index
    %c0_29 = arith.constant 0 : index
    %29 = vector.load %arg8[%c9, %c0_29] : memref<32x128xbf16, #tpu.memory_space<vmem>>, vector<16x128xbf16>
    %c4 = arith.constant 4 : index
    %c0_30 = arith.constant 0 : index
    %c0_31 = arith.constant 0 : index
    %30 = vector.load %arg2[%c4, %c0_30, %c0_31] : memref<7x128x128xbf16, #tpu.memory_space<vmem>>, vector<1x128x128xbf16>
    %31 = vector.shape_cast %30 : vector<1x128x128xbf16> to vector<128x128xbf16>
    %cst_32 = arith.constant dense<0.000000e+00> : vector<16x128xf32>
    %32 = tpu.matmul %29, %31, %cst_32 {dimension_numbers = #tpu.dot_dimension_numbers<[1], [0], [0], [1], [0, 0, 1, 1], [], []>} : vector<16x128xbf16>, vector<128x128xbf16>, vector<16x128xf32> -> vector<16x128xf32>
    %33 = arith.addf %28, %32 : vector<16x128xf32>
    %c10 = arith.constant 10 : index
    %c0_33 = arith.constant 0 : index
    %34 = vector.load %arg8[%c10, %c0_33] : memref<32x128xbf16, #tpu.memory_space<vmem>>, vector<16x128xbf16>
    %c5_34 = arith.constant 5 : index
    %c0_35 = arith.constant 0 : index
    %c0_36 = arith.constant 0 : index
    %35 = vector.load %arg2[%c5_34, %c0_35, %c0_36] : memref<7x128x128xbf16, #tpu.memory_space<vmem>>, vector<1x128x128xbf16>
    %36 = vector.shape_cast %35 : vector<1x128x128xbf16> to vector<128x128xbf16>
    %cst_37 = arith.constant dense<0.000000e+00> : vector<16x128xf32>
    %37 = tpu.matmul %34, %36, %cst_37 {dimension_numbers = #tpu.dot_dimension_numbers<[1], [0], [0], [1], [0, 0, 1, 1], [], []>} : vector<16x128xbf16>, vector<128x128xbf16>, vector<16x128xf32> -> vector<16x128xf32>
    %38 = arith.addf %33, %37 : vector<16x128xf32>
    %c11 = arith.constant 11 : index
    %c0_38 = arith.constant 0 : index
    %39 = vector.load %arg8[%c11, %c0_38] : memref<32x128xbf16, #tpu.memory_space<vmem>>, vector<16x128xbf16>
    %c6_39 = arith.constant 6 : index
    %c0_40 = arith.constant 0 : index
    %c0_41 = arith.constant 0 : index
    %40 = vector.load %arg2[%c6_39, %c0_40, %c0_41] : memref<7x128x128xbf16, #tpu.memory_space<vmem>>, vector<1x128x128xbf16>
    %41 = vector.shape_cast %40 : vector<1x128x128xbf16> to vector<128x128xbf16>
    %cst_42 = arith.constant dense<0.000000e+00> : vector<16x128xf32>
    %42 = tpu.matmul %39, %41, %cst_42 {dimension_numbers = #tpu.dot_dimension_numbers<[1], [0], [0], [1], [0, 0, 1, 1], [], []>} : vector<16x128xbf16>, vector<128x128xbf16>, vector<16x128xf32> -> vector<16x128xf32>
    %43 = arith.addf %38, %42 : vector<16x128xf32>
    %44 = arith.truncf %43 : vector<16x128xf32> to vector<16x128xbf16>
    %c0_43 = arith.constant 0 : index
    %c0_44 = arith.constant 0 : index
    %c0_45 = arith.constant 0 : index
    %45 = vector.load %arg4[%c0_43, %c0_44, %c0_45] : memref<1x16x128xbf16, #tpu.memory_space<vmem>>, vector<1x16x128xbf16>
    %46 = vector.shape_cast %45 : vector<1x16x128xbf16> to vector<16x128xbf16>
    %47 = vector.shape_cast %44 : vector<16x128xbf16> to vector<1x16x128xbf16>
    tpu.vector_store %arg4[%c0_43, %c0_44, %c0_45], %47 {strides = array<i32>} : memref<1x16x128xbf16, #tpu.memory_space<vmem>>, vector<1x16x128xbf16>,
    %48 = arith.truncf %4 : vector<16x128xf32> to vector<16x128xbf16>
    %c0_46 = arith.constant 0 : index
    %c0_47 = arith.constant 0 : index
    %c0_48 = arith.constant 0 : index
    %49 = vector.load %arg5[%c0_46, %c0_47, %c0_48] : memref<1x16x128xbf16, #tpu.memory_space<vmem>>, vector<1x16x128xbf16>
    %50 = vector.shape_cast %49 : vector<1x16x128xbf16> to vector<16x128xbf16>
    %51 = vector.shape_cast %48 : vector<16x128xbf16> to vector<1x16x128xbf16>
    tpu.vector_store %arg5[%c0_46, %c0_47, %c0_48], %51 {strides = array<i32>} : memref<1x16x128xbf16, #tpu.memory_space<vmem>>, vector<1x16x128xbf16>,
    %cst_49 = arith.constant dense<0.000000e+00> : vector<128xf32>
    %52 = vector.multi_reduction <add>, %43, %cst_49 [0] : vector<16x128xf32> to vector<128xf32>
    %53 = vector.shape_cast %52 : vector<128xf32> to vector<1x128xf32>
    %54 = arith.mulf %43, %43 : vector<16x128xf32>
    %cst_50 = arith.constant dense<0.000000e+00> : vector<128xf32>
    %55 = vector.multi_reduction <add>, %54, %cst_50 [0] : vector<16x128xf32> to vector<128xf32>
    %56 = vector.shape_cast %55 : vector<128xf32> to vector<1x128xf32>
    %57 = tpu.concatenate %53, %56 in 0 : vector<1x128xf32>, vector<1x128xf32> -> vector<2x128xf32>
    %c0_51 = arith.constant 0 : index
    %c0_52 = arith.constant 0 : index
    %c0_53 = arith.constant 0 : index
    %58 = vector.load %arg6[%c0_51, %c0_52, %c0_53] : memref<1x2x128xf32, #tpu.memory_space<vmem>>, vector<1x2x128xf32>
    %59 = vector.shape_cast %58 : vector<1x2x128xf32> to vector<2x128xf32>
    %60 = vector.shape_cast %57 : vector<2x128xf32> to vector<1x2x128xf32>
    tpu.vector_store %arg6[%c0_51, %c0_52, %c0_53], %60 {strides = array<i32>} : memref<1x2x128xf32, #tpu.memory_space<vmem>>, vector<1x2x128xf32>,
    %cst_54 = arith.constant dense<0.000000e+00> : vector<128xf32>
    %61 = vector.multi_reduction <add>, %4, %cst_54 [0] : vector<16x128xf32> to vector<128xf32>
    %62 = vector.shape_cast %61 : vector<128xf32> to vector<1x128xf32>
    %63 = arith.mulf %4, %4 : vector<16x128xf32>
    %cst_55 = arith.constant dense<0.000000e+00> : vector<128xf32>
    %64 = vector.multi_reduction <add>, %63, %cst_55 [0] : vector<16x128xf32> to vector<128xf32>
    %65 = vector.shape_cast %64 : vector<128xf32> to vector<1x128xf32>
    %66 = tpu.concatenate %62, %65 in 0 : vector<1x128xf32>, vector<1x128xf32> -> vector<2x128xf32>
    %c0_56 = arith.constant 0 : index
    %c0_57 = arith.constant 0 : index
    %c0_58 = arith.constant 0 : index
    %67 = vector.load %arg7[%c0_56, %c0_57, %c0_58] : memref<1x2x128xf32, #tpu.memory_space<vmem>>, vector<1x2x128xf32>
    %68 = vector.shape_cast %67 : vector<1x2x128xf32> to vector<2x128xf32>
    %69 = vector.shape_cast %66 : vector<2x128xf32> to vector<1x2x128xf32>
    tpu.vector_store %arg7[%c0_56, %c0_57, %c0_58], %69 {strides = array<i32>} : memref<1x2x128xf32, #tpu.memory_space<vmem>>, vector<1x2x128xf32>,
    return
  }
  func.func @transform_0(%arg0: i32) -> (i32, i32, i32) {
    %c0_i32 = arith.constant 0 : i32
    %c0_i32_0 = arith.constant 0 : i32
    %c0_i32_1 = arith.constant 0 : i32
    return %arg0, %c0_i32, %c0_i32_0 : i32, i32, i32
  }
  func.func @transform_1(%arg0: i32) -> (i32, i32, i32) {
    %c0_i32 = arith.constant 0 : i32
    %c0_i32_0 = arith.constant 0 : i32
    %c0_i32_1 = arith.constant 0 : i32
    %c0_i32_2 = arith.constant 0 : i32
    return %c0_i32, %c0_i32_0, %c0_i32_1 : i32, i32, i32
  }
  func.func @transform_2(%arg0: i32) -> (i32, i32, i32) {
    %c0_i32 = arith.constant 0 : i32
    %c0_i32_0 = arith.constant 0 : i32
    %c0_i32_1 = arith.constant 0 : i32
    %c0_i32_2 = arith.constant 0 : i32
    return %c0_i32, %c0_i32_0, %c0_i32_1 : i32, i32, i32
  }
  func.func @transform_3(%arg0: i32) -> (i32, i32, i32) {
    %c0_i32 = arith.constant 0 : i32
    %c0_i32_0 = arith.constant 0 : i32
    %c0_i32_1 = arith.constant 0 : i32
    return %arg0, %c0_i32, %c0_i32_0 : i32, i32, i32
  }
  func.func @transform_4(%arg0: i32) -> (i32, i32, i32) {
    %c0_i32 = arith.constant 0 : i32
    %c0_i32_0 = arith.constant 0 : i32
    %c0_i32_1 = arith.constant 0 : i32
    return %arg0, %c0_i32, %c0_i32_0 : i32, i32, i32
  }
  func.func @transform_5(%arg0: i32) -> (i32, i32, i32) {
    %c0_i32 = arith.constant 0 : i32
    %c0_i32_0 = arith.constant 0 : i32
    %c0_i32_1 = arith.constant 0 : i32
    return %arg0, %c0_i32, %c0_i32_0 : i32, i32, i32
  }
  func.func @transform_6(%arg0: i32) -> (i32, i32, i32) {
    %c0_i32 = arith.constant 0 : i32
    %c0_i32_0 = arith.constant 0 : i32
    %c0_i32_1 = arith.constant 0 : i32
    return %arg0, %c0_i32, %c0_i32_0 : i32, i32, i32
  }
}

module attributes {stable_mosaic.version = 11 : i64} {
  func.func @_bn_relu_conv_kernel(%arg0: i32, %arg1: memref<1x16x128xbf16, #tpu.memory_space<vmem>>, %arg2: memref<1x128xf32, #tpu.memory_space<vmem>>, %arg3: memref<1x128xf32, #tpu.memory_space<vmem>>, %arg4: memref<5x128x128xbf16, #tpu.memory_space<vmem>>, %arg5: memref<1x16x128xbf16, #tpu.memory_space<vmem>>, %arg6: memref<1x2x128xf32, #tpu.memory_space<vmem>>, %arg7: memref<32x128xbf16, #tpu.memory_space<vmem>>) attributes {dimension_semantics = [#tpu.dimension_semantics<parallel>], iteration_bounds = array<i64: 2>, scalar_prefetch = 0 : i64, scratch_operands = 1 : i64, tpu.core_type = #tpu.core_type<tc>, window_params = [{transform_indices = @transform_0, window_bounds = array<i64: 1, 16, 128>}, {pipeline_mode = #tpu.pipeline_mode<synchronous>, transform_indices = @transform_1, window_bounds = array<i64: 1, 128>}, {pipeline_mode = #tpu.pipeline_mode<synchronous>, transform_indices = @transform_2, window_bounds = array<i64: 1, 128>}, {pipeline_mode = #tpu.pipeline_mode<synchronous>, transform_indices = @transform_3, window_bounds = array<i64: 5, 128, 128>}, {transform_indices = @transform_4, window_bounds = array<i64: 1, 16, 128>}, {transform_indices = @transform_5, window_bounds = array<i64: 1, 2, 128>}]} {
    %c0 = arith.constant 0 : index
    %c0_0 = arith.constant 0 : index
    %c0_1 = arith.constant 0 : index
    %0 = vector.load %arg1[%c0, %c0_0, %c0_1] : memref<1x16x128xbf16, #tpu.memory_space<vmem>>, vector<1x16x128xbf16>
    %1 = vector.shape_cast %0 : vector<1x16x128xbf16> to vector<16x128xbf16>
    %2 = arith.extf %1 : vector<16x128xbf16> to vector<16x128xf32>
    %c0_2 = arith.constant 0 : index
    %c0_3 = arith.constant 0 : index
    %3 = vector.load %arg2[%c0_2, %c0_3] : memref<1x128xf32, #tpu.memory_space<vmem>>, vector<1x128xf32>
    %4 = vector.broadcast %3 : vector<1x128xf32> to vector<16x128xf32>
    %5 = arith.mulf %2, %4 : vector<16x128xf32>
    %c0_4 = arith.constant 0 : index
    %c0_5 = arith.constant 0 : index
    %6 = vector.load %arg3[%c0_4, %c0_5] : memref<1x128xf32, #tpu.memory_space<vmem>>, vector<1x128xf32>
    %7 = vector.broadcast %6 : vector<1x128xf32> to vector<16x128xf32>
    %8 = arith.addf %5, %7 : vector<16x128xf32>
    %cst = arith.constant 0.000000e+00 : f32
    %9 = vector.broadcast %cst : f32 to vector<16x128xf32>
    %10 = arith.maximumf %8, %9 : vector<16x128xf32>
    %11 = arith.truncf %10 : vector<16x128xf32> to vector<16x128xbf16>
    %cst_6 = arith.constant 0.000000e+00 : bf16
    %12 = vector.broadcast %cst_6 : bf16 to vector<8x128xbf16>
    %c0_7 = arith.constant 0 : index
    %c0_8 = arith.constant 0 : index
    %13 = vector.load %arg7[%c0_7, %c0_8] : memref<32x128xbf16, #tpu.memory_space<vmem>>, vector<8x128xbf16>
    tpu.vector_store %arg7[%c0_7, %c0_8], %12 {strides = array<i32>} : memref<32x128xbf16, #tpu.memory_space<vmem>>, vector<8x128xbf16>,
    %cst_9 = arith.constant 0.000000e+00 : bf16
    %14 = vector.broadcast %cst_9 : bf16 to vector<8x128xbf16>
    %c24 = arith.constant 24 : index
    %c0_10 = arith.constant 0 : index
    %15 = vector.load %arg7[%c24, %c0_10] : memref<32x128xbf16, #tpu.memory_space<vmem>>, vector<8x128xbf16>
    tpu.vector_store %arg7[%c24, %c0_10], %14 {strides = array<i32>} : memref<32x128xbf16, #tpu.memory_space<vmem>>, vector<8x128xbf16>,
    %c8 = arith.constant 8 : index
    %c0_11 = arith.constant 0 : index
    %16 = vector.load %arg7[%c8, %c0_11] : memref<32x128xbf16, #tpu.memory_space<vmem>>, vector<16x128xbf16>
    tpu.vector_store %arg7[%c8, %c0_11], %11 {strides = array<i32>} : memref<32x128xbf16, #tpu.memory_space<vmem>>, vector<16x128xbf16>,
    %c6 = arith.constant 6 : index
    %c0_12 = arith.constant 0 : index
    %17 = vector.load %arg7[%c6, %c0_12] : memref<32x128xbf16, #tpu.memory_space<vmem>>, vector<16x128xbf16>
    %c0_13 = arith.constant 0 : index
    %c0_14 = arith.constant 0 : index
    %c0_15 = arith.constant 0 : index
    %18 = vector.load %arg4[%c0_13, %c0_14, %c0_15] : memref<5x128x128xbf16, #tpu.memory_space<vmem>>, vector<1x128x128xbf16>
    %19 = vector.shape_cast %18 : vector<1x128x128xbf16> to vector<128x128xbf16>
    %cst_16 = arith.constant dense<0.000000e+00> : vector<16x128xf32>
    %20 = tpu.matmul %17, %19, %cst_16 {dimension_numbers = #tpu.dot_dimension_numbers<[1], [0], [0], [1], [0, 0, 1, 1], [], []>} : vector<16x128xbf16>, vector<128x128xbf16>, vector<16x128xf32> -> vector<16x128xf32>
    %c7 = arith.constant 7 : index
    %c0_17 = arith.constant 0 : index
    %21 = vector.load %arg7[%c7, %c0_17] : memref<32x128xbf16, #tpu.memory_space<vmem>>, vector<16x128xbf16>
    %c1 = arith.constant 1 : index
    %c0_18 = arith.constant 0 : index
    %c0_19 = arith.constant 0 : index
    %22 = vector.load %arg4[%c1, %c0_18, %c0_19] : memref<5x128x128xbf16, #tpu.memory_space<vmem>>, vector<1x128x128xbf16>
    %23 = vector.shape_cast %22 : vector<1x128x128xbf16> to vector<128x128xbf16>
    %cst_20 = arith.constant dense<0.000000e+00> : vector<16x128xf32>
    %24 = tpu.matmul %21, %23, %cst_20 {dimension_numbers = #tpu.dot_dimension_numbers<[1], [0], [0], [1], [0, 0, 1, 1], [], []>} : vector<16x128xbf16>, vector<128x128xbf16>, vector<16x128xf32> -> vector<16x128xf32>
    %25 = arith.addf %20, %24 : vector<16x128xf32>
    %c8_21 = arith.constant 8 : index
    %c0_22 = arith.constant 0 : index
    %26 = vector.load %arg7[%c8_21, %c0_22] : memref<32x128xbf16, #tpu.memory_space<vmem>>, vector<16x128xbf16>
    %c2 = arith.constant 2 : index
    %c0_23 = arith.constant 0 : index
    %c0_24 = arith.constant 0 : index
    %27 = vector.load %arg4[%c2, %c0_23, %c0_24] : memref<5x128x128xbf16, #tpu.memory_space<vmem>>, vector<1x128x128xbf16>
    %28 = vector.shape_cast %27 : vector<1x128x128xbf16> to vector<128x128xbf16>
    %cst_25 = arith.constant dense<0.000000e+00> : vector<16x128xf32>
    %29 = tpu.matmul %26, %28, %cst_25 {dimension_numbers = #tpu.dot_dimension_numbers<[1], [0], [0], [1], [0, 0, 1, 1], [], []>} : vector<16x128xbf16>, vector<128x128xbf16>, vector<16x128xf32> -> vector<16x128xf32>
    %30 = arith.addf %25, %29 : vector<16x128xf32>
    %c9 = arith.constant 9 : index
    %c0_26 = arith.constant 0 : index
    %31 = vector.load %arg7[%c9, %c0_26] : memref<32x128xbf16, #tpu.memory_space<vmem>>, vector<16x128xbf16>
    %c3 = arith.constant 3 : index
    %c0_27 = arith.constant 0 : index
    %c0_28 = arith.constant 0 : index
    %32 = vector.load %arg4[%c3, %c0_27, %c0_28] : memref<5x128x128xbf16, #tpu.memory_space<vmem>>, vector<1x128x128xbf16>
    %33 = vector.shape_cast %32 : vector<1x128x128xbf16> to vector<128x128xbf16>
    %cst_29 = arith.constant dense<0.000000e+00> : vector<16x128xf32>
    %34 = tpu.matmul %31, %33, %cst_29 {dimension_numbers = #tpu.dot_dimension_numbers<[1], [0], [0], [1], [0, 0, 1, 1], [], []>} : vector<16x128xbf16>, vector<128x128xbf16>, vector<16x128xf32> -> vector<16x128xf32>
    %35 = arith.addf %30, %34 : vector<16x128xf32>
    %c10 = arith.constant 10 : index
    %c0_30 = arith.constant 0 : index
    %36 = vector.load %arg7[%c10, %c0_30] : memref<32x128xbf16, #tpu.memory_space<vmem>>, vector<16x128xbf16>
    %c4 = arith.constant 4 : index
    %c0_31 = arith.constant 0 : index
    %c0_32 = arith.constant 0 : index
    %37 = vector.load %arg4[%c4, %c0_31, %c0_32] : memref<5x128x128xbf16, #tpu.memory_space<vmem>>, vector<1x128x128xbf16>
    %38 = vector.shape_cast %37 : vector<1x128x128xbf16> to vector<128x128xbf16>
    %cst_33 = arith.constant dense<0.000000e+00> : vector<16x128xf32>
    %39 = tpu.matmul %36, %38, %cst_33 {dimension_numbers = #tpu.dot_dimension_numbers<[1], [0], [0], [1], [0, 0, 1, 1], [], []>} : vector<16x128xbf16>, vector<128x128xbf16>, vector<16x128xf32> -> vector<16x128xf32>
    %40 = arith.addf %35, %39 : vector<16x128xf32>
    %41 = arith.truncf %40 : vector<16x128xf32> to vector<16x128xbf16>
    %c0_34 = arith.constant 0 : index
    %c0_35 = arith.constant 0 : index
    %c0_36 = arith.constant 0 : index
    %42 = vector.load %arg5[%c0_34, %c0_35, %c0_36] : memref<1x16x128xbf16, #tpu.memory_space<vmem>>, vector<1x16x128xbf16>
    %43 = vector.shape_cast %42 : vector<1x16x128xbf16> to vector<16x128xbf16>
    %44 = vector.shape_cast %41 : vector<16x128xbf16> to vector<1x16x128xbf16>
    tpu.vector_store %arg5[%c0_34, %c0_35, %c0_36], %44 {strides = array<i32>} : memref<1x16x128xbf16, #tpu.memory_space<vmem>>, vector<1x16x128xbf16>,
    %cst_37 = arith.constant dense<0.000000e+00> : vector<128xf32>
    %45 = vector.multi_reduction <add>, %40, %cst_37 [0] : vector<16x128xf32> to vector<128xf32>
    %46 = vector.shape_cast %45 : vector<128xf32> to vector<1x128xf32>
    %47 = arith.mulf %40, %40 : vector<16x128xf32>
    %cst_38 = arith.constant dense<0.000000e+00> : vector<128xf32>
    %48 = vector.multi_reduction <add>, %47, %cst_38 [0] : vector<16x128xf32> to vector<128xf32>
    %49 = vector.shape_cast %48 : vector<128xf32> to vector<1x128xf32>
    %50 = tpu.concatenate %46, %49 in 0 : vector<1x128xf32>, vector<1x128xf32> -> vector<2x128xf32>
    %c0_39 = arith.constant 0 : index
    %c0_40 = arith.constant 0 : index
    %c0_41 = arith.constant 0 : index
    %51 = vector.load %arg6[%c0_39, %c0_40, %c0_41] : memref<1x2x128xf32, #tpu.memory_space<vmem>>, vector<1x2x128xf32>
    %52 = vector.shape_cast %51 : vector<1x2x128xf32> to vector<2x128xf32>
    %53 = vector.shape_cast %50 : vector<2x128xf32> to vector<1x2x128xf32>
    tpu.vector_store %arg6[%c0_39, %c0_40, %c0_41], %53 {strides = array<i32>} : memref<1x2x128xf32, #tpu.memory_space<vmem>>, vector<1x2x128xf32>,
    return
  }
  func.func @transform_0(%arg0: i32) -> (i32, i32, i32) {
    %c0_i32 = arith.constant 0 : i32
    %c0_i32_0 = arith.constant 0 : i32
    %c0_i32_1 = arith.constant 0 : i32
    return %arg0, %c0_i32, %c0_i32_0 : i32, i32, i32
  }
  func.func @transform_1(%arg0: i32) -> (i32, i32) {
    %c0_i32 = arith.constant 0 : i32
    %c0_i32_0 = arith.constant 0 : i32
    %c0_i32_1 = arith.constant 0 : i32
    return %c0_i32, %c0_i32_0 : i32, i32
  }
  func.func @transform_2(%arg0: i32) -> (i32, i32) {
    %c0_i32 = arith.constant 0 : i32
    %c0_i32_0 = arith.constant 0 : i32
    %c0_i32_1 = arith.constant 0 : i32
    return %c0_i32, %c0_i32_0 : i32, i32
  }
  func.func @transform_3(%arg0: i32) -> (i32, i32, i32) {
    %c0_i32 = arith.constant 0 : i32
    %c0_i32_0 = arith.constant 0 : i32
    %c0_i32_1 = arith.constant 0 : i32
    %c0_i32_2 = arith.constant 0 : i32
    return %c0_i32, %c0_i32_0, %c0_i32_1 : i32, i32, i32
  }
  func.func @transform_4(%arg0: i32) -> (i32, i32, i32) {
    %c0_i32 = arith.constant 0 : i32
    %c0_i32_0 = arith.constant 0 : i32
    %c0_i32_1 = arith.constant 0 : i32
    return %arg0, %c0_i32, %c0_i32_0 : i32, i32, i32
  }
  func.func @transform_5(%arg0: i32) -> (i32, i32, i32) {
    %c0_i32 = arith.constant 0 : i32
    %c0_i32_0 = arith.constant 0 : i32
    %c0_i32_1 = arith.constant 0 : i32
    return %arg0, %c0_i32, %c0_i32_0 : i32, i32, i32
  }
}

module attributes {stable_mosaic.version = 11 : i64} {
  func.func @_bn_add_relu_kernel(%arg0: i32, %arg1: memref<1x16x128xbf16, #tpu.memory_space<vmem>>, %arg2: memref<1x16x128xbf16, #tpu.memory_space<vmem>>, %arg3: memref<1x128xf32, #tpu.memory_space<vmem>>, %arg4: memref<1x128xf32, #tpu.memory_space<vmem>>, %arg5: memref<1x128xf32, #tpu.memory_space<vmem>>, %arg6: memref<1x128xf32, #tpu.memory_space<vmem>>, %arg7: memref<1x16x128xf32, #tpu.memory_space<vmem>>) attributes {dimension_semantics = [#tpu.dimension_semantics<parallel>], iteration_bounds = array<i64: 2>, scalar_prefetch = 0 : i64, scratch_operands = 0 : i64, tpu.core_type = #tpu.core_type<tc>, window_params = [{transform_indices = @transform_0, window_bounds = array<i64: 1, 16, 128>}, {transform_indices = @transform_1, window_bounds = array<i64: 1, 16, 128>}, {pipeline_mode = #tpu.pipeline_mode<synchronous>, transform_indices = @transform_2, window_bounds = array<i64: 1, 128>}, {pipeline_mode = #tpu.pipeline_mode<synchronous>, transform_indices = @transform_3, window_bounds = array<i64: 1, 128>}, {pipeline_mode = #tpu.pipeline_mode<synchronous>, transform_indices = @transform_4, window_bounds = array<i64: 1, 128>}, {pipeline_mode = #tpu.pipeline_mode<synchronous>, transform_indices = @transform_5, window_bounds = array<i64: 1, 128>}, {transform_indices = @transform_6, window_bounds = array<i64: 1, 16, 128>}]} {
    %c0 = arith.constant 0 : index
    %c0_0 = arith.constant 0 : index
    %c0_1 = arith.constant 0 : index
    %0 = vector.load %arg1[%c0, %c0_0, %c0_1] : memref<1x16x128xbf16, #tpu.memory_space<vmem>>, vector<1x16x128xbf16>
    %1 = vector.shape_cast %0 : vector<1x16x128xbf16> to vector<16x128xbf16>
    %2 = arith.extf %1 : vector<16x128xbf16> to vector<16x128xf32>
    %c0_2 = arith.constant 0 : index
    %c0_3 = arith.constant 0 : index
    %c0_4 = arith.constant 0 : index
    %3 = vector.load %arg2[%c0_2, %c0_3, %c0_4] : memref<1x16x128xbf16, #tpu.memory_space<vmem>>, vector<1x16x128xbf16>
    %4 = vector.shape_cast %3 : vector<1x16x128xbf16> to vector<16x128xbf16>
    %5 = arith.extf %4 : vector<16x128xbf16> to vector<16x128xf32>
    %c0_5 = arith.constant 0 : index
    %c0_6 = arith.constant 0 : index
    %6 = vector.load %arg3[%c0_5, %c0_6] : memref<1x128xf32, #tpu.memory_space<vmem>>, vector<1x128xf32>
    %7 = vector.broadcast %6 : vector<1x128xf32> to vector<16x128xf32>
    %8 = arith.mulf %2, %7 : vector<16x128xf32>
    %c0_7 = arith.constant 0 : index
    %c0_8 = arith.constant 0 : index
    %9 = vector.load %arg4[%c0_7, %c0_8] : memref<1x128xf32, #tpu.memory_space<vmem>>, vector<1x128xf32>
    %10 = vector.broadcast %9 : vector<1x128xf32> to vector<16x128xf32>
    %11 = arith.addf %8, %10 : vector<16x128xf32>
    %c0_9 = arith.constant 0 : index
    %c0_10 = arith.constant 0 : index
    %12 = vector.load %arg5[%c0_9, %c0_10] : memref<1x128xf32, #tpu.memory_space<vmem>>, vector<1x128xf32>
    %13 = vector.broadcast %12 : vector<1x128xf32> to vector<16x128xf32>
    %14 = arith.mulf %5, %13 : vector<16x128xf32>
    %15 = arith.addf %11, %14 : vector<16x128xf32>
    %c0_11 = arith.constant 0 : index
    %c0_12 = arith.constant 0 : index
    %16 = vector.load %arg6[%c0_11, %c0_12] : memref<1x128xf32, #tpu.memory_space<vmem>>, vector<1x128xf32>
    %17 = vector.broadcast %16 : vector<1x128xf32> to vector<16x128xf32>
    %18 = arith.addf %15, %17 : vector<16x128xf32>
    %cst = arith.constant 0.000000e+00 : f32
    %19 = vector.broadcast %cst : f32 to vector<16x128xf32>
    %20 = arith.maximumf %18, %19 : vector<16x128xf32>
    %c0_13 = arith.constant 0 : index
    %c0_14 = arith.constant 0 : index
    %c0_15 = arith.constant 0 : index
    %21 = vector.load %arg7[%c0_13, %c0_14, %c0_15] : memref<1x16x128xf32, #tpu.memory_space<vmem>>, vector<1x16x128xf32>
    %22 = vector.shape_cast %21 : vector<1x16x128xf32> to vector<16x128xf32>
    %23 = vector.shape_cast %20 : vector<16x128xf32> to vector<1x16x128xf32>
    tpu.vector_store %arg7[%c0_13, %c0_14, %c0_15], %23 {strides = array<i32>} : memref<1x16x128xf32, #tpu.memory_space<vmem>>, vector<1x16x128xf32>,
    return
  }
  func.func @transform_0(%arg0: i32) -> (i32, i32, i32) {
    %c0_i32 = arith.constant 0 : i32
    %c0_i32_0 = arith.constant 0 : i32
    %c0_i32_1 = arith.constant 0 : i32
    return %arg0, %c0_i32, %c0_i32_0 : i32, i32, i32
  }
  func.func @transform_1(%arg0: i32) -> (i32, i32, i32) {
    %c0_i32 = arith.constant 0 : i32
    %c0_i32_0 = arith.constant 0 : i32
    %c0_i32_1 = arith.constant 0 : i32
    return %arg0, %c0_i32, %c0_i32_0 : i32, i32, i32
  }
  func.func @transform_2(%arg0: i32) -> (i32, i32) {
    %c0_i32 = arith.constant 0 : i32
    %c0_i32_0 = arith.constant 0 : i32
    %c0_i32_1 = arith.constant 0 : i32
    return %c0_i32, %c0_i32_0 : i32, i32
  }
  func.func @transform_3(%arg0: i32) -> (i32, i32) {
    %c0_i32 = arith.constant 0 : i32
    %c0_i32_0 = arith.constant 0 : i32
    %c0_i32_1 = arith.constant 0 : i32
    return %c0_i32, %c0_i32_0 : i32, i32
  }
  func.func @transform_4(%arg0: i32) -> (i32, i32) {
    %c0_i32 = arith.constant 0 : i32
    %c0_i32_0 = arith.constant 0 : i32
    %c0_i32_1 = arith.constant 0 : i32
    return %c0_i32, %c0_i32_0 : i32, i32
  }
  func.func @transform_5(%arg0: i32) -> (i32, i32) {
    %c0_i32 = arith.constant 0 : i32
    %c0_i32_0 = arith.constant 0 : i32
    %c0_i32_1 = arith.constant 0 : i32
    return %c0_i32, %c0_i32_0 : i32, i32
  }
  func.func @transform_6(%arg0: i32) -> (i32, i32, i32) {
    %c0_i32 = arith.constant 0 : i32
    %c0_i32_0 = arith.constant 0 : i32
    %c0_i32_1 = arith.constant 0 : i32
    return %arg0, %c0_i32, %c0_i32_0 : i32, i32, i32
  }
}

</mosaic_0001>

<llo_original>
// kernel: resnet_block_forward.7
$region0: #{resnet_block_forward.7}
  #allocation0 [shape = 'u32[]', space=smem, size = 0x4, offset = 0x4, fixed_abs, tag = 'smem constant byte address 0x4 - core index']
  #allocation1 [shape = 'u32[144,128]{1,0:T(1,128)}', space=vmem, size = 0x12000, scoped, tag = 'internal scratch']
  %s0 = inlined_call_operand.vmem [shape: bf16[2,16,128], index: 0, kind: input, shape index: {}]
  %s1 = inlined_call_operand.vmem [shape: bf16[2,16,128], index: 1, kind: input, shape index: {}]
  %s2 = inlined_call_operand.vmem [shape: f32[1,128], index: 2, kind: input, shape index: {}]
  %s3 = inlined_call_operand.vmem [shape: f32[1,128], index: 3, kind: input, shape index: {}]
  %s4 = inlined_call_operand.vmem [shape: f32[1,128], index: 4, kind: input, shape index: {}]
  %s5 = inlined_call_operand.vmem [shape: f32[1,128], index: 5, kind: input, shape index: {}]
  %s6 = inlined_call_operand.vmem [shape: f32[2,16,128], index: 6, kind: output, shape index: {}]
  %s7 = sld [smem:[#allocation0]]
  $region57: #{resnet_block_forward.7} parent=0
    _
  %s9 = ssub.s32 1, %s7
  %s10 = scalar_select 0, %s9, %s7
  loop: start=0, step=1, limit=4
  $region2: #{resnet_block_forward.7} parent=0 // loop_pre_header
    _
  $region3: #{resnet_block_forward.7} parent=0 // loop_header
    %s12 = sphi 0, %s16
    %p13 = scmp.ge.s32.totalorder %s12, 4
    %s22 = sphi 0, %s24
    %s25 = sphi 0, %s22
    %s26 = sphi 0, %s25
    %s42 = sphi 0, %s26
    %s48 = sphi 0, %s50
    %s51 = sphi 0, %s48
    %s52 = sphi 0, %s51
    %s68 = sphi 0, %s52
    %s72 = sphi 0, %s72
    %s74 = sphi 0, %s72
    %s75 = sphi 0, %s74
    %s89 = sphi 0, %s75
    %s93 = sphi 0, %s93
    %s95 = sphi 0, %s93
    %s96 = sphi 0, %s95
    %s110 = sphi 0, %s96
    %s114 = sphi 0, %s114
    %s116 = sphi 0, %s114
    %s117 = sphi 0, %s116
    %s131 = sphi 0, %s117
    %s135 = sphi 0, %s135
    %s137 = sphi 0, %s135
    %s138 = sphi 0, %s137
    %s152 = sphi 0, %s138
    %s158 = sphi 0, %s160
    %s161 = sphi 0, %s158
    %s162 = sphi 0, %s161
    %s178 = sphi 0, %s162
  $region4: #{resnet_block_forward.7} parent=0 // loop_header_branch
    %15 = sbr.rel (%p13) target = $region8
  $region5: #{resnet_block_forward.7} parent=0 // loop_body
    %s17 = ssub.s32 %s12, 1
    %s18 = ssub.s32 %s12, 2
    %s19 = sadd.s32 %s12, 1
    %s20 = ssub.s32 %s12, %s19
    %p21 = scmp.eq.s32.totalorder %s20, 0
    %s23 = sadd.s32 %s22, 1
    %s24 = scalar_select %p21, %s22, %s23
    %p27 = pneg %p21
    %p28 = scmp.eq.s32.totalorder %s12, 1
    %p29 = por %p27, %p28
    %p30 = scmp.ne.s32.totalorder %s22, %s25
    %p31 = scmp.eq.s32.totalorder %s12, 0
    %p32 = por %p30, %p31
    %p33 = scmp.ne.s32.totalorder %s22, %s25
    %p34 = scmp.eq.s32.totalorder %s17, 1
    %p35 = por %p33, %p34
    %p36 = scmp.ne.s32.totalorder %s25, %s26
    %p37 = scmp.eq.s32.totalorder %s17, 0
    %p38 = por %p36, %p37
    %p39 = scmp.ne.s32.totalorder %s25, %s26
    %p40 = scmp.eq.s32.totalorder %s18, 1
    %p41 = por %p39, %p40
    %p43 = scmp.ne.s32.totalorder %s26, %s42
    %p44 = scmp.eq.s32.totalorder %s18, 0
    %p45 = por %p43, %p44
    %s46 = ssub.s32 %s12, %s19
    %p47 = scmp.eq.s32.totalorder %s46, 0
    %s49 = sadd.s32 %s48, 1
    %s50 = scalar_select %p47, %s48, %s49
    %p53 = pneg %p47
    %p54 = scmp.eq.s32.totalorder %s12, 1
    %p55 = por %p53, %p54
    %p56 = scmp.ne.s32.totalorder %s48, %s51
    %p57 = scmp.eq.s32.totalorder %s12, 0
    %p58 = por %p56, %p57
    %p59 = scmp.ne.s32.totalorder %s48, %s51
    %p60 = scmp.eq.s32.totalorder %s17, 1
    %p61 = por %p59, %p60
    %p62 = scmp.ne.s32.totalorder %s51, %s52
    %p63 = scmp.eq.s32.totalorder %s17, 0
    %p64 = por %p62, %p63
    %p65 = scmp.ne.s32.totalorder %s51, %s52
    %p66 = scmp.eq.s32.totalorder %s18, 1
    %p67 = por %p65, %p66
    %p69 = scmp.ne.s32.totalorder %s52, %s68
    %p70 = scmp.eq.s32.totalorder %s18, 0
    %p71 = por %p69, %p70
    %s73 = sadd.s32 %s72, 1
    %p76 = scmp.eq.s32.totalorder %s12, 1
    %p77 = scmp.ne.s32.totalorder %s72, %s74
    %p78 = scmp.eq.s32.totalorder %s12, 0
    %p79 = por %p77, %p78
    %p80 = scmp.ne.s32.totalorder %s72, %s74
    %p81 = scmp.eq.s32.totalorder %s17, 1
    %p82 = por %p80, %p81
    %p83 = scmp.ne.s32.totalorder %s74, %s75
    %p84 = scmp.eq.s32.totalorder %s17, 0
    %p85 = por %p83, %p84
    %p86 = scmp.ne.s32.totalorder %s74, %s75
    %p87 = scmp.eq.s32.totalorder %s18, 1
    %p88 = por %p86, %p87
    %p90 = scmp.ne.s32.totalorder %s75, %s89
    %p91 = scmp.eq.s32.totalorder %s18, 0
    %p92 = por %p90, %p91
    %s94 = sadd.s32 %s93, 1
    %p97 = scmp.eq.s32.totalorder %s12, 1
    %p98 = scmp.ne.s32.totalorder %s93, %s95
    %p99 = scmp.eq.s32.totalorder %s12, 0
    %p100 = por %p98, %p99
    %p101 = scmp.ne.s32.totalorder %s93, %s95
    %p102 = scmp.eq.s32.totalorder %s17, 1
    %p103 = por %p101, %p102
    %p104 = scmp.ne.s32.totalorder %s95, %s96
    %p105 = scmp.eq.s32.totalorder %s17, 0
    %p106 = por %p104, %p105
    %p107 = scmp.ne.s32.totalorder %s95, %s96
    %p108 = scmp.eq.s32.totalorder %s18, 1
    %p109 = por %p107, %p108
    %p111 = scmp.ne.s32.totalorder %s96, %s110
    %p112 = scmp.eq.s32.totalorder %s18, 0
    %p113 = por %p111, %p112
    %s115 = sadd.s32 %s114, 1
    %p118 = scmp.eq.s32.totalorder %s12, 1
    %p119 = scmp.ne.s32.totalorder %s114, %s116
    %p120 = scmp.eq.s32.totalorder %s12, 0
    %p121 = por %p119, %p120
    %p122 = scmp.ne.s32.totalorder %s114, %s116
    %p123 = scmp.eq.s32.totalorder %s17, 1
    %p124 = por %p122, %p123
    %p125 = scmp.ne.s32.totalorder %s116, %s117
    %p126 = scmp.eq.s32.totalorder %s17, 0
    %p127 = por %p125, %p126
    %p128 = scmp.ne.s32.totalorder %s116, %s117
    %p129 = scmp.eq.s32.totalorder %s18, 1
    %p130 = por %p128, %p129
    %p132 = scmp.ne.s32.totalorder %s117, %s131
    %p133 = scmp.eq.s32.totalorder %s18, 0
    %p134 = por %p132, %p133
    %s136 = sadd.s32 %s135, 1
    %p139 = scmp.eq.s32.totalorder %s12, 1
    %p140 = scmp.ne.s32.totalorder %s135, %s137
    %p141 = scmp.eq.s32.totalorder %s12, 0
    %p142 = por %p140, %p141
    %p143 = scmp.ne.s32.totalorder %s135, %s137
    %p144 = scmp.eq.s32.totalorder %s17, 1
    %p145 = por %p143, %p144
    %p146 = scmp.ne.s32.totalorder %s137, %s138
    %p147 = scmp.eq.s32.totalorder %s17, 0
    %p148 = por %p146, %p147
    %p149 = scmp.ne.s32.totalorder %s137, %s138
    %p150 = scmp.eq.s32.totalorder %s18, 1
    %p151 = por %p149, %p150
    %p153 = scmp.ne.s32.totalorder %s138, %s152
    %p154 = scmp.eq.s32.totalorder %s18, 0
    %p155 = por %p153, %p154
    %s156 = ssub.s32 %s12, %s19
    %p157 = scmp.eq.s32.totalorder %s156, 0
    %s159 = sadd.s32 %s158, 1
    %s160 = scalar_select %p157, %s158, %s159
    %p163 = pneg %p157
    %p164 = scmp.eq.s32.totalorder %s12, 1
    %p165 = por %p163, %p164
    %p166 = scmp.ne.s32.totalorder %s158, %s161
    %p167 = scmp.eq.s32.totalorder %s12, 0
    %p168 = por %p166, %p167
    %p169 = scmp.ne.s32.totalorder %s158, %s161
    %p170 = scmp.eq.s32.totalorder %s17, 1
    %p171 = por %p169, %p170
    %p172 = scmp.ne.s32.totalorder %s161, %s162
    %p173 = scmp.eq.s32.totalorder %s17, 0
    %p174 = por %p172, %p173
    %p175 = scmp.ne.s32.totalorder %s161, %s162
    %p176 = scmp.eq.s32.totalorder %s18, 1
    %p177 = por %p175, %p176
    %p179 = scmp.ne.s32.totalorder %s162, %s178
    %p180 = scmp.eq.s32.totalorder %s18, 0
    %p181 = por %p179, %p180
    %p182 = scmp.le.s32.totalorder 1, %s12
    %p183 = scmp.lt.s32.totalorder %s12, 3
    %p184 = pnand %p182, %p183
    %p185 = pneg %p184
    // Predicated region
    $region9: #{resnet_block_forward.7} parent=5 // pred_check
      _
    $region10: #{resnet_block_forward.7} parent=5 // pred_check_branch
      %187 = sbr.rel (%p184) target = $region12
    $region11: #{resnet_block_forward.7} parent=5 // pred_region
      %s188 = ssub.s32 %s12, 1
      // Predicated region
      $region13: #{resnet_block_forward.7} parent=11 // pred_check
        %p189 = pneg %p85
      $region14: #{resnet_block_forward.7} parent=11 // pred_check_branch
        %191 = sbr.rel (%p189) target = $region16
      $region15: #{resnet_block_forward.7} parent=11 // pred_region
        _
      $region16: #{resnet_block_forward.7} parent=11 // pred_fallthru
        _
      // Predicated region
      $region17: #{resnet_block_forward.7} parent=11 // pred_check
        %p192 = pneg %p106
      $region18: #{resnet_block_forward.7} parent=11 // pred_check_branch
        %194 = sbr.rel (%p192) target = $region20
      $region19: #{resnet_block_forward.7} parent=11 // pred_region
        _
      $region20: #{resnet_block_forward.7} parent=11 // pred_fallthru
        _
      // Predicated region
      $region21: #{resnet_block_forward.7} parent=11 // pred_check
        %p195 = pneg %p127
      $region22: #{resnet_block_forward.7} parent=11 // pred_check_branch
        %197 = sbr.rel (%p195) target = $region24
      $region23: #{resnet_block_forward.7} parent=11 // pred_region
        _
      $region24: #{resnet_block_forward.7} parent=11 // pred_fallthru
        _
      // Predicated region
      $region25: #{resnet_block_forward.7} parent=11 // pred_check
        %p198 = pneg %p148
      $region26: #{resnet_block_forward.7} parent=11 // pred_check_branch
        %200 = sbr.rel (%p198) target = $region28
      $region27: #{resnet_block_forward.7} parent=11 // pred_region
        _
      $region28: #{resnet_block_forward.7} parent=11 // pred_fallthru
        _
    $region12: #{resnet_block_forward.7} parent=5 // pred_fallthru
      _
    %p201 = scmp.lt.s32.totalorder %s12, 2
    // Predicated region
    $region29: #{resnet_block_forward.7} parent=5 // pred_check
      %p202 = pneg %p201
    $region30: #{resnet_block_forward.7} parent=5 // pred_check_branch
      %204 = sbr.rel (%p202) target = $region32
    $region31: #{resnet_block_forward.7} parent=5 // pred_region
      // Predicated region
      $region33: #{resnet_block_forward.7} parent=31 // pred_check
        %p205 = pneg %p32
      $region34: #{resnet_block_forward.7} parent=31 // pred_check_branch
        %207 = sbr.rel (%p205) target = $region36
      $region35: #{resnet_block_forward.7} parent=31 // pred_region
        %p208 = scmp.lt.s32.totalorder %s12, 1
        %s209 = scalar_select %p208, %s12, 1
        %s210 = smul.addr %s209, 2
        %s211 = smul.addr %s210, 4
        %s212 = scalar_lea.vmem %s0, %s211
      $region36: #{resnet_block_forward.7} parent=31 // pred_fallthru
        _
      // Predicated region
      $region37: #{resnet_block_forward.7} parent=31 // pred_check
        %p213 = pneg %p58
      $region38: #{resnet_block_forward.7} parent=31 // pred_check_branch
        %215 = sbr.rel (%p213) target = $region40
      $region39: #{resnet_block_forward.7} parent=31 // pred_region
        %p216 = scmp.lt.s32.totalorder %s12, 1
        %s217 = scalar_select %p216, %s12, 1
        %s218 = smul.addr %s217, 2
        %s219 = smul.addr %s218, 4
        %s220 = scalar_lea.vmem %s1, %s219
      $region40: #{resnet_block_forward.7} parent=31 // pred_fallthru
        _
    $region32: #{resnet_block_forward.7} parent=5 // pred_fallthru
      _
    %p221 = scmp.le.s32.totalorder 1, %s12
    %p222 = scmp.lt.s32.totalorder %s12, 3
    %p223 = pnand %p221, %p222
    %p224 = pneg %p223
    // Predicated region
    $region41: #{resnet_block_forward.7} parent=5 // pred_check
      _
    $region42: #{resnet_block_forward.7} parent=5 // pred_check_branch
      %226 = sbr.rel (%p223) target = $region44
    $region43: #{resnet_block_forward.7} parent=5 // pred_region
      %s227 = ssub.s32 %s12, 1
      %p228 = scmp.lt.s32.totalorder %s17, 1
      %s229 = scalar_select %p228, %s17, 1
      %s230 = smul.addr %s229, 2
      %s231 = smul.addr %s230, 4
      %s232 = scalar_lea.vmem %s0, %s231
      %p233 = pneg %p38
      %p234 = pneg %p35
      %p235 = scmp.lt.s32.totalorder %s17, 1
      %s236 = scalar_select %p235, %s17, 1
      %s237 = smul.addr %s236, 2
      %s238 = smul.addr %s237, 4
      %s239 = scalar_lea.vmem %s1, %s238
      %p240 = pneg %p64
      %p241 = pneg %p61
      %p242 = pneg %p85
      %p243 = pneg %p82
      %p244 = pneg %p106
      %p245 = pneg %p103
      %p246 = pneg %p127
      %p247 = pneg %p124
      %p248 = pneg %p148
      %p249 = pneg %p145
      %p250 = pneg %p174
      %p251 = pneg %p171
      %p252 = scmp.lt.s32.totalorder %s17, 1
      %s253 = scalar_select %p252, %s17, 1
      %s254 = smul.addr %s253, 2
      %s255 = smul.addr %s254, 8
      %s256 = scalar_lea.vmem %s6, %s255
      %p257 = scmp.lt.s32.totalorder %s17, 1
      %s258 = scalar_select %p257, %s17, 1
      %s259 = smul.addr %s258, 2
      %s260 = smul.addr %s259, 4
      %s261 = scalar_lea.vmem %s0, %s260
      %p262 = scmp.lt.s32.totalorder %s17, 1
      %s263 = scalar_select %p262, %s17, 1
      %s264 = smul.addr %s263, 2
      %s265 = smul.addr %s264, 4
      %s266 = scalar_lea.vmem %s1, %s265
      %p267 = scmp.lt.s32.totalorder %s17, 1
      %s268 = scalar_select %p267, %s17, 1
      %s269 = smul.addr %s268, 2
      %s270 = smul.addr %s269, 8
      %s271 = scalar_lea.vmem %s6, %s270
      %v272 = vld [vmem:[%s261] sm:$0xf]
      %v273 = vld [vmem:[%s261 + $0x4] sm:$0xf]
      %v274 = vunpack.c.l.bf16 %v272
      %v275 = vunpack.c.l.bf16 %v273
      %v276 = vld [vmem:[%s266] sm:$0xf]
      %v277 = vld [vmem:[%s266 + $0x4] sm:$0xf]
      %v278 = vunpack.c.l.bf16 %v276
      %v279 = vunpack.c.l.bf16 %v277
      %v280 = vld [vmem:[%s2] sm:$0x1]
      %v282 = vlaneseq
      %v283 = vshrl.u32 %v282, 7
      %v284 = vsub.s32 0, %v283
      %v285 = vrot.slane %v280, %v284
      %v287 = vmul.f32 %v274, %v285
      %v288 = vmul.f32 %v275, %v285
      %v289 = vld [vmem:[%s3] sm:$0x1]
      %v291 = vlaneseq
      %v292 = vshrl.u32 %v291, 7
      %v293 = vsub.s32 0, %v292
      %v294 = vrot.slane %v289, %v293
      %v296 = vadd.f32 %v287, %v294
      %v297 = vadd.f32 %v288, %v294
      %v298 = vld [vmem:[%s4] sm:$0x1]
      %v300 = vlaneseq
      %v301 = vshrl.u32 %v300, 7
      %v302 = vsub.s32 0, %v301
      %v303 = vrot.slane %v298, %v302
      %v305 = vmul.f32 %v278, %v303
      %v306 = vmul.f32 %v279, %v303
      %v307 = vadd.f32 %v296, %v305
      %v308 = vadd.f32 %v297, %v306
      %v309 = vld [vmem:[%s5] sm:$0x1]
      %v311 = vlaneseq
      %v312 = vshrl.u32 %v311, 7
      %v313 = vsub.s32 0, %v312
      %v314 = vrot.slane %v309, %v313
      %v316 = vadd.f32 %v307, %v314
      %v317 = vadd.f32 %v308, %v314
      %v318 = vmax.f32 %v316, 0.0
      %v319 = vmax.f32 %v317, 0.0
      %320 = vst [vmem:[%s271] sm:$0xff] %v318
      %321 = vst [vmem:[%s271 + $0x8] sm:$0xff] %v319
      %p322 = scmp.lt.s32.totalorder %s17, 1
      %s323 = scalar_select %p322, %s17, 1
      %s324 = smul.addr %s323, 2
      %s325 = smul.addr %s324, 8
      %s326 = scalar_lea.vmem %s6, %s325
      // Predicated region
      $region45: #{resnet_block_forward.7} parent=43 // pred_check
        %p327 = pneg %p171
      $region46: #{resnet_block_forward.7} parent=43 // pred_check_branch
        %329 = sbr.rel (%p327) target = $region48
      $region47: #{resnet_block_forward.7} parent=43 // pred_region
        _
      $region48: #{resnet_block_forward.7} parent=43 // pred_fallthru
        _
    $region44: #{resnet_block_forward.7} parent=5 // pred_fallthru
      _
    %p330 = scmp.le.s32.totalorder 2, %s12
    // Predicated region
    $region49: #{resnet_block_forward.7} parent=5 // pred_check
      %p331 = pneg %p330
    $region50: #{resnet_block_forward.7} parent=5 // pred_check_branch
      %333 = sbr.rel (%p331) target = $region52
    $region51: #{resnet_block_forward.7} parent=5 // pred_region
      %s334 = ssub.s32 %s12, 2
      // Predicated region
      $region53: #{resnet_block_forward.7} parent=51 // pred_check
        %p335 = pneg %p177
      $region54: #{resnet_block_forward.7} parent=51 // pred_check_branch
        %337 = sbr.rel (%p335) target = $region56
      $region55: #{resnet_block_forward.7} parent=51 // pred_region
        %p338 = scmp.lt.s32.totalorder %s18, 1
        %s339 = scalar_select %p338, %s18, 1
        %s340 = smul.addr %s339, 2
        %s341 = smul.addr %s340, 8
        %s342 = scalar_lea.vmem %s6, %s341
      $region56: #{resnet_block_forward.7} parent=51 // pred_fallthru
        _
    $region52: #{resnet_block_forward.7} parent=5 // pred_fallthru
      _
  $region6: #{resnet_block_forward.7} parent=0 // loop_footer
    %s16 = sadd.s32 1, %s12
  $region7: #{resnet_block_forward.7} parent=0 // loop_footer_branch
    %11 = sbr.rel target = $region3
  $region8: #{resnet_block_forward.7} parent=0 // loop_exit
    _

// kernel: resnet_block_forward.6
$region0: #{resnet_block_forward.6}
  #allocation0 [shape = 'u32[]', space=smem, size = 0x4, offset = 0x4, fixed_abs, tag = 'smem constant byte address 0x4 - core index']
  #allocation1 [shape = 'u32[144,128]{1,0:T(1,128)}', space=vmem, size = 0x12000, scoped, tag = 'internal scratch']
  #allocation2 [shape = 'bf16[32,128]{1,0:T(16,128)(2,1)}', space=vmem, size = 0x2000, scoped, tag = 'scratch operand']
  %s0 = inlined_call_operand.vmem [shape: bf16[2,16,128], index: 0, kind: input, shape index: {}]
  %s1 = inlined_call_operand.vmem [shape: f32[1,128], index: 1, kind: input, shape index: {}]
  %s2 = inlined_call_operand.vmem [shape: f32[1,128], index: 2, kind: input, shape index: {}]
  %s3 = inlined_call_operand.vmem [shape: bf16[3,128,128], index: 3, kind: input, shape index: {}]
  %s4 = inlined_call_operand.vmem [shape: bf16[2,16,128], index: 4, kind: output, shape index: {0}]
  %s5 = inlined_call_operand.vmem [shape: f32[2,2,128], index: 5, kind: output, shape index: {1}]
  %6 = xla_tuple %s4, %s5
  %s7 = sld [smem:[#allocation0]]
  $region57: #{resnet_block_forward.6} parent=0
    _
  %s9 = ssub.s32 1, %s7
  %s10 = scalar_select 0, %s9, %s7
  loop: start=0, step=1, limit=4
  $region2: #{resnet_block_forward.6} parent=0 // loop_pre_header
    _
  $region3: #{resnet_block_forward.6} parent=0 // loop_header
    %s12 = sphi 0, %s16
    %p13 = scmp.ge.s32.totalorder %s12, 4
    %s22 = sphi 0, %s24
    %s25 = sphi 0, %s22
    %s26 = sphi 0, %s25
    %s42 = sphi 0, %s26
    %s46 = sphi 0, %s46
    %s48 = sphi 0, %s46
    %s49 = sphi 0, %s48
    %s63 = sphi 0, %s49
    %s67 = sphi 0, %s67
    %s69 = sphi 0, %s67
    %s70 = sphi 0, %s69
    %s84 = sphi 0, %s70
    %s88 = sphi 0, %s88
    %s90 = sphi 0, %s88
    %s91 = sphi 0, %s90
    %s105 = sphi 0, %s91
    %s111 = sphi 0, %s113
    %s114 = sphi 0, %s111
    %s115 = sphi 0, %s114
    %s131 = sphi 0, %s115
    %s137 = sphi 0, %s139
    %s140 = sphi 0, %s137
    %s141 = sphi 0, %s140
    %s157 = sphi 0, %s141
  $region4: #{resnet_block_forward.6} parent=0 // loop_header_branch
    %15 = sbr.rel (%p13) target = $region8
  $region5: #{resnet_block_forward.6} parent=0 // loop_body
    %s17 = ssub.s32 %s12, 1
    %s18 = ssub.s32 %s12, 2
    %s19 = sadd.s32 %s12, 1
    %s20 = ssub.s32 %s12, %s19
    %p21 = scmp.eq.s32.totalorder %s20, 0
    %s23 = sadd.s32 %s22, 1
    %s24 = scalar_select %p21, %s22, %s23
    %p27 = pneg %p21
    %p28 = scmp.eq.s32.totalorder %s12, 1
    %p29 = por %p27, %p28
    %p30 = scmp.ne.s32.totalorder %s22, %s25
    %p31 = scmp.eq.s32.totalorder %s12, 0
    %p32 = por %p30, %p31
    %p33 = scmp.ne.s32.totalorder %s22, %s25
    %p34 = scmp.eq.s32.totalorder %s17, 1
    %p35 = por %p33, %p34
    %p36 = scmp.ne.s32.totalorder %s25, %s26
    %p37 = scmp.eq.s32.totalorder %s17, 0
    %p38 = por %p36, %p37
    %p39 = scmp.ne.s32.totalorder %s25, %s26
    %p40 = scmp.eq.s32.totalorder %s18, 1
    %p41 = por %p39, %p40
    %p43 = scmp.ne.s32.totalorder %s26, %s42
    %p44 = scmp.eq.s32.totalorder %s18, 0
    %p45 = por %p43, %p44
    %s47 = sadd.s32 %s46, 1
    %p50 = scmp.eq.s32.totalorder %s12, 1
    %p51 = scmp.ne.s32.totalorder %s46, %s48
    %p52 = scmp.eq.s32.totalorder %s12, 0
    %p53 = por %p51, %p52
    %p54 = scmp.ne.s32.totalorder %s46, %s48
    %p55 = scmp.eq.s32.totalorder %s17, 1
    %p56 = por %p54, %p55
    %p57 = scmp.ne.s32.totalorder %s48, %s49
    %p58 = scmp.eq.s32.totalorder %s17, 0
    %p59 = por %p57, %p58
    %p60 = scmp.ne.s32.totalorder %s48, %s49
    %p61 = scmp.eq.s32.totalorder %s18, 1
    %p62 = por %p60, %p61
    %p64 = scmp.ne.s32.totalorder %s49, %s63
    %p65 = scmp.eq.s32.totalorder %s18, 0
    %p66 = por %p64, %p65
    %s68 = sadd.s32 %s67, 1
    %p71 = scmp.eq.s32.totalorder %s12, 1
    %p72 = scmp.ne.s32.totalorder %s67, %s69
    %p73 = scmp.eq.s32.totalorder %s12, 0
    %p74 = por %p72, %p73
    %p75 = scmp.ne.s32.totalorder %s67, %s69
    %p76 = scmp.eq.s32.totalorder %s17, 1
    %p77 = por %p75, %p76
    %p78 = scmp.ne.s32.totalorder %s69, %s70
    %p79 = scmp.eq.s32.totalorder %s17, 0
    %p80 = por %p78, %p79
    %p81 = scmp.ne.s32.totalorder %s69, %s70
    %p82 = scmp.eq.s32.totalorder %s18, 1
    %p83 = por %p81, %p82
    %p85 = scmp.ne.s32.totalorder %s70, %s84
    %p86 = scmp.eq.s32.totalorder %s18, 0
    %p87 = por %p85, %p86
    %s89 = sadd.s32 %s88, 1
    %p92 = scmp.eq.s32.totalorder %s12, 1
    %p93 = scmp.ne.s32.totalorder %s88, %s90
    %p94 = scmp.eq.s32.totalorder %s12, 0
    %p95 = por %p93, %p94
    %p96 = scmp.ne.s32.totalorder %s88, %s90
    %p97 = scmp.eq.s32.totalorder %s17, 1
    %p98 = por %p96, %p97
    %p99 = scmp.ne.s32.totalorder %s90, %s91
    %p100 = scmp.eq.s32.totalorder %s17, 0
    %p101 = por %p99, %p100
    %p102 = scmp.ne.s32.totalorder %s90, %s91
    %p103 = scmp.eq.s32.totalorder %s18, 1
    %p104 = por %p102, %p103
    %p106 = scmp.ne.s32.totalorder %s91, %s105
    %p107 = scmp.eq.s32.totalorder %s18, 0
    %p108 = por %p106, %p107
    %s109 = ssub.s32 %s12, %s19
    %p110 = scmp.eq.s32.totalorder %s109, 0
    %s112 = sadd.s32 %s111, 1
    %s113 = scalar_select %p110, %s111, %s112
    %p116 = pneg %p110
    %p117 = scmp.eq.s32.totalorder %s12, 1
    %p118 = por %p116, %p117
    %p119 = scmp.ne.s32.totalorder %s111, %s114
    %p120 = scmp.eq.s32.totalorder %s12, 0
    %p121 = por %p119, %p120
    %p122 = scmp.ne.s32.totalorder %s111, %s114
    %p123 = scmp.eq.s32.totalorder %s17, 1
    %p124 = por %p122, %p123
    %p125 = scmp.ne.s32.totalorder %s114, %s115
    %p126 = scmp.eq.s32.totalorder %s17, 0
    %p127 = por %p125, %p126
    %p128 = scmp.ne.s32.totalorder %s114, %s115
    %p129 = scmp.eq.s32.totalorder %s18, 1
    %p130 = por %p128, %p129
    %p132 = scmp.ne.s32.totalorder %s115, %s131
    %p133 = scmp.eq.s32.totalorder %s18, 0
    %p134 = por %p132, %p133
    %s135 = ssub.s32 %s12, %s19
    %p136 = scmp.eq.s32.totalorder %s135, 0
    %s138 = sadd.s32 %s137, 1
    %s139 = scalar_select %p136, %s137, %s138
    %p142 = pneg %p136
    %p143 = scmp.eq.s32.totalorder %s12, 1
    %p144 = por %p142, %p143
    %p145 = scmp.ne.s32.totalorder %s137, %s140
    %p146 = scmp.eq.s32.totalorder %s12, 0
    %p147 = por %p145, %p146
    %p148 = scmp.ne.s32.totalorder %s137, %s140
    %p149 = scmp.eq.s32.totalorder %s17, 1
    %p150 = por %p148, %p149
    %p151 = scmp.ne.s32.totalorder %s140, %s141
    %p152 = scmp.eq.s32.totalorder %s17, 0
    %p153 = por %p151, %p152
    %p154 = scmp.ne.s32.totalorder %s140, %s141
    %p155 = scmp.eq.s32.totalorder %s18, 1
    %p156 = por %p154, %p155
    %p158 = scmp.ne.s32.totalorder %s141, %s157
    %p159 = scmp.eq.s32.totalorder %s18, 0
    %p160 = por %p158, %p159
    %p161 = scmp.le.s32.totalorder 1, %s12
    %p162 = scmp.lt.s32.totalorder %s12, 3
    %p163 = pnand %p161, %p162
    %p164 = pneg %p163
    // Predicated region
    $region9: #{resnet_block_forward.6} parent=5 // pred_check
      _
    $region10: #{resnet_block_forward.6} parent=5 // pred_check_branch
      %166 = sbr.rel (%p163) target = $region12
    $region11: #{resnet_block_forward.6} parent=5 // pred_region
      %s167 = ssub.s32 %s12, 1
      // Predicated region
      $region13: #{resnet_block_forward.6} parent=11 // pred_check
        %p168 = pneg %p59
      $region14: #{resnet_block_forward.6} parent=11 // pred_check_branch
        %170 = sbr.rel (%p168) target = $region16
      $region15: #{resnet_block_forward.6} parent=11 // pred_region
        _
      $region16: #{resnet_block_forward.6} parent=11 // pred_fallthru
        _
      // Predicated region
      $region17: #{resnet_block_forward.6} parent=11 // pred_check
        %p171 = pneg %p80
      $region18: #{resnet_block_forward.6} parent=11 // pred_check_branch
        %173 = sbr.rel (%p171) target = $region20
      $region19: #{resnet_block_forward.6} parent=11 // pred_region
        _
      $region20: #{resnet_block_forward.6} parent=11 // pred_fallthru
        _
      // Predicated region
      $region21: #{resnet_block_forward.6} parent=11 // pred_check
        %p174 = pneg %p101
      $region22: #{resnet_block_forward.6} parent=11 // pred_check_branch
        %176 = sbr.rel (%p174) target = $region24
      $region23: #{resnet_block_forward.6} parent=11 // pred_region
        _
      $region24: #{resnet_block_forward.6} parent=11 // pred_fallthru
        _
    $region12: #{resnet_block_forward.6} parent=5 // pred_fallthru
      _
    %p177 = scmp.lt.s32.totalorder %s12, 2
    // Predicated region
    $region25: #{resnet_block_forward.6} parent=5 // pred_check
      %p178 = pneg %p177
    $region26: #{resnet_block_forward.6} parent=5 // pred_check_branch
      %180 = sbr.rel (%p178) target = $region28
    $region27: #{resnet_block_forward.6} parent=5 // pred_region
      // Predicated region
      $region29: #{resnet_block_forward.6} parent=27 // pred_check
        %p181 = pneg %p32
      $region30: #{resnet_block_forward.6} parent=27 // pred_check_branch
        %183 = sbr.rel (%p181) target = $region32
      $region31: #{resnet_block_forward.6} parent=27 // pred_region
        %p184 = scmp.lt.s32.totalorder %s12, 1
        %s185 = scalar_select %p184, %s12, 1
        %s186 = smul.addr %s185, 2
        %s187 = smul.addr %s186, 4
        %s188 = scalar_lea.vmem %s0, %s187
      $region32: #{resnet_block_forward.6} parent=27 // pred_fallthru
        _
    $region28: #{resnet_block_forward.6} parent=5 // pred_fallthru
      _
    %p189 = scmp.le.s32.totalorder 1, %s12
    %p190 = scmp.lt.s32.totalorder %s12, 3
    %p191 = pnand %p189, %p190
    %p192 = pneg %p191
    // Predicated region
    $region33: #{resnet_block_forward.6} parent=5 // pred_check
      _
    $region34: #{resnet_block_forward.6} parent=5 // pred_check_branch
      %194 = sbr.rel (%p191) target = $region36
    $region35: #{resnet_block_forward.6} parent=5 // pred_region
      %s195 = ssub.s32 %s12, 1
      %p196 = scmp.lt.s32.totalorder %s17, 1
      %s197 = scalar_select %p196, %s17, 1
      %s198 = smul.addr %s197, 2
      %s199 = smul.addr %s198, 4
      %s200 = scalar_lea.vmem %s0, %s199
      %p201 = pneg %p38
      %p202 = pneg %p35
      %p203 = pneg %p59
      %p204 = pneg %p56
      %p205 = pneg %p80
      %p206 = pneg %p77
      %p207 = pneg %p101
      %p208 = pneg %p98
      %p209 = pneg %p127
      %p210 = pneg %p124
      %p211 = scmp.lt.s32.totalorder %s17, 1
      %s212 = scalar_select %p211, %s17, 1
      %s213 = smul.addr %s212, 2
      %s214 = smul.addr %s213, 4
      %s215 = scalar_lea.vmem %s4, %s214
      %p216 = pneg %p153
      %p217 = pneg %p150
      %p218 = scmp.lt.s32.totalorder %s17, 1
      %s219 = scalar_select %p218, %s17, 1
      %s220 = smul.addr %s219, 2
      %s221 = scalar_lea.vmem %s5, %s220
      %p222 = scmp.lt.s32.totalorder %s17, 1
      %s223 = scalar_select %p222, %s17, 1
      %s224 = smul.addr %s223, 2
      %s225 = smul.addr %s224, 4
      %s226 = scalar_lea.vmem %s0, %s225
      %p227 = scmp.lt.s32.totalorder %s17, 1
      %s228 = scalar_select %p227, %s17, 1
      %s229 = smul.addr %s228, 2
      %s230 = smul.addr %s229, 4
      %s231 = scalar_lea.vmem %s4, %s230
      %p232 = scmp.lt.s32.totalorder %s17, 1
      %s233 = scalar_select %p232, %s17, 1
      %s234 = smul.addr %s233, 2
      %s235 = scalar_lea.vmem %s5, %s234
      %v237 = vld [vmem:[%s226] sm:$0xf]
      %v238 = vld [vmem:[%s226 + $0x4] sm:$0xf]
      %v239 = vunpack.c.l.bf16 %v237
      %v240 = vunpack.c.l.bf16 %v238
      %v241 = vld [vmem:[%s1] sm:$0x1]
      %v243 = vlaneseq
      %v244 = vshrl.u32 %v243, 7
      %v245 = vsub.s32 0, %v244
      %v246 = vrot.slane %v241, %v245
      %v248 = vmul.f32 %v239, %v246
      %v249 = vmul.f32 %v240, %v246
      %v250 = vld [vmem:[%s2] sm:$0x1]
      %v252 = vlaneseq
      %v253 = vshrl.u32 %v252, 7
      %v254 = vsub.s32 0, %v253
      %v255 = vrot.slane %v250, %v254
      %v257 = vadd.f32 %v248, %v255
      %v258 = vadd.f32 %v249, %v255
      %v259 = vmax.f32 %v257, 0.0
      %v260 = vmax.f32 %v258, 0.0
      %v261 = vpack.c.bf16 %v260, %v259
      %262 = vst [vmem:[#allocation2] sm:$0xf] 0
      %263 = vst [vmem:[#allocation2 + $0x8] sm:$0xf0] 0
      %v265 = vrot.slane %v261, 4
      %267 = vst [vmem:[#allocation2] sm:$0xf0] %v265
      %268 = vst [vmem:[#allocation2 + $0x8] sm:$0xf] %v265
      %v269 = vld [vmem:[#allocation2] sm:$0xf8]
      %v270 = vld [vmem:[#allocation2 + $0x8] sm:$0xf]
      %v271 = vld [vmem:[%s3] sm:$0xf]
      %v272 = vld [vmem:[%s3 + $0x4] sm:$0xf]
      %v273 = vld [vmem:[%s3 + $0x8] sm:$0xf]
      %v274 = vld [vmem:[%s3 + $0xc] sm:$0xf]
      %v275 = vld [vmem:[%s3 + $0x10] sm:$0xf]
      %v276 = vld [vmem:[%s3 + $0x14] sm:$0xf]
      %v277 = vld [vmem:[%s3 + $0x18] sm:$0xf]
      %v278 = vld [vmem:[%s3 + $0x1c] sm:$0xf]
      %v279 = vld [vmem:[%s3 + $0x20] sm:$0xf]
      %v280 = vld [vmem:[%s3 + $0x24] sm:$0xf]
      %v281 = vld [vmem:[%s3 + $0x28] sm:$0xf]
      %v282 = vld [vmem:[%s3 + $0x2c] sm:$0xf]
      %v283 = vld [vmem:[%s3 + $0x30] sm:$0xf]
      %v284 = vld [vmem:[%s3 + $0x34] sm:$0xf]
      %v285 = vld [vmem:[%s3 + $0x38] sm:$0xf]
      %v286 = vld [vmem:[%s3 + $0x3c] sm:$0xf]
      %v287 = vld [vmem:[#allocation2] sm:$0xf0]
      %s288 = scalar_lea.vmem %s3, 64
      %v289 = vld [vmem:[%s288] sm:$0xf]
      %v290 = vld [vmem:[%s288 + $0x4] sm:$0xf]
      %v291 = vld [vmem:[%s288 + $0x8] sm:$0xf]
      %v292 = vld [vmem:[%s288 + $0xc] sm:$0xf]
      %v293 = vld [vmem:[%s288 + $0x10] sm:$0xf]
      %v294 = vld [vmem:[%s288 + $0x14] sm:$0xf]
      %v295 = vld [vmem:[%s288 + $0x18] sm:$0xf]
      %v296 = vld [vmem:[%s288 + $0x1c] sm:$0xf]
      %v297 = vld [vmem:[%s288 + $0x20] sm:$0xf]
      %v298 = vld [vmem:[%s288 + $0x24] sm:$0xf]
      %v299 = vld [vmem:[%s288 + $0x28] sm:$0xf]
      %v300 = vld [vmem:[%s288 + $0x2c] sm:$0xf]
      %v301 = vld [vmem:[%s288 + $0x30] sm:$0xf]
      %v302 = vld [vmem:[%s288 + $0x34] sm:$0xf]
      %v303 = vld [vmem:[%s288 + $0x38] sm:$0xf]
      %v304 = vld [vmem:[%s288 + $0x3c] sm:$0xf]
      %vm307 = vcmask 1043456
      %v308 = vrot.slane %v287, 4
      %v309 = vrot.slane %v270, 4
      %v310 = vsel %vm307, %v308, %v309
      %v328 = vunpack.c.l.b16 %v289
      %v329 = vunpack.c.l.b16 %v290
      %v330 = vunpack.c.l.b16 %v291
      %v331 = vunpack.c.l.b16 %v292
      %v332 = vunpack.c.l.b16 %v293
      %v333 = vunpack.c.l.b16 %v294
      %v334 = vunpack.c.l.b16 %v295
      %v335 = vunpack.c.l.b16 %v296
      %v336 = vunpack.c.l.b16 %v297
      %v337 = vunpack.c.l.b16 %v298
      %v338 = vunpack.c.l.b16 %v299
      %v339 = vunpack.c.l.b16 %v300
      %v340 = vunpack.c.l.b16 %v301
      %v341 = vunpack.c.l.b16 %v302
      %v342 = vunpack.c.l.b16 %v303
      %v343 = vunpack.c.l.b16 %v304
      %v344 = vpack.c.b16 %v329, %v328
      %v345 = vpack.c.b16 %v331, %v330
      %v346 = vpack.c.b16 %v333, %v332
      %v347 = vpack.c.b16 %v335, %v334
      %v348 = vpack.c.b16 %v337, %v336
      %v349 = vpack.c.b16 %v339, %v338
      %v350 = vpack.c.b16 %v341, %v340
      %v351 = vpack.c.b16 %v343, %v342
      %360 = vmatprep.subr.bf16.mxu0 0
      %361 = vmatpush1.bf16.msra.mxu0 %v344
      %362 = vmatprep.subr.bf16.mxu0 0
      %363 = vmatpush1.bf16.msra.mxu0 %v345
      %364 = vmatprep.subr.bf16.mxu0 0
      %365 = vmatpush1.bf16.msra.mxu0 %v346
      %366 = vmatprep.subr.bf16.mxu0 0
      %367 = vmatpush1.bf16.msra.mxu0 %v347
      %368 = vmatprep.subr.bf16.mxu0 0
      %369 = vmatpush1.bf16.msra.mxu0 %v348
      %370 = vmatprep.subr.bf16.mxu0 0
      %371 = vmatpush1.bf16.msra.mxu0 %v349
      %372 = vmatprep.subr.bf16.mxu0 0
      %373 = vmatpush1.bf16.msra.mxu0 %v350
      %374 = vmatprep.subr.bf16.mxu0 0
      %375 = vmatpush1.bf16.msra.mxu0 %v351
      %376 = vmatprep.subr.bf16.mxu0 0
      %377 = vmatpush1.bf16.msra.mxu0 0
      %378 = vmatprep.subr.bf16.mxu0 0
      %379 = vmatpush1.bf16.msra.mxu0 0
      %380 = vmatprep.subr.bf16.mxu0 0
      %381 = vmatpush1.bf16.msra.mxu0 0
      %382 = vmatprep.subr.bf16.mxu0 0
      %383 = vmatpush1.bf16.msra.mxu0 0
      %384 = vmatprep.subr.bf16.mxu0 0
      %385 = vmatpush1.bf16.msra.mxu0 0
      %386 = vmatprep.subr.bf16.mxu0 0
      %387 = vmatpush1.bf16.msra.mxu0 0
      %388 = vmatprep.subr.bf16.mxu0 0
      %389 = vmatpush1.bf16.msra.mxu0 0
      %390 = vmatprep.subr.bf16.mxu0 0
      %391 = vmatpush1.bf16.msra.mxu0 0
      %392 = vmatprep.mubr.bf16.mxu0 0
      %393 = vmatmul.mubr.bf16.gmra.mrb[0].mxu0 %v310
      %v394 = vpop.f32.mrb[0].mxu0
      %v395 = vadd.f32 0.0, %v394
      %v396 = vpop.f32.mrb[0].mxu0
      %v397 = vpop.f32.mrb[0].mxu0
      %v398 = vadd.f32 0.0, %v397
      %v399 = vpop.f32.mrb[0].mxu0
      %400 = vdwg.mxu0
      %vm401 = vsmask.f32 4352
      %v403 = vshrl.u32 %v269, 16
      %v405 = vrot.slane %v403, 3
      %v406 = vshll.u32 %v269, 16
      %v408 = vrot.slane %v406, 4
      %v409 = vor.u32 %v405, %v408
      %v411 = vshrl.u32 %v270, 16
      %v413 = vrot.slane %v411, 3
      %v414 = vshll.u32 %v270, 16
      %v416 = vrot.slane %v414, 4
      %v417 = vor.u32 %v413, %v416
      %v418 = vsel %vm401, %v409, %v417
      %v436 = vunpack.c.l.b16 %v271
      %v437 = vunpack.c.l.b16 %v272
      %v438 = vunpack.c.l.b16 %v273
      %v439 = vunpack.c.l.b16 %v274
      %v440 = vunpack.c.l.b16 %v275
      %v441 = vunpack.c.l.b16 %v276
      %v442 = vunpack.c.l.b16 %v277
      %v443 = vunpack.c.l.b16 %v278
      %v444 = vunpack.c.l.b16 %v279
      %v445 = vunpack.c.l.b16 %v280
      %v446 = vunpack.c.l.b16 %v281
      %v447 = vunpack.c.l.b16 %v282
      %v448 = vunpack.c.l.b16 %v283
      %v449 = vunpack.c.l.b16 %v284
      %v450 = vunpack.c.l.b16 %v285
      %v451 = vunpack.c.l.b16 %v286
      %v452 = vpack.c.b16 %v437, %v436
      %v453 = vpack.c.b16 %v439, %v438
      %v454 = vpack.c.b16 %v441, %v440
      %v455 = vpack.c.b16 %v443, %v442
      %v456 = vpack.c.b16 %v445, %v444
      %v457 = vpack.c.b16 %v447, %v446
      %v458 = vpack.c.b16 %v449, %v448
      %v459 = vpack.c.b16 %v451, %v450
      %468 = vmatprep.subr.bf16.mxu0 0
      %469 = vmatpush1.bf16.msra.mxu0 %v452
      %470 = vmatprep.subr.bf16.mxu0 0
      %471 = vmatpush1.bf16.msra.mxu0 %v453
      %472 = vmatprep.subr.bf16.mxu0 0
      %473 = vmatpush1.bf16.msra.mxu0 %v454
      %474 = vmatprep.subr.bf16.mxu0 0
      %475 = vmatpush1.bf16.msra.mxu0 %v455
      %476 = vmatprep.subr.bf16.mxu0 0
      %477 = vmatpush1.bf16.msra.mxu0 %v456
      %478 = vmatprep.subr.bf16.mxu0 0
      %479 = vmatpush1.bf16.msra.mxu0 %v457
      %480 = vmatprep.subr.bf16.mxu0 0
      %481 = vmatpush1.bf16.msra.mxu0 %v458
      %482 = vmatprep.subr.bf16.mxu0 0
      %483 = vmatpush1.bf16.msra.mxu0 %v459
      %484 = vmatprep.subr.bf16.mxu0 0
      %485 = vmatpush1.bf16.msra.mxu0 0
      %486 = vmatprep.subr.bf16.mxu0 0
      %487 = vmatpush1.bf16.msra.mxu0 0
      %488 = vmatprep.subr.bf16.mxu0 0
      %489 = vmatpush1.bf16.msra.mxu0 0
      %490 = vmatprep.subr.bf16.mxu0 0
      %491 = vmatpush1.bf16.msra.mxu0 0
      %492 = vmatprep.subr.bf16.mxu0 0
      %493 = vmatpush1.bf16.msra.mxu0 0
      %494 = vmatprep.subr.bf16.mxu0 0
      %495 = vmatpush1.bf16.msra.mxu0 0
      %496 = vmatprep.subr.bf16.mxu0 0
      %497 = vmatpush1.bf16.msra.mxu0 0
      %498 = vmatprep.subr.bf16.mxu0 0
      %499 = vmatpush1.bf16.msra.mxu0 0
      %500 = vmatprep.mubr.bf16.mxu0 0
      %501 = vmatmul.mubr.bf16.gmra.mrb[0].mxu0 %v418
      %v502 = vpop.f32.mrb[0].mxu0
      %v503 = vadd.f32 %v395, %v502
      %v504 = vpop.f32.mrb[0].mxu0
      %v505 = vpop.f32.mrb[0].mxu0
      %v506 = vadd.f32 %v398, %v505
      %v507 = vpop.f32.mrb[0].mxu0
      %508 = vdwg.mxu0
      %v509 = vld [vmem:[#allocation2 + $0x8] sm:$0x1f]
      %s510 = scalar_lea.vmem %s3, 128
      %v511 = vld [vmem:[%s510] sm:$0xf]
      %v512 = vld [vmem:[%s510 + $0x4] sm:$0xf]
      %v513 = vld [vmem:[%s510 + $0x8] sm:$0xf]
      %v514 = vld [vmem:[%s510 + $0xc] sm:$0xf]
      %v515 = vld [vmem:[%s510 + $0x10] sm:$0xf]
      %v516 = vld [vmem:[%s510 + $0x14] sm:$0xf]
      %v517 = vld [vmem:[%s510 + $0x18] sm:$0xf]
      %v518 = vld [vmem:[%s510 + $0x1c] sm:$0xf]
      %v519 = vld [vmem:[%s510 + $0x20] sm:$0xf]
      %v520 = vld [vmem:[%s510 + $0x24] sm:$0xf]
      %v521 = vld [vmem:[%s510 + $0x28] sm:$0xf]
      %v522 = vld [vmem:[%s510 + $0x2c] sm:$0xf]
      %v523 = vld [vmem:[%s510 + $0x30] sm:$0xf]
      %v524 = vld [vmem:[%s510 + $0x34] sm:$0xf]
      %v525 = vld [vmem:[%s510 + $0x38] sm:$0xf]
      %v526 = vld [vmem:[%s510 + $0x3c] sm:$0xf]
      %vm527 = vsmask.f32 3328
      %v529 = vshrl.u32 %v287, 16
      %v531 = vrot.slane %v529, 4
      %v532 = vshll.u32 %v287, 16
      %v534 = vrot.slane %v532, 5
      %v535 = vor.u32 %v531, %v534
      %v537 = vshrl.u32 %v509, 16
      %v539 = vrot.slane %v537, 4
      %v540 = vshll.u32 %v509, 16
      %v542 = vrot.slane %v540, 5
      %v543 = vor.u32 %v539, %v542
      %v544 = vsel %vm527, %v535, %v543
      %v562 = vunpack.c.l.b16 %v511
      %v563 = vunpack.c.l.b16 %v512
      %v564 = vunpack.c.l.b16 %v513
      %v565 = vunpack.c.l.b16 %v514
      %v566 = vunpack.c.l.b16 %v515
      %v567 = vunpack.c.l.b16 %v516
      %v568 = vunpack.c.l.b16 %v517
      %v569 = vunpack.c.l.b16 %v518
      %v570 = vunpack.c.l.b16 %v519
      %v571 = vunpack.c.l.b16 %v520
      %v572 = vunpack.c.l.b16 %v521
      %v573 = vunpack.c.l.b16 %v522
      %v574 = vunpack.c.l.b16 %v523
      %v575 = vunpack.c.l.b16 %v524
      %v576 = vunpack.c.l.b16 %v525
      %v577 = vunpack.c.l.b16 %v526
      %v578 = vpack.c.b16 %v563, %v562
      %v579 = vpack.c.b16 %v565, %v564
      %v580 = vpack.c.b16 %v567, %v566
      %v581 = vpack.c.b16 %v569, %v568
      %v582 = vpack.c.b16 %v571, %v570
      %v583 = vpack.c.b16 %v573, %v572
      %v584 = vpack.c.b16 %v575, %v574
      %v585 = vpack.c.b16 %v577, %v576
      %594 = vmatprep.subr.bf16.mxu0 0
      %595 = vmatpush1.bf16.msra.mxu0 %v578
      %596 = vmatprep.subr.bf16.mxu0 0
      %597 = vmatpush1.bf16.msra.mxu0 %v579
      %598 = vmatprep.subr.bf16.mxu0 0
      %599 = vmatpush1.bf16.msra.mxu0 %v580
      %600 = vmatprep.subr.bf16.mxu0 0
      %601 = vmatpush1.bf16.msra.mxu0 %v581
      %602 = vmatprep.subr.bf16.mxu0 0
      %603 = vmatpush1.bf16.msra.mxu0 %v582
      %604 = vmatprep.subr.bf16.mxu0 0
      %605 = vmatpush1.bf16.msra.mxu0 %v583
      %606 = vmatprep.subr.bf16.mxu0 0
      %607 = vmatpush1.bf16.msra.mxu0 %v584
      %608 = vmatprep.subr.bf16.mxu0 0
      %609 = vmatpush1.bf16.msra.mxu0 %v585
      %610 = vmatprep.subr.bf16.mxu0 0
      %611 = vmatpush1.bf16.msra.mxu0 0
      %612 = vmatprep.subr.bf16.mxu0 0
      %613 = vmatpush1.bf16.msra.mxu0 0
      %614 = vmatprep.subr.bf16.mxu0 0
      %615 = vmatpush1.bf16.msra.mxu0 0
      %616 = vmatprep.subr.bf16.mxu0 0
      %617 = vmatpush1.bf16.msra.mxu0 0
      %618 = vmatprep.subr.bf16.mxu0 0
      %619 = vmatpush1.bf16.msra.mxu0 0
      %620 = vmatprep.subr.bf16.mxu0 0
      %621 = vmatpush1.bf16.msra.mxu0 0
      %622 = vmatprep.subr.bf16.mxu0 0
      %623 = vmatpush1.bf16.msra.mxu0 0
      %624 = vmatprep.subr.bf16.mxu0 0
      %625 = vmatpush1.bf16.msra.mxu0 0
      %626 = vmatprep.mubr.bf16.mxu0 0
      %627 = vmatmul.mubr.bf16.gmra.mrb[0].mxu0 %v544
      %v628 = vpop.f32.mrb[0].mxu0
      %v629 = vadd.f32 0.0, %v628
      %v630 = vpop.f32.mrb[0].mxu0
      %v631 = vpop.f32.mrb[0].mxu0
      %v632 = vadd.f32 0.0, %v631
      %v633 = vpop.f32.mrb[0].mxu0
      %634 = vdwg.mxu0
      %v635 = vadd.f32 %v503, %v629
      %v636 = vadd.f32 %v506, %v632
      %v637 = vpack.c.bf16 %v636, %v635
      %v639 = vunpack.c.l.b16 %v637
      %v640 = vunpack.c.h.b16 %v637
      %v641 = vpack.c.b16 %v639, %v639
      %v642 = vpack.c.b16 %v640, %v640
      %645 = vst [vmem:[%s231] sm:$0xf] %v641
      %646 = vst [vmem:[%s231 + $0x4] sm:$0xf] %v642
      %v647 = vadd.f32 %v635, %v636
      %v648 = vrot.slane %v647, 4
      %v649 = vadd.f32 %v647, %v648
      %v650 = vrot.slane %v649, 2
      %v651 = vadd.f32 %v649, %v650
      %v652 = vrot.slane %v651, 1
      %v653 = vadd.f32 %v651, %v652
      %v654 = vmul.f32 %v635, %v635
      %v655 = vmul.f32 %v636, %v636
      %v656 = vadd.f32 %v654, %v655
      %v657 = vrot.slane %v656, 4
      %v658 = vadd.f32 %v656, %v657
      %v659 = vrot.slane %v658, 2
      %v660 = vadd.f32 %v658, %v659
      %v661 = vrot.slane %v660, 1
      %v662 = vadd.f32 %v660, %v661
      %vm663 = vcmask 1040384
      %v664 = vsel %vm663, %v653, %v662
      %665 = vst [vmem:[%s235] sm:$0x3] %v664
      %p666 = scmp.lt.s32.totalorder %s17, 1
      %s667 = scalar_select %p666, %s17, 1
      %s668 = smul.addr %s667, 2
      %s669 = smul.addr %s668, 4
      %s670 = scalar_lea.vmem %s4, %s669
      %p671 = scmp.lt.s32.totalorder %s17, 1
      %s672 = scalar_select %p671, %s17, 1
      %s673 = smul.addr %s672, 2
      %s674 = scalar_lea.vmem %s5, %s673
      // Predicated region
      $region37: #{resnet_block_forward.6} parent=35 // pred_check
        %p675 = pneg %p124
      $region38: #{resnet_block_forward.6} parent=35 // pred_check_branch
        %677 = sbr.rel (%p675) target = $region40
      $region39: #{resnet_block_forward.6} parent=35 // pred_region
        _
      $region40: #{resnet_block_forward.6} parent=35 // pred_fallthru
        _
      // Predicated region
      $region41: #{resnet_block_forward.6} parent=35 // pred_check
        %p678 = pneg %p150
      $region42: #{resnet_block_forward.6} parent=35 // pred_check_branch
        %680 = sbr.rel (%p678) target = $region44
      $region43: #{resnet_block_forward.6} parent=35 // pred_region
        _
      $region44: #{resnet_block_forward.6} parent=35 // pred_fallthru
        _
    $region36: #{resnet_block_forward.6} parent=5 // pred_fallthru
      _
    %p681 = scmp.le.s32.totalorder 2, %s12
    // Predicated region
    $region45: #{resnet_block_forward.6} parent=5 // pred_check
      %p682 = pneg %p681
    $region46: #{resnet_block_forward.6} parent=5 // pred_check_branch
      %684 = sbr.rel (%p682) target = $region48
    $region47: #{resnet_block_forward.6} parent=5 // pred_region
      %s685 = ssub.s32 %s12, 2
      // Predicated region
      $region49: #{resnet_block_forward.6} parent=47 // pred_check
        %p686 = pneg %p130
      $region50: #{resnet_block_forward.6} parent=47 // pred_check_branch
        %688 = sbr.rel (%p686) target = $region52
      $region51: #{resnet_block_forward.6} parent=47 // pred_region
        %p689 = scmp.lt.s32.totalorder %s18, 1
        %s690 = scalar_select %p689, %s18, 1
        %s691 = smul.addr %s690, 2
        %s692 = smul.addr %s691, 4
        %s693 = scalar_lea.vmem %s4, %s692
      $region52: #{resnet_block_forward.6} parent=47 // pred_fallthru
        _
      // Predicated region
      $region53: #{resnet_block_forward.6} parent=47 // pred_check
        %p694 = pneg %p156
      $region54: #{resnet_block_forward.6} parent=47 // pred_check_branch
        %696 = sbr.rel (%p694) target = $region56
      $region55: #{resnet_block_forward.6} parent=47 // pred_region
        %p697 = scmp.lt.s32.totalorder %s18, 1
        %s698 = scalar_select %p697, %s18, 1
        %s699 = smul.addr %s698, 2
        %s700 = scalar_lea.vmem %s5, %s699
      $region56: #{resnet_block_forward.6} parent=47 // pred_fallthru
        _
    $region48: #{resnet_block_forward.6} parent=5 // pred_fallthru
      _
  $region6: #{resnet_block_forward.6} parent=0 // loop_footer
    %s16 = sadd.s32 1, %s12
  $region7: #{resnet_block_forward.6} parent=0 // loop_footer_branch
    %11 = sbr.rel target = $region3
  $region8: #{resnet_block_forward.6} parent=0 // loop_exit
    _

// kernel: resnet_block_forward.5
$region0: #{resnet_block_forward.5}
  #allocation0 [shape = 'u32[]', space=smem, size = 0x4, offset = 0x4, fixed_abs, tag = 'smem constant byte address 0x4 - core index']
  #allocation1 [shape = 'u32[144,128]{1,0:T(1,128)}', space=vmem, size = 0x12000, scoped, tag = 'internal scratch']
  #allocation2 [shape = 'bf16[32,128]{1,0:T(16,128)(2,1)}', space=vmem, size = 0x2000, scoped, tag = 'scratch operand']
  %s0 = inlined_call_operand.vmem [shape: bf16[2,16,128], index: 0, kind: input, shape index: {}]
  %s1 = inlined_call_operand.vmem [shape: f32[1,128], index: 1, kind: input, shape index: {}]
  %s2 = inlined_call_operand.vmem [shape: f32[1,128], index: 2, kind: input, shape index: {}]
  %s3 = inlined_call_operand.vmem [shape: bf16[5,128,128], index: 3, kind: input, shape index: {}]
  %s4 = inlined_call_operand.vmem [shape: bf16[2,16,128], index: 4, kind: output, shape index: {0}]
  %s5 = inlined_call_operand.vmem [shape: f32[2,2,128], index: 5, kind: output, shape index: {1}]
  %6 = xla_tuple %s4, %s5
  %s7 = sld [smem:[#allocation0]]
  $region57: #{resnet_block_forward.5} parent=0
    _
  %s9 = ssub.s32 1, %s7
  %s10 = scalar_select 0, %s9, %s7
  loop: start=0, step=1, limit=4
  $region2: #{resnet_block_forward.5} parent=0 // loop_pre_header
    _
  $region3: #{resnet_block_forward.5} parent=0 // loop_header
    %s12 = sphi 0, %s16
    %p13 = scmp.ge.s32.totalorder %s12, 4
    %s22 = sphi 0, %s24
    %s25 = sphi 0, %s22
    %s26 = sphi 0, %s25
    %s42 = sphi 0, %s26
    %s46 = sphi 0, %s46
    %s48 = sphi 0, %s46
    %s49 = sphi 0, %s48
    %s63 = sphi 0, %s49
    %s67 = sphi 0, %s67
    %s69 = sphi 0, %s67
    %s70 = sphi 0, %s69
    %s84 = sphi 0, %s70
    %s88 = sphi 0, %s88
    %s90 = sphi 0, %s88
    %s91 = sphi 0, %s90
    %s105 = sphi 0, %s91
    %s111 = sphi 0, %s113
    %s114 = sphi 0, %s111
    %s115 = sphi 0, %s114
    %s131 = sphi 0, %s115
    %s137 = sphi 0, %s139
    %s140 = sphi 0, %s137
    %s141 = sphi 0, %s140
    %s157 = sphi 0, %s141
  $region4: #{resnet_block_forward.5} parent=0 // loop_header_branch
    %15 = sbr.rel (%p13) target = $region8
  $region5: #{resnet_block_forward.5} parent=0 // loop_body
    %s17 = ssub.s32 %s12, 1
    %s18 = ssub.s32 %s12, 2
    %s19 = sadd.s32 %s12, 1
    %s20 = ssub.s32 %s12, %s19
    %p21 = scmp.eq.s32.totalorder %s20, 0
    %s23 = sadd.s32 %s22, 1
    %s24 = scalar_select %p21, %s22, %s23
    %p27 = pneg %p21
    %p28 = scmp.eq.s32.totalorder %s12, 1
    %p29 = por %p27, %p28
    %p30 = scmp.ne.s32.totalorder %s22, %s25
    %p31 = scmp.eq.s32.totalorder %s12, 0
    %p32 = por %p30, %p31
    %p33 = scmp.ne.s32.totalorder %s22, %s25
    %p34 = scmp.eq.s32.totalorder %s17, 1
    %p35 = por %p33, %p34
    %p36 = scmp.ne.s32.totalorder %s25, %s26
    %p37 = scmp.eq.s32.totalorder %s17, 0
    %p38 = por %p36, %p37
    %p39 = scmp.ne.s32.totalorder %s25, %s26
    %p40 = scmp.eq.s32.totalorder %s18, 1
    %p41 = por %p39, %p40
    %p43 = scmp.ne.s32.totalorder %s26, %s42
    %p44 = scmp.eq.s32.totalorder %s18, 0
    %p45 = por %p43, %p44
    %s47 = sadd.s32 %s46, 1
    %p50 = scmp.eq.s32.totalorder %s12, 1
    %p51 = scmp.ne.s32.totalorder %s46, %s48
    %p52 = scmp.eq.s32.totalorder %s12, 0
    %p53 = por %p51, %p52
    %p54 = scmp.ne.s32.totalorder %s46, %s48
    %p55 = scmp.eq.s32.totalorder %s17, 1
    %p56 = por %p54, %p55
    %p57 = scmp.ne.s32.totalorder %s48, %s49
    %p58 = scmp.eq.s32.totalorder %s17, 0
    %p59 = por %p57, %p58
    %p60 = scmp.ne.s32.totalorder %s48, %s49
    %p61 = scmp.eq.s32.totalorder %s18, 1
    %p62 = por %p60, %p61
    %p64 = scmp.ne.s32.totalorder %s49, %s63
    %p65 = scmp.eq.s32.totalorder %s18, 0
    %p66 = por %p64, %p65
    %s68 = sadd.s32 %s67, 1
    %p71 = scmp.eq.s32.totalorder %s12, 1
    %p72 = scmp.ne.s32.totalorder %s67, %s69
    %p73 = scmp.eq.s32.totalorder %s12, 0
    %p74 = por %p72, %p73
    %p75 = scmp.ne.s32.totalorder %s67, %s69
    %p76 = scmp.eq.s32.totalorder %s17, 1
    %p77 = por %p75, %p76
    %p78 = scmp.ne.s32.totalorder %s69, %s70
    %p79 = scmp.eq.s32.totalorder %s17, 0
    %p80 = por %p78, %p79
    %p81 = scmp.ne.s32.totalorder %s69, %s70
    %p82 = scmp.eq.s32.totalorder %s18, 1
    %p83 = por %p81, %p82
    %p85 = scmp.ne.s32.totalorder %s70, %s84
    %p86 = scmp.eq.s32.totalorder %s18, 0
    %p87 = por %p85, %p86
    %s89 = sadd.s32 %s88, 1
    %p92 = scmp.eq.s32.totalorder %s12, 1
    %p93 = scmp.ne.s32.totalorder %s88, %s90
    %p94 = scmp.eq.s32.totalorder %s12, 0
    %p95 = por %p93, %p94
    %p96 = scmp.ne.s32.totalorder %s88, %s90
    %p97 = scmp.eq.s32.totalorder %s17, 1
    %p98 = por %p96, %p97
    %p99 = scmp.ne.s32.totalorder %s90, %s91
    %p100 = scmp.eq.s32.totalorder %s17, 0
    %p101 = por %p99, %p100
    %p102 = scmp.ne.s32.totalorder %s90, %s91
    %p103 = scmp.eq.s32.totalorder %s18, 1
    %p104 = por %p102, %p103
    %p106 = scmp.ne.s32.totalorder %s91, %s105
    %p107 = scmp.eq.s32.totalorder %s18, 0
    %p108 = por %p106, %p107
    %s109 = ssub.s32 %s12, %s19
    %p110 = scmp.eq.s32.totalorder %s109, 0
    %s112 = sadd.s32 %s111, 1
    %s113 = scalar_select %p110, %s111, %s112
    %p116 = pneg %p110
    %p117 = scmp.eq.s32.totalorder %s12, 1
    %p118 = por %p116, %p117
    %p119 = scmp.ne.s32.totalorder %s111, %s114
    %p120 = scmp.eq.s32.totalorder %s12, 0
    %p121 = por %p119, %p120
    %p122 = scmp.ne.s32.totalorder %s111, %s114
    %p123 = scmp.eq.s32.totalorder %s17, 1
    %p124 = por %p122, %p123
    %p125 = scmp.ne.s32.totalorder %s114, %s115
    %p126 = scmp.eq.s32.totalorder %s17, 0
    %p127 = por %p125, %p126
    %p128 = scmp.ne.s32.totalorder %s114, %s115
    %p129 = scmp.eq.s32.totalorder %s18, 1
    %p130 = por %p128, %p129
    %p132 = scmp.ne.s32.totalorder %s115, %s131
    %p133 = scmp.eq.s32.totalorder %s18, 0
    %p134 = por %p132, %p133
    %s135 = ssub.s32 %s12, %s19
    %p136 = scmp.eq.s32.totalorder %s135, 0
    %s138 = sadd.s32 %s137, 1
    %s139 = scalar_select %p136, %s137, %s138
    %p142 = pneg %p136
    %p143 = scmp.eq.s32.totalorder %s12, 1
    %p144 = por %p142, %p143
    %p145 = scmp.ne.s32.totalorder %s137, %s140
    %p146 = scmp.eq.s32.totalorder %s12, 0
    %p147 = por %p145, %p146
    %p148 = scmp.ne.s32.totalorder %s137, %s140
    %p149 = scmp.eq.s32.totalorder %s17, 1
    %p150 = por %p148, %p149
    %p151 = scmp.ne.s32.totalorder %s140, %s141
    %p152 = scmp.eq.s32.totalorder %s17, 0
    %p153 = por %p151, %p152
    %p154 = scmp.ne.s32.totalorder %s140, %s141
    %p155 = scmp.eq.s32.totalorder %s18, 1
    %p156 = por %p154, %p155
    %p158 = scmp.ne.s32.totalorder %s141, %s157
    %p159 = scmp.eq.s32.totalorder %s18, 0
    %p160 = por %p158, %p159
    %p161 = scmp.le.s32.totalorder 1, %s12
    %p162 = scmp.lt.s32.totalorder %s12, 3
    %p163 = pnand %p161, %p162
    %p164 = pneg %p163
    // Predicated region
    $region9: #{resnet_block_forward.5} parent=5 // pred_check
      _
    $region10: #{resnet_block_forward.5} parent=5 // pred_check_branch
      %166 = sbr.rel (%p163) target = $region12
    $region11: #{resnet_block_forward.5} parent=5 // pred_region
      %s167 = ssub.s32 %s12, 1
      // Predicated region
      $region13: #{resnet_block_forward.5} parent=11 // pred_check
        %p168 = pneg %p59
      $region14: #{resnet_block_forward.5} parent=11 // pred_check_branch
        %170 = sbr.rel (%p168) target = $region16
      $region15: #{resnet_block_forward.5} parent=11 // pred_region
        _
      $region16: #{resnet_block_forward.5} parent=11 // pred_fallthru
        _
      // Predicated region
      $region17: #{resnet_block_forward.5} parent=11 // pred_check
        %p171 = pneg %p80
      $region18: #{resnet_block_forward.5} parent=11 // pred_check_branch
        %173 = sbr.rel (%p171) target = $region20
      $region19: #{resnet_block_forward.5} parent=11 // pred_region
        _
      $region20: #{resnet_block_forward.5} parent=11 // pred_fallthru
        _
      // Predicated region
      $region21: #{resnet_block_forward.5} parent=11 // pred_check
        %p174 = pneg %p101
      $region22: #{resnet_block_forward.5} parent=11 // pred_check_branch
        %176 = sbr.rel (%p174) target = $region24
      $region23: #{resnet_block_forward.5} parent=11 // pred_region
        _
      $region24: #{resnet_block_forward.5} parent=11 // pred_fallthru
        _
    $region12: #{resnet_block_forward.5} parent=5 // pred_fallthru
      _
    %p177 = scmp.lt.s32.totalorder %s12, 2
    // Predicated region
    $region25: #{resnet_block_forward.5} parent=5 // pred_check
      %p178 = pneg %p177
    $region26: #{resnet_block_forward.5} parent=5 // pred_check_branch
      %180 = sbr.rel (%p178) target = $region28
    $region27: #{resnet_block_forward.5} parent=5 // pred_region
      // Predicated region
      $region29: #{resnet_block_forward.5} parent=27 // pred_check
        %p181 = pneg %p32
      $region30: #{resnet_block_forward.5} parent=27 // pred_check_branch
        %183 = sbr.rel (%p181) target = $region32
      $region31: #{resnet_block_forward.5} parent=27 // pred_region
        %p184 = scmp.lt.s32.totalorder %s12, 1
        %s185 = scalar_select %p184, %s12, 1
        %s186 = smul.addr %s185, 2
        %s187 = smul.addr %s186, 4
        %s188 = scalar_lea.vmem %s0, %s187
      $region32: #{resnet_block_forward.5} parent=27 // pred_fallthru
        _
    $region28: #{resnet_block_forward.5} parent=5 // pred_fallthru
      _
    %p189 = scmp.le.s32.totalorder 1, %s12
    %p190 = scmp.lt.s32.totalorder %s12, 3
    %p191 = pnand %p189, %p190
    %p192 = pneg %p191
    // Predicated region
    $region33: #{resnet_block_forward.5} parent=5 // pred_check
      _
    $region34: #{resnet_block_forward.5} parent=5 // pred_check_branch
      %194 = sbr.rel (%p191) target = $region36
    $region35: #{resnet_block_forward.5} parent=5 // pred_region
      %s195 = ssub.s32 %s12, 1
      %p196 = scmp.lt.s32.totalorder %s17, 1
      %s197 = scalar_select %p196, %s17, 1
      %s198 = smul.addr %s197, 2
      %s199 = smul.addr %s198, 4
      %s200 = scalar_lea.vmem %s0, %s199
      %p201 = pneg %p38
      %p202 = pneg %p35
      %p203 = pneg %p59
      %p204 = pneg %p56
      %p205 = pneg %p80
      %p206 = pneg %p77
      %p207 = pneg %p101
      %p208 = pneg %p98
      %p209 = pneg %p127
      %p210 = pneg %p124
      %p211 = scmp.lt.s32.totalorder %s17, 1
      %s212 = scalar_select %p211, %s17, 1
      %s213 = smul.addr %s212, 2
      %s214 = smul.addr %s213, 4
      %s215 = scalar_lea.vmem %s4, %s214
      %p216 = pneg %p153
      %p217 = pneg %p150
      %p218 = scmp.lt.s32.totalorder %s17, 1
      %s219 = scalar_select %p218, %s17, 1
      %s220 = smul.addr %s219, 2
      %s221 = scalar_lea.vmem %s5, %s220
      %p222 = scmp.lt.s32.totalorder %s17, 1
      %s223 = scalar_select %p222, %s17, 1
      %s224 = smul.addr %s223, 2
      %s225 = smul.addr %s224, 4
      %s226 = scalar_lea.vmem %s0, %s225
      %p227 = scmp.lt.s32.totalorder %s17, 1
      %s228 = scalar_select %p227, %s17, 1
      %s229 = smul.addr %s228, 2
      %s230 = smul.addr %s229, 4
      %s231 = scalar_lea.vmem %s4, %s230
      %p232 = scmp.lt.s32.totalorder %s17, 1
      %s233 = scalar_select %p232, %s17, 1
      %s234 = smul.addr %s233, 2
      %s235 = scalar_lea.vmem %s5, %s234
      %v237 = vld [vmem:[%s226] sm:$0xf]
      %v238 = vld [vmem:[%s226 + $0x4] sm:$0xf]
      %v239 = vunpack.c.l.bf16 %v237
      %v240 = vunpack.c.l.bf16 %v238
      %v241 = vld [vmem:[%s1] sm:$0x1]
      %v243 = vlaneseq
      %v244 = vshrl.u32 %v243, 7
      %v245 = vsub.s32 0, %v244
      %v246 = vrot.slane %v241, %v245
      %v248 = vmul.f32 %v239, %v246
      %v249 = vmul.f32 %v240, %v246
      %v250 = vld [vmem:[%s2] sm:$0x1]
      %v252 = vlaneseq
      %v253 = vshrl.u32 %v252, 7
      %v254 = vsub.s32 0, %v253
      %v255 = vrot.slane %v250, %v254
      %v257 = vadd.f32 %v248, %v255
      %v258 = vadd.f32 %v249, %v255
      %v259 = vmax.f32 %v257, 0.0
      %v260 = vmax.f32 %v258, 0.0
      %v261 = vpack.c.bf16 %v260, %v259
      %262 = vst [vmem:[#allocation2] sm:$0xf] 0
      %263 = vst [vmem:[#allocation2 + $0x8] sm:$0xf0] 0
      %v265 = vrot.slane %v261, 4
      %267 = vst [vmem:[#allocation2] sm:$0xf0] %v265
      %268 = vst [vmem:[#allocation2 + $0x8] sm:$0xf] %v265
      %v269 = vld [vmem:[#allocation2] sm:$0xf8]
      %v270 = vld [vmem:[#allocation2 + $0x8] sm:$0x7]
      %v271 = vld [vmem:[%s3] sm:$0xf]
      %v272 = vld [vmem:[%s3 + $0x4] sm:$0xf]
      %v273 = vld [vmem:[%s3 + $0x8] sm:$0xf]
      %v274 = vld [vmem:[%s3 + $0xc] sm:$0xf]
      %v275 = vld [vmem:[%s3 + $0x10] sm:$0xf]
      %v276 = vld [vmem:[%s3 + $0x14] sm:$0xf]
      %v277 = vld [vmem:[%s3 + $0x18] sm:$0xf]
      %v278 = vld [vmem:[%s3 + $0x1c] sm:$0xf]
      %v279 = vld [vmem:[%s3 + $0x20] sm:$0xf]
      %v280 = vld [vmem:[%s3 + $0x24] sm:$0xf]
      %v281 = vld [vmem:[%s3 + $0x28] sm:$0xf]
      %v282 = vld [vmem:[%s3 + $0x2c] sm:$0xf]
      %v283 = vld [vmem:[%s3 + $0x30] sm:$0xf]
      %v284 = vld [vmem:[%s3 + $0x34] sm:$0xf]
      %v285 = vld [vmem:[%s3 + $0x38] sm:$0xf]
      %v286 = vld [vmem:[%s3 + $0x3c] sm:$0xf]
      %v287 = vld [vmem:[#allocation2 + $0x8] sm:$0xf]
      %s288 = scalar_lea.vmem %s3, 64
      %v289 = vld [vmem:[%s288] sm:$0xf]
      %v290 = vld [vmem:[%s288 + $0x4] sm:$0xf]
      %v291 = vld [vmem:[%s288 + $0x8] sm:$0xf]
      %v292 = vld [vmem:[%s288 + $0xc] sm:$0xf]
      %v293 = vld [vmem:[%s288 + $0x10] sm:$0xf]
      %v294 = vld [vmem:[%s288 + $0x14] sm:$0xf]
      %v295 = vld [vmem:[%s288 + $0x18] sm:$0xf]
      %v296 = vld [vmem:[%s288 + $0x1c] sm:$0xf]
      %v297 = vld [vmem:[%s288 + $0x20] sm:$0xf]
      %v298 = vld [vmem:[%s288 + $0x24] sm:$0xf]
      %v299 = vld [vmem:[%s288 + $0x28] sm:$0xf]
      %v300 = vld [vmem:[%s288 + $0x2c] sm:$0xf]
      %v301 = vld [vmem:[%s288 + $0x30] sm:$0xf]
      %v302 = vld [vmem:[%s288 + $0x34] sm:$0xf]
      %v303 = vld [vmem:[%s288 + $0x38] sm:$0xf]
      %v304 = vld [vmem:[%s288 + $0x3c] sm:$0xf]
      %vm305 = vsmask.f32 4352
      %v307 = vshrl.u32 %v269, 16
      %v309 = vrot.slane %v307, 3
      %v310 = vshll.u32 %v269, 16
      %v312 = vrot.slane %v310, 4
      %v313 = vor.u32 %v309, %v312
      %v315 = vshrl.u32 %v287, 16
      %v317 = vrot.slane %v315, 3
      %v318 = vshll.u32 %v287, 16
      %v320 = vrot.slane %v318, 4
      %v321 = vor.u32 %v317, %v320
      %v322 = vsel %vm305, %v313, %v321
      %v340 = vunpack.c.l.b16 %v289
      %v341 = vunpack.c.l.b16 %v290
      %v342 = vunpack.c.l.b16 %v291
      %v343 = vunpack.c.l.b16 %v292
      %v344 = vunpack.c.l.b16 %v293
      %v345 = vunpack.c.l.b16 %v294
      %v346 = vunpack.c.l.b16 %v295
      %v347 = vunpack.c.l.b16 %v296
      %v348 = vunpack.c.l.b16 %v297
      %v349 = vunpack.c.l.b16 %v298
      %v350 = vunpack.c.l.b16 %v299
      %v351 = vunpack.c.l.b16 %v300
      %v352 = vunpack.c.l.b16 %v301
      %v353 = vunpack.c.l.b16 %v302
      %v354 = vunpack.c.l.b16 %v303
      %v355 = vunpack.c.l.b16 %v304
      %v356 = vpack.c.b16 %v341, %v340
      %v357 = vpack.c.b16 %v343, %v342
      %v358 = vpack.c.b16 %v345, %v344
      %v359 = vpack.c.b16 %v347, %v346
      %v360 = vpack.c.b16 %v349, %v348
      %v361 = vpack.c.b16 %v351, %v350
      %v362 = vpack.c.b16 %v353, %v352
      %v363 = vpack.c.b16 %v355, %v354
      %372 = vmatprep.subr.bf16.mxu0 0
      %373 = vmatpush1.bf16.msra.mxu0 %v356
      %374 = vmatprep.subr.bf16.mxu0 0
      %375 = vmatpush1.bf16.msra.mxu0 %v357
      %376 = vmatprep.subr.bf16.mxu0 0
      %377 = vmatpush1.bf16.msra.mxu0 %v358
      %378 = vmatprep.subr.bf16.mxu0 0
      %379 = vmatpush1.bf16.msra.mxu0 %v359
      %380 = vmatprep.subr.bf16.mxu0 0
      %381 = vmatpush1.bf16.msra.mxu0 %v360
      %382 = vmatprep.subr.bf16.mxu0 0
      %383 = vmatpush1.bf16.msra.mxu0 %v361
      %384 = vmatprep.subr.bf16.mxu0 0
      %385 = vmatpush1.bf16.msra.mxu0 %v362
      %386 = vmatprep.subr.bf16.mxu0 0
      %387 = vmatpush1.bf16.msra.mxu0 %v363
      %388 = vmatprep.subr.bf16.mxu0 0
      %389 = vmatpush1.bf16.msra.mxu0 0
      %390 = vmatprep.subr.bf16.mxu0 0
      %391 = vmatpush1.bf16.msra.mxu0 0
      %392 = vmatprep.subr.bf16.mxu0 0
      %393 = vmatpush1.bf16.msra.mxu0 0
      %394 = vmatprep.subr.bf16.mxu0 0
      %395 = vmatpush1.bf16.msra.mxu0 0
      %396 = vmatprep.subr.bf16.mxu0 0
      %397 = vmatpush1.bf16.msra.mxu0 0
      %398 = vmatprep.subr.bf16.mxu0 0
      %399 = vmatpush1.bf16.msra.mxu0 0
      %400 = vmatprep.subr.bf16.mxu0 0
      %401 = vmatpush1.bf16.msra.mxu0 0
      %402 = vmatprep.subr.bf16.mxu0 0
      %403 = vmatpush1.bf16.msra.mxu0 0
      %404 = vmatprep.mubr.bf16.mxu0 0
      %405 = vmatmul.mubr.bf16.gmra.mrb[0].mxu0 %v322
      %v406 = vpop.f32.mrb[0].mxu0
      %v407 = vadd.f32 0.0, %v406
      %v408 = vpop.f32.mrb[0].mxu0
      %v409 = vpop.f32.mrb[0].mxu0
      %v410 = vadd.f32 0.0, %v409
      %v411 = vpop.f32.mrb[0].mxu0
      %412 = vdwg.mxu0
      %vm415 = vcmask 1044480
      %v416 = vrot.slane %v269, 3
      %v417 = vrot.slane %v270, 3
      %v418 = vsel %vm415, %v416, %v417
      %v436 = vunpack.c.l.b16 %v271
      %v437 = vunpack.c.l.b16 %v272
      %v438 = vunpack.c.l.b16 %v273
      %v439 = vunpack.c.l.b16 %v274
      %v440 = vunpack.c.l.b16 %v275
      %v441 = vunpack.c.l.b16 %v276
      %v442 = vunpack.c.l.b16 %v277
      %v443 = vunpack.c.l.b16 %v278
      %v444 = vunpack.c.l.b16 %v279
      %v445 = vunpack.c.l.b16 %v280
      %v446 = vunpack.c.l.b16 %v281
      %v447 = vunpack.c.l.b16 %v282
      %v448 = vunpack.c.l.b16 %v283
      %v449 = vunpack.c.l.b16 %v284
      %v450 = vunpack.c.l.b16 %v285
      %v451 = vunpack.c.l.b16 %v286
      %v452 = vpack.c.b16 %v437, %v436
      %v453 = vpack.c.b16 %v439, %v438
      %v454 = vpack.c.b16 %v441, %v440
      %v455 = vpack.c.b16 %v443, %v442
      %v456 = vpack.c.b16 %v445, %v444
      %v457 = vpack.c.b16 %v447, %v446
      %v458 = vpack.c.b16 %v449, %v448
      %v459 = vpack.c.b16 %v451, %v450
      %468 = vmatprep.subr.bf16.mxu0 0
      %469 = vmatpush1.bf16.msra.mxu0 %v452
      %470 = vmatprep.subr.bf16.mxu0 0
      %471 = vmatpush1.bf16.msra.mxu0 %v453
      %472 = vmatprep.subr.bf16.mxu0 0
      %473 = vmatpush1.bf16.msra.mxu0 %v454
      %474 = vmatprep.subr.bf16.mxu0 0
      %475 = vmatpush1.bf16.msra.mxu0 %v455
      %476 = vmatprep.subr.bf16.mxu0 0
      %477 = vmatpush1.bf16.msra.mxu0 %v456
      %478 = vmatprep.subr.bf16.mxu0 0
      %479 = vmatpush1.bf16.msra.mxu0 %v457
      %480 = vmatprep.subr.bf16.mxu0 0
      %481 = vmatpush1.bf16.msra.mxu0 %v458
      %482 = vmatprep.subr.bf16.mxu0 0
      %483 = vmatpush1.bf16.msra.mxu0 %v459
      %484 = vmatprep.subr.bf16.mxu0 0
      %485 = vmatpush1.bf16.msra.mxu0 0
      %486 = vmatprep.subr.bf16.mxu0 0
      %487 = vmatpush1.bf16.msra.mxu0 0
      %488 = vmatprep.subr.bf16.mxu0 0
      %489 = vmatpush1.bf16.msra.mxu0 0
      %490 = vmatprep.subr.bf16.mxu0 0
      %491 = vmatpush1.bf16.msra.mxu0 0
      %492 = vmatprep.subr.bf16.mxu0 0
      %493 = vmatpush1.bf16.msra.mxu0 0
      %494 = vmatprep.subr.bf16.mxu0 0
      %495 = vmatpush1.bf16.msra.mxu0 0
      %496 = vmatprep.subr.bf16.mxu0 0
      %497 = vmatpush1.bf16.msra.mxu0 0
      %498 = vmatprep.subr.bf16.mxu0 0
      %499 = vmatpush1.bf16.msra.mxu0 0
      %500 = vmatprep.mubr.bf16.mxu0 0
      %501 = vmatmul.mubr.bf16.gmra.mrb[0].mxu0 %v418
      %v502 = vpop.f32.mrb[0].mxu0
      %v503 = vadd.f32 %v407, %v502
      %v504 = vpop.f32.mrb[0].mxu0
      %v505 = vpop.f32.mrb[0].mxu0
      %v506 = vadd.f32 %v410, %v505
      %v507 = vpop.f32.mrb[0].mxu0
      %508 = vdwg.mxu0
      %v509 = vld [vmem:[#allocation2] sm:$0xf0]
      %s510 = scalar_lea.vmem %s3, 128
      %v511 = vld [vmem:[%s510] sm:$0xf]
      %v512 = vld [vmem:[%s510 + $0x4] sm:$0xf]
      %v513 = vld [vmem:[%s510 + $0x8] sm:$0xf]
      %v514 = vld [vmem:[%s510 + $0xc] sm:$0xf]
      %v515 = vld [vmem:[%s510 + $0x10] sm:$0xf]
      %v516 = vld [vmem:[%s510 + $0x14] sm:$0xf]
      %v517 = vld [vmem:[%s510 + $0x18] sm:$0xf]
      %v518 = vld [vmem:[%s510 + $0x1c] sm:$0xf]
      %v519 = vld [vmem:[%s510 + $0x20] sm:$0xf]
      %v520 = vld [vmem:[%s510 + $0x24] sm:$0xf]
      %v521 = vld [vmem:[%s510 + $0x28] sm:$0xf]
      %v522 = vld [vmem:[%s510 + $0x2c] sm:$0xf]
      %v523 = vld [vmem:[%s510 + $0x30] sm:$0xf]
      %v524 = vld [vmem:[%s510 + $0x34] sm:$0xf]
      %v525 = vld [vmem:[%s510 + $0x38] sm:$0xf]
      %v526 = vld [vmem:[%s510 + $0x3c] sm:$0xf]
      %vm529 = vcmask 1043456
      %v530 = vrot.slane %v509, 4
      %v531 = vrot.slane %v287, 4
      %v532 = vsel %vm529, %v530, %v531
      %v550 = vunpack.c.l.b16 %v511
      %v551 = vunpack.c.l.b16 %v512
      %v552 = vunpack.c.l.b16 %v513
      %v553 = vunpack.c.l.b16 %v514
      %v554 = vunpack.c.l.b16 %v515
      %v555 = vunpack.c.l.b16 %v516
      %v556 = vunpack.c.l.b16 %v517
      %v557 = vunpack.c.l.b16 %v518
      %v558 = vunpack.c.l.b16 %v519
      %v559 = vunpack.c.l.b16 %v520
      %v560 = vunpack.c.l.b16 %v521
      %v561 = vunpack.c.l.b16 %v522
      %v562 = vunpack.c.l.b16 %v523
      %v563 = vunpack.c.l.b16 %v524
      %v564 = vunpack.c.l.b16 %v525
      %v565 = vunpack.c.l.b16 %v526
      %v566 = vpack.c.b16 %v551, %v550
      %v567 = vpack.c.b16 %v553, %v552
      %v568 = vpack.c.b16 %v555, %v554
      %v569 = vpack.c.b16 %v557, %v556
      %v570 = vpack.c.b16 %v559, %v558
      %v571 = vpack.c.b16 %v561, %v560
      %v572 = vpack.c.b16 %v563, %v562
      %v573 = vpack.c.b16 %v565, %v564
      %582 = vmatprep.subr.bf16.mxu0 0
      %583 = vmatpush1.bf16.msra.mxu0 %v566
      %584 = vmatprep.subr.bf16.mxu0 0
      %585 = vmatpush1.bf16.msra.mxu0 %v567
      %586 = vmatprep.subr.bf16.mxu0 0
      %587 = vmatpush1.bf16.msra.mxu0 %v568
      %588 = vmatprep.subr.bf16.mxu0 0
      %589 = vmatpush1.bf16.msra.mxu0 %v569
      %590 = vmatprep.subr.bf16.mxu0 0
      %591 = vmatpush1.bf16.msra.mxu0 %v570
      %592 = vmatprep.subr.bf16.mxu0 0
      %593 = vmatpush1.bf16.msra.mxu0 %v571
      %594 = vmatprep.subr.bf16.mxu0 0
      %595 = vmatpush1.bf16.msra.mxu0 %v572
      %596 = vmatprep.subr.bf16.mxu0 0
      %597 = vmatpush1.bf16.msra.mxu0 %v573
      %598 = vmatprep.subr.bf16.mxu0 0
      %599 = vmatpush1.bf16.msra.mxu0 0
      %600 = vmatprep.subr.bf16.mxu0 0
      %601 = vmatpush1.bf16.msra.mxu0 0
      %602 = vmatprep.subr.bf16.mxu0 0
      %603 = vmatpush1.bf16.msra.mxu0 0
      %604 = vmatprep.subr.bf16.mxu0 0
      %605 = vmatpush1.bf16.msra.mxu0 0
      %606 = vmatprep.subr.bf16.mxu0 0
      %607 = vmatpush1.bf16.msra.mxu0 0
      %608 = vmatprep.subr.bf16.mxu0 0
      %609 = vmatpush1.bf16.msra.mxu0 0
      %610 = vmatprep.subr.bf16.mxu0 0
      %611 = vmatpush1.bf16.msra.mxu0 0
      %612 = vmatprep.subr.bf16.mxu0 0
      %613 = vmatpush1.bf16.msra.mxu0 0
      %614 = vmatprep.mubr.bf16.mxu0 0
      %615 = vmatmul.mubr.bf16.gmra.mrb[0].mxu0 %v532
      %v616 = vpop.f32.mrb[0].mxu0
      %v617 = vadd.f32 0.0, %v616
      %v618 = vpop.f32.mrb[0].mxu0
      %v619 = vpop.f32.mrb[0].mxu0
      %v620 = vadd.f32 0.0, %v619
      %v621 = vpop.f32.mrb[0].mxu0
      %622 = vdwg.mxu0
      %v623 = vadd.f32 %v503, %v617
      %v624 = vadd.f32 %v506, %v620
      %v625 = vld [vmem:[#allocation2 + $0x8] sm:$0x1f]
      %s626 = scalar_lea.vmem %s3, 192
      %v627 = vld [vmem:[%s626] sm:$0xf]
      %v628 = vld [vmem:[%s626 + $0x4] sm:$0xf]
      %v629 = vld [vmem:[%s626 + $0x8] sm:$0xf]
      %v630 = vld [vmem:[%s626 + $0xc] sm:$0xf]
      %v631 = vld [vmem:[%s626 + $0x10] sm:$0xf]
      %v632 = vld [vmem:[%s626 + $0x14] sm:$0xf]
      %v633 = vld [vmem:[%s626 + $0x18] sm:$0xf]
      %v634 = vld [vmem:[%s626 + $0x1c] sm:$0xf]
      %v635 = vld [vmem:[%s626 + $0x20] sm:$0xf]
      %v636 = vld [vmem:[%s626 + $0x24] sm:$0xf]
      %v637 = vld [vmem:[%s626 + $0x28] sm:$0xf]
      %v638 = vld [vmem:[%s626 + $0x2c] sm:$0xf]
      %v639 = vld [vmem:[%s626 + $0x30] sm:$0xf]
      %v640 = vld [vmem:[%s626 + $0x34] sm:$0xf]
      %v641 = vld [vmem:[%s626 + $0x38] sm:$0xf]
      %v642 = vld [vmem:[%s626 + $0x3c] sm:$0xf]
      %vm643 = vsmask.f32 3328
      %v645 = vshrl.u32 %v509, 16
      %v647 = vrot.slane %v645, 4
      %v648 = vshll.u32 %v509, 16
      %v650 = vrot.slane %v648, 5
      %v651 = vor.u32 %v647, %v650
      %v653 = vshrl.u32 %v625, 16
      %v655 = vrot.slane %v653, 4
      %v656 = vshll.u32 %v625, 16
      %v658 = vrot.slane %v656, 5
      %v659 = vor.u32 %v655, %v658
      %v660 = vsel %vm643, %v651, %v659
      %v678 = vunpack.c.l.b16 %v627
      %v679 = vunpack.c.l.b16 %v628
      %v680 = vunpack.c.l.b16 %v629
      %v681 = vunpack.c.l.b16 %v630
      %v682 = vunpack.c.l.b16 %v631
      %v683 = vunpack.c.l.b16 %v632
      %v684 = vunpack.c.l.b16 %v633
      %v685 = vunpack.c.l.b16 %v634
      %v686 = vunpack.c.l.b16 %v635
      %v687 = vunpack.c.l.b16 %v636
      %v688 = vunpack.c.l.b16 %v637
      %v689 = vunpack.c.l.b16 %v638
      %v690 = vunpack.c.l.b16 %v639
      %v691 = vunpack.c.l.b16 %v640
      %v692 = vunpack.c.l.b16 %v641
      %v693 = vunpack.c.l.b16 %v642
      %v694 = vpack.c.b16 %v679, %v678
      %v695 = vpack.c.b16 %v681, %v680
      %v696 = vpack.c.b16 %v683, %v682
      %v697 = vpack.c.b16 %v685, %v684
      %v698 = vpack.c.b16 %v687, %v686
      %v699 = vpack.c.b16 %v689, %v688
      %v700 = vpack.c.b16 %v691, %v690
      %v701 = vpack.c.b16 %v693, %v692
      %710 = vmatprep.subr.bf16.mxu0 0
      %711 = vmatpush1.bf16.msra.mxu0 %v694
      %712 = vmatprep.subr.bf16.mxu0 0
      %713 = vmatpush1.bf16.msra.mxu0 %v695
      %714 = vmatprep.subr.bf16.mxu0 0
      %715 = vmatpush1.bf16.msra.mxu0 %v696
      %716 = vmatprep.subr.bf16.mxu0 0
      %717 = vmatpush1.bf16.msra.mxu0 %v697
      %718 = vmatprep.subr.bf16.mxu0 0
      %719 = vmatpush1.bf16.msra.mxu0 %v698
      %720 = vmatprep.subr.bf16.mxu0 0
      %721 = vmatpush1.bf16.msra.mxu0 %v699
      %722 = vmatprep.subr.bf16.mxu0 0
      %723 = vmatpush1.bf16.msra.mxu0 %v700
      %724 = vmatprep.subr.bf16.mxu0 0
      %725 = vmatpush1.bf16.msra.mxu0 %v701
      %726 = vmatprep.subr.bf16.mxu0 0
      %727 = vmatpush1.bf16.msra.mxu0 0
      %728 = vmatprep.subr.bf16.mxu0 0
      %729 = vmatpush1.bf16.msra.mxu0 0
      %730 = vmatprep.subr.bf16.mxu0 0
      %731 = vmatpush1.bf16.msra.mxu0 0
      %732 = vmatprep.subr.bf16.mxu0 0
      %733 = vmatpush1.bf16.msra.mxu0 0
      %734 = vmatprep.subr.bf16.mxu0 0
      %735 = vmatpush1.bf16.msra.mxu0 0
      %736 = vmatprep.subr.bf16.mxu0 0
      %737 = vmatpush1.bf16.msra.mxu0 0
      %738 = vmatprep.subr.bf16.mxu0 0
      %739 = vmatpush1.bf16.msra.mxu0 0
      %740 = vmatprep.subr.bf16.mxu0 0
      %741 = vmatpush1.bf16.msra.mxu0 0
      %742 = vmatprep.mubr.bf16.mxu0 0
      %743 = vmatmul.mubr.bf16.gmra.mrb[0].mxu0 %v660
      %v744 = vpop.f32.mrb[0].mxu0
      %v745 = vadd.f32 0.0, %v744
      %v746 = vpop.f32.mrb[0].mxu0
      %v747 = vpop.f32.mrb[0].mxu0
      %v748 = vadd.f32 0.0, %v747
      %v749 = vpop.f32.mrb[0].mxu0
      %750 = vdwg.mxu0
      %v751 = vadd.f32 %v623, %v745
      %v752 = vadd.f32 %v624, %v748
      %v753 = vld [vmem:[#allocation2] sm:$0xe0]
      %s754 = scalar_lea.vmem %s3, 256
      %v755 = vld [vmem:[%s754] sm:$0xf]
      %v756 = vld [vmem:[%s754 + $0x4] sm:$0xf]
      %v757 = vld [vmem:[%s754 + $0x8] sm:$0xf]
      %v758 = vld [vmem:[%s754 + $0xc] sm:$0xf]
      %v759 = vld [vmem:[%s754 + $0x10] sm:$0xf]
      %v760 = vld [vmem:[%s754 + $0x14] sm:$0xf]
      %v761 = vld [vmem:[%s754 + $0x18] sm:$0xf]
      %v762 = vld [vmem:[%s754 + $0x1c] sm:$0xf]
      %v763 = vld [vmem:[%s754 + $0x20] sm:$0xf]
      %v764 = vld [vmem:[%s754 + $0x24] sm:$0xf]
      %v765 = vld [vmem:[%s754 + $0x28] sm:$0xf]
      %v766 = vld [vmem:[%s754 + $0x2c] sm:$0xf]
      %v767 = vld [vmem:[%s754 + $0x30] sm:$0xf]
      %v768 = vld [vmem:[%s754 + $0x34] sm:$0xf]
      %v769 = vld [vmem:[%s754 + $0x38] sm:$0xf]
      %v770 = vld [vmem:[%s754 + $0x3c] sm:$0xf]
      %vm773 = vcmask 1042432
      %v774 = vrot.slane %v753, 5
      %v775 = vrot.slane %v625, 5
      %v776 = vsel %vm773, %v774, %v775
      %v794 = vunpack.c.l.b16 %v755
      %v795 = vunpack.c.l.b16 %v756
      %v796 = vunpack.c.l.b16 %v757
      %v797 = vunpack.c.l.b16 %v758
      %v798 = vunpack.c.l.b16 %v759
      %v799 = vunpack.c.l.b16 %v760
      %v800 = vunpack.c.l.b16 %v761
      %v801 = vunpack.c.l.b16 %v762
      %v802 = vunpack.c.l.b16 %v763
      %v803 = vunpack.c.l.b16 %v764
      %v804 = vunpack.c.l.b16 %v765
      %v805 = vunpack.c.l.b16 %v766
      %v806 = vunpack.c.l.b16 %v767
      %v807 = vunpack.c.l.b16 %v768
      %v808 = vunpack.c.l.b16 %v769
      %v809 = vunpack.c.l.b16 %v770
      %v810 = vpack.c.b16 %v795, %v794
      %v811 = vpack.c.b16 %v797, %v796
      %v812 = vpack.c.b16 %v799, %v798
      %v813 = vpack.c.b16 %v801, %v800
      %v814 = vpack.c.b16 %v803, %v802
      %v815 = vpack.c.b16 %v805, %v804
      %v816 = vpack.c.b16 %v807, %v806
      %v817 = vpack.c.b16 %v809, %v808
      %826 = vmatprep.subr.bf16.mxu0 0
      %827 = vmatpush1.bf16.msra.mxu0 %v810
      %828 = vmatprep.subr.bf16.mxu0 0
      %829 = vmatpush1.bf16.msra.mxu0 %v811
      %830 = vmatprep.subr.bf16.mxu0 0
      %831 = vmatpush1.bf16.msra.mxu0 %v812
      %832 = vmatprep.subr.bf16.mxu0 0
      %833 = vmatpush1.bf16.msra.mxu0 %v813
      %834 = vmatprep.subr.bf16.mxu0 0
      %835 = vmatpush1.bf16.msra.mxu0 %v814
      %836 = vmatprep.subr.bf16.mxu0 0
      %837 = vmatpush1.bf16.msra.mxu0 %v815
      %838 = vmatprep.subr.bf16.mxu0 0
      %839 = vmatpush1.bf16.msra.mxu0 %v816
      %840 = vmatprep.subr.bf16.mxu0 0
      %841 = vmatpush1.bf16.msra.mxu0 %v817
      %842 = vmatprep.subr.bf16.mxu0 0
      %843 = vmatpush1.bf16.msra.mxu0 0
      %844 = vmatprep.subr.bf16.mxu0 0
      %845 = vmatpush1.bf16.msra.mxu0 0
      %846 = vmatprep.subr.bf16.mxu0 0
      %847 = vmatpush1.bf16.msra.mxu0 0
      %848 = vmatprep.subr.bf16.mxu0 0
      %849 = vmatpush1.bf16.msra.mxu0 0
      %850 = vmatprep.subr.bf16.mxu0 0
      %851 = vmatpush1.bf16.msra.mxu0 0
      %852 = vmatprep.subr.bf16.mxu0 0
      %853 = vmatpush1.bf16.msra.mxu0 0
      %854 = vmatprep.subr.bf16.mxu0 0
      %855 = vmatpush1.bf16.msra.mxu0 0
      %856 = vmatprep.subr.bf16.mxu0 0
      %857 = vmatpush1.bf16.msra.mxu0 0
      %858 = vmatprep.mubr.bf16.mxu0 0
      %859 = vmatmul.mubr.bf16.gmra.mrb[0].mxu0 %v776
      %v860 = vpop.f32.mrb[0].mxu0
      %v861 = vadd.f32 0.0, %v860
      %v862 = vpop.f32.mrb[0].mxu0
      %v863 = vpop.f32.mrb[0].mxu0
      %v864 = vadd.f32 0.0, %v863
      %v865 = vpop.f32.mrb[0].mxu0
      %866 = vdwg.mxu0
      %v867 = vadd.f32 %v751, %v861
      %v868 = vadd.f32 %v752, %v864
      %v869 = vpack.c.bf16 %v868, %v867
      %v871 = vunpack.c.l.b16 %v869
      %v872 = vunpack.c.h.b16 %v869
      %v873 = vpack.c.b16 %v871, %v871
      %v874 = vpack.c.b16 %v872, %v872
      %877 = vst [vmem:[%s231] sm:$0xf] %v873
      %878 = vst [vmem:[%s231 + $0x4] sm:$0xf] %v874
      %v879 = vadd.f32 %v867, %v868
      %v880 = vrot.slane %v879, 4
      %v881 = vadd.f32 %v879, %v880
      %v882 = vrot.slane %v881, 2
      %v883 = vadd.f32 %v881, %v882
      %v884 = vrot.slane %v883, 1
      %v885 = vadd.f32 %v883, %v884
      %v886 = vmul.f32 %v867, %v867
      %v887 = vmul.f32 %v868, %v868
      %v888 = vadd.f32 %v886, %v887
      %v889 = vrot.slane %v888, 4
      %v890 = vadd.f32 %v888, %v889
      %v891 = vrot.slane %v890, 2
      %v892 = vadd.f32 %v890, %v891
      %v893 = vrot.slane %v892, 1
      %v894 = vadd.f32 %v892, %v893
      %vm895 = vcmask 1040384
      %v896 = vsel %vm895, %v885, %v894
      %897 = vst [vmem:[%s235] sm:$0x3] %v896
      %p898 = scmp.lt.s32.totalorder %s17, 1
      %s899 = scalar_select %p898, %s17, 1
      %s900 = smul.addr %s899, 2
      %s901 = smul.addr %s900, 4
      %s902 = scalar_lea.vmem %s4, %s901
      %p903 = scmp.lt.s32.totalorder %s17, 1
      %s904 = scalar_select %p903, %s17, 1
      %s905 = smul.addr %s904, 2
      %s906 = scalar_lea.vmem %s5, %s905
      // Predicated region
      $region37: #{resnet_block_forward.5} parent=35 // pred_check
        %p907 = pneg %p124
      $region38: #{resnet_block_forward.5} parent=35 // pred_check_branch
        %909 = sbr.rel (%p907) target = $region40
      $region39: #{resnet_block_forward.5} parent=35 // pred_region
        _
      $region40: #{resnet_block_forward.5} parent=35 // pred_fallthru
        _
      // Predicated region
      $region41: #{resnet_block_forward.5} parent=35 // pred_check
        %p910 = pneg %p150
      $region42: #{resnet_block_forward.5} parent=35 // pred_check_branch
        %912 = sbr.rel (%p910) target = $region44
      $region43: #{resnet_block_forward.5} parent=35 // pred_region
        _
      $region44: #{resnet_block_forward.5} parent=35 // pred_fallthru
        _
    $region36: #{resnet_block_forward.5} parent=5 // pred_fallthru
      _
    %p913 = scmp.le.s32.totalorder 2, %s12
    // Predicated region
    $region45: #{resnet_block_forward.5} parent=5 // pred_check
      %p914 = pneg %p913
    $region46: #{resnet_block_forward.5} parent=5 // pred_check_branch
      %916 = sbr.rel (%p914) target = $region48
    $region47: #{resnet_block_forward.5} parent=5 // pred_region
      %s917 = ssub.s32 %s12, 2
      // Predicated region
      $region49: #{resnet_block_forward.5} parent=47 // pred_check
        %p918 = pneg %p130
      $region50: #{resnet_block_forward.5} parent=47 // pred_check_branch
        %920 = sbr.rel (%p918) target = $region52
      $region51: #{resnet_block_forward.5} parent=47 // pred_region
        %p921 = scmp.lt.s32.totalorder %s18, 1
        %s922 = scalar_select %p921, %s18, 1
        %s923 = smul.addr %s922, 2
        %s924 = smul.addr %s923, 4
        %s925 = scalar_lea.vmem %s4, %s924
      $region52: #{resnet_block_forward.5} parent=47 // pred_fallthru
        _
      // Predicated region
      $region53: #{resnet_block_forward.5} parent=47 // pred_check
        %p926 = pneg %p156
      $region54: #{resnet_block_forward.5} parent=47 // pred_check_branch
        %928 = sbr.rel (%p926) target = $region56
      $region55: #{resnet_block_forward.5} parent=47 // pred_region
        %p929 = scmp.lt.s32.totalorder %s18, 1
        %s930 = scalar_select %p929, %s18, 1
        %s931 = smul.addr %s930, 2
        %s932 = scalar_lea.vmem %s5, %s931
      $region56: #{resnet_block_forward.5} parent=47 // pred_fallthru
        _
    $region48: #{resnet_block_forward.5} parent=5 // pred_fallthru
      _
  $region6: #{resnet_block_forward.5} parent=0 // loop_footer
    %s16 = sadd.s32 1, %s12
  $region7: #{resnet_block_forward.5} parent=0 // loop_footer_branch
    %11 = sbr.rel target = $region3
  $region8: #{resnet_block_forward.5} parent=0 // loop_exit
    _

// kernel: resnet_block_forward.4
$region0: #{resnet_block_forward.4}
  #allocation0 [shape = 'u32[]', space=smem, size = 0x4, offset = 0x4, fixed_abs, tag = 'smem constant byte address 0x4 - core index']
  #allocation1 [shape = 'u32[144,128]{1,0:T(1,128)}', space=vmem, size = 0x12000, scoped, tag = 'internal scratch']
  #allocation2 [shape = 'bf16[32,128]{1,0:T(16,128)(2,1)}', space=vmem, size = 0x2000, scoped, tag = 'scratch operand']
  %s0 = inlined_call_operand.vmem [shape: bf16[2,16,128], index: 0, kind: input, shape index: {}]
  %s1 = inlined_call_operand.vmem [shape: bf16[7,128,128], index: 1, kind: input, shape index: {}]
  %s2 = inlined_call_operand.vmem [shape: bf16[1,128,128], index: 2, kind: input, shape index: {}]
  %s3 = inlined_call_operand.vmem [shape: bf16[2,16,128], index: 3, kind: output, shape index: {0}]
  %s4 = inlined_call_operand.vmem [shape: bf16[2,16,128], index: 4, kind: output, shape index: {1}]
  %s5 = inlined_call_operand.vmem [shape: f32[2,2,128], index: 5, kind: output, shape index: {2}]
  %s6 = inlined_call_operand.vmem [shape: f32[2,2,128], index: 6, kind: output, shape index: {3}]
  %7 = xla_tuple %s3, %s4, %s5, %s6
  %s8 = sld [smem:[#allocation0]]
  $region69: #{resnet_block_forward.4} parent=0
    _
  %s10 = ssub.s32 1, %s8
  %s11 = scalar_select 0, %s10, %s8
  loop: start=0, step=1, limit=4
  $region2: #{resnet_block_forward.4} parent=0 // loop_pre_header
    _
  $region3: #{resnet_block_forward.4} parent=0 // loop_header
    %s13 = sphi 0, %s17
    %p14 = scmp.ge.s32.totalorder %s13, 4
    %s23 = sphi 0, %s25
    %s26 = sphi 0, %s23
    %s27 = sphi 0, %s26
    %s43 = sphi 0, %s27
    %s47 = sphi 0, %s47
    %s49 = sphi 0, %s47
    %s50 = sphi 0, %s49
    %s64 = sphi 0, %s50
    %s68 = sphi 0, %s68
    %s70 = sphi 0, %s68
    %s71 = sphi 0, %s70
    %s85 = sphi 0, %s71
    %s91 = sphi 0, %s93
    %s94 = sphi 0, %s91
    %s95 = sphi 0, %s94
    %s111 = sphi 0, %s95
    %s117 = sphi 0, %s119
    %s120 = sphi 0, %s117
    %s121 = sphi 0, %s120
    %s137 = sphi 0, %s121
    %s143 = sphi 0, %s145
    %s146 = sphi 0, %s143
    %s147 = sphi 0, %s146
    %s163 = sphi 0, %s147
    %s169 = sphi 0, %s171
    %s172 = sphi 0, %s169
    %s173 = sphi 0, %s172
    %s189 = sphi 0, %s173
  $region4: #{resnet_block_forward.4} parent=0 // loop_header_branch
    %16 = sbr.rel (%p14) target = $region8
  $region5: #{resnet_block_forward.4} parent=0 // loop_body
    %s18 = ssub.s32 %s13, 1
    %s19 = ssub.s32 %s13, 2
    %s20 = sadd.s32 %s13, 1
    %s21 = ssub.s32 %s13, %s20
    %p22 = scmp.eq.s32.totalorder %s21, 0
    %s24 = sadd.s32 %s23, 1
    %s25 = scalar_select %p22, %s23, %s24
    %p28 = pneg %p22
    %p29 = scmp.eq.s32.totalorder %s13, 1
    %p30 = por %p28, %p29
    %p31 = scmp.ne.s32.totalorder %s23, %s26
    %p32 = scmp.eq.s32.totalorder %s13, 0
    %p33 = por %p31, %p32
    %p34 = scmp.ne.s32.totalorder %s23, %s26
    %p35 = scmp.eq.s32.totalorder %s18, 1
    %p36 = por %p34, %p35
    %p37 = scmp.ne.s32.totalorder %s26, %s27
    %p38 = scmp.eq.s32.totalorder %s18, 0
    %p39 = por %p37, %p38
    %p40 = scmp.ne.s32.totalorder %s26, %s27
    %p41 = scmp.eq.s32.totalorder %s19, 1
    %p42 = por %p40, %p41
    %p44 = scmp.ne.s32.totalorder %s27, %s43
    %p45 = scmp.eq.s32.totalorder %s19, 0
    %p46 = por %p44, %p45
    %s48 = sadd.s32 %s47, 1
    %p51 = scmp.eq.s32.totalorder %s13, 1
    %p52 = scmp.ne.s32.totalorder %s47, %s49
    %p53 = scmp.eq.s32.totalorder %s13, 0
    %p54 = por %p52, %p53
    %p55 = scmp.ne.s32.totalorder %s47, %s49
    %p56 = scmp.eq.s32.totalorder %s18, 1
    %p57 = por %p55, %p56
    %p58 = scmp.ne.s32.totalorder %s49, %s50
    %p59 = scmp.eq.s32.totalorder %s18, 0
    %p60 = por %p58, %p59
    %p61 = scmp.ne.s32.totalorder %s49, %s50
    %p62 = scmp.eq.s32.totalorder %s19, 1
    %p63 = por %p61, %p62
    %p65 = scmp.ne.s32.totalorder %s50, %s64
    %p66 = scmp.eq.s32.totalorder %s19, 0
    %p67 = por %p65, %p66
    %s69 = sadd.s32 %s68, 1
    %p72 = scmp.eq.s32.totalorder %s13, 1
    %p73 = scmp.ne.s32.totalorder %s68, %s70
    %p74 = scmp.eq.s32.totalorder %s13, 0
    %p75 = por %p73, %p74
    %p76 = scmp.ne.s32.totalorder %s68, %s70
    %p77 = scmp.eq.s32.totalorder %s18, 1
    %p78 = por %p76, %p77
    %p79 = scmp.ne.s32.totalorder %s70, %s71
    %p80 = scmp.eq.s32.totalorder %s18, 0
    %p81 = por %p79, %p80
    %p82 = scmp.ne.s32.totalorder %s70, %s71
    %p83 = scmp.eq.s32.totalorder %s19, 1
    %p84 = por %p82, %p83
    %p86 = scmp.ne.s32.totalorder %s71, %s85
    %p87 = scmp.eq.s32.totalorder %s19, 0
    %p88 = por %p86, %p87
    %s89 = ssub.s32 %s13, %s20
    %p90 = scmp.eq.s32.totalorder %s89, 0
    %s92 = sadd.s32 %s91, 1
    %s93 = scalar_select %p90, %s91, %s92
    %p96 = pneg %p90
    %p97 = scmp.eq.s32.totalorder %s13, 1
    %p98 = por %p96, %p97
    %p99 = scmp.ne.s32.totalorder %s91, %s94
    %p100 = scmp.eq.s32.totalorder %s13, 0
    %p101 = por %p99, %p100
    %p102 = scmp.ne.s32.totalorder %s91, %s94
    %p103 = scmp.eq.s32.totalorder %s18, 1
    %p104 = por %p102, %p103
    %p105 = scmp.ne.s32.totalorder %s94, %s95
    %p106 = scmp.eq.s32.totalorder %s18, 0
    %p107 = por %p105, %p106
    %p108 = scmp.ne.s32.totalorder %s94, %s95
    %p109 = scmp.eq.s32.totalorder %s19, 1
    %p110 = por %p108, %p109
    %p112 = scmp.ne.s32.totalorder %s95, %s111
    %p113 = scmp.eq.s32.totalorder %s19, 0
    %p114 = por %p112, %p113
    %s115 = ssub.s32 %s13, %s20
    %p116 = scmp.eq.s32.totalorder %s115, 0
    %s118 = sadd.s32 %s117, 1
    %s119 = scalar_select %p116, %s117, %s118
    %p122 = pneg %p116
    %p123 = scmp.eq.s32.totalorder %s13, 1
    %p124 = por %p122, %p123
    %p125 = scmp.ne.s32.totalorder %s117, %s120
    %p126 = scmp.eq.s32.totalorder %s13, 0
    %p127 = por %p125, %p126
    %p128 = scmp.ne.s32.totalorder %s117, %s120
    %p129 = scmp.eq.s32.totalorder %s18, 1
    %p130 = por %p128, %p129
    %p131 = scmp.ne.s32.totalorder %s120, %s121
    %p132 = scmp.eq.s32.totalorder %s18, 0
    %p133 = por %p131, %p132
    %p134 = scmp.ne.s32.totalorder %s120, %s121
    %p135 = scmp.eq.s32.totalorder %s19, 1
    %p136 = por %p134, %p135
    %p138 = scmp.ne.s32.totalorder %s121, %s137
    %p139 = scmp.eq.s32.totalorder %s19, 0
    %p140 = por %p138, %p139
    %s141 = ssub.s32 %s13, %s20
    %p142 = scmp.eq.s32.totalorder %s141, 0
    %s144 = sadd.s32 %s143, 1
    %s145 = scalar_select %p142, %s143, %s144
    %p148 = pneg %p142
    %p149 = scmp.eq.s32.totalorder %s13, 1
    %p150 = por %p148, %p149
    %p151 = scmp.ne.s32.totalorder %s143, %s146
    %p152 = scmp.eq.s32.totalorder %s13, 0
    %p153 = por %p151, %p152
    %p154 = scmp.ne.s32.totalorder %s143, %s146
    %p155 = scmp.eq.s32.totalorder %s18, 1
    %p156 = por %p154, %p155
    %p157 = scmp.ne.s32.totalorder %s146, %s147
    %p158 = scmp.eq.s32.totalorder %s18, 0
    %p159 = por %p157, %p158
    %p160 = scmp.ne.s32.totalorder %s146, %s147
    %p161 = scmp.eq.s32.totalorder %s19, 1
    %p162 = por %p160, %p161
    %p164 = scmp.ne.s32.totalorder %s147, %s163
    %p165 = scmp.eq.s32.totalorder %s19, 0
    %p166 = por %p164, %p165
    %s167 = ssub.s32 %s13, %s20
    %p168 = scmp.eq.s32.totalorder %s167, 0
    %s170 = sadd.s32 %s169, 1
    %s171 = scalar_select %p168, %s169, %s170
    %p174 = pneg %p168
    %p175 = scmp.eq.s32.totalorder %s13, 1
    %p176 = por %p174, %p175
    %p177 = scmp.ne.s32.totalorder %s169, %s172
    %p178 = scmp.eq.s32.totalorder %s13, 0
    %p179 = por %p177, %p178
    %p180 = scmp.ne.s32.totalorder %s169, %s172
    %p181 = scmp.eq.s32.totalorder %s18, 1
    %p182 = por %p180, %p181
    %p183 = scmp.ne.s32.totalorder %s172, %s173
    %p184 = scmp.eq.s32.totalorder %s18, 0
    %p185 = por %p183, %p184
    %p186 = scmp.ne.s32.totalorder %s172, %s173
    %p187 = scmp.eq.s32.totalorder %s19, 1
    %p188 = por %p186, %p187
    %p190 = scmp.ne.s32.totalorder %s173, %s189
    %p191 = scmp.eq.s32.totalorder %s19, 0
    %p192 = por %p190, %p191
    %p193 = scmp.le.s32.totalorder 1, %s13
    %p194 = scmp.lt.s32.totalorder %s13, 3
    %p195 = pnand %p193, %p194
    %p196 = pneg %p195
    // Predicated region
    $region9: #{resnet_block_forward.4} parent=5 // pred_check
      _
    $region10: #{resnet_block_forward.4} parent=5 // pred_check_branch
      %198 = sbr.rel (%p195) target = $region12
    $region11: #{resnet_block_forward.4} parent=5 // pred_region
      %s199 = ssub.s32 %s13, 1
      // Predicated region
      $region13: #{resnet_block_forward.4} parent=11 // pred_check
        %p200 = pneg %p60
      $region14: #{resnet_block_forward.4} parent=11 // pred_check_branch
        %202 = sbr.rel (%p200) target = $region16
      $region15: #{resnet_block_forward.4} parent=11 // pred_region
        _
      $region16: #{resnet_block_forward.4} parent=11 // pred_fallthru
        _
      // Predicated region
      $region17: #{resnet_block_forward.4} parent=11 // pred_check
        %p203 = pneg %p81
      $region18: #{resnet_block_forward.4} parent=11 // pred_check_branch
        %205 = sbr.rel (%p203) target = $region20
      $region19: #{resnet_block_forward.4} parent=11 // pred_region
        _
      $region20: #{resnet_block_forward.4} parent=11 // pred_fallthru
        _
    $region12: #{resnet_block_forward.4} parent=5 // pred_fallthru
      _
    %p206 = scmp.lt.s32.totalorder %s13, 2
    // Predicated region
    $region21: #{resnet_block_forward.4} parent=5 // pred_check
      %p207 = pneg %p206
    $region22: #{resnet_block_forward.4} parent=5 // pred_check_branch
      %209 = sbr.rel (%p207) target = $region24
    $region23: #{resnet_block_forward.4} parent=5 // pred_region
      // Predicated region
      $region25: #{resnet_block_forward.4} parent=23 // pred_check
        %p210 = pneg %p33
      $region26: #{resnet_block_forward.4} parent=23 // pred_check_branch
        %212 = sbr.rel (%p210) target = $region28
      $region27: #{resnet_block_forward.4} parent=23 // pred_region
        %p213 = scmp.lt.s32.totalorder %s13, 1
        %s214 = scalar_select %p213, %s13, 1
        %s215 = smul.addr %s214, 2
        %s216 = smul.addr %s215, 4
        %s217 = scalar_lea.vmem %s0, %s216
      $region28: #{resnet_block_forward.4} parent=23 // pred_fallthru
        _
    $region24: #{resnet_block_forward.4} parent=5 // pred_fallthru
      _
    %p218 = scmp.le.s32.totalorder 1, %s13
    %p219 = scmp.lt.s32.totalorder %s13, 3
    %p220 = pnand %p218, %p219
    %p221 = pneg %p220
    // Predicated region
    $region29: #{resnet_block_forward.4} parent=5 // pred_check
      _
    $region30: #{resnet_block_forward.4} parent=5 // pred_check_branch
      %223 = sbr.rel (%p220) target = $region32
    $region31: #{resnet_block_forward.4} parent=5 // pred_region
      %s224 = ssub.s32 %s13, 1
      %p225 = scmp.lt.s32.totalorder %s18, 1
      %s226 = scalar_select %p225, %s18, 1
      %s227 = smul.addr %s226, 2
      %s228 = smul.addr %s227, 4
      %s229 = scalar_lea.vmem %s0, %s228
      %p230 = pneg %p39
      %p231 = pneg %p36
      %p232 = pneg %p60
      %p233 = pneg %p57
      %p234 = pneg %p81
      %p235 = pneg %p78
      %p236 = pneg %p107
      %p237 = pneg %p104
      %p238 = scmp.lt.s32.totalorder %s18, 1
      %s239 = scalar_select %p238, %s18, 1
      %s240 = smul.addr %s239, 2
      %s241 = smul.addr %s240, 4
      %s242 = scalar_lea.vmem %s3, %s241
      %p243 = pneg %p133
      %p244 = pneg %p130
      %p245 = scmp.lt.s32.totalorder %s18, 1
      %s246 = scalar_select %p245, %s18, 1
      %s247 = smul.addr %s246, 2
      %s248 = smul.addr %s247, 4
      %s249 = scalar_lea.vmem %s4, %s248
      %p250 = pneg %p159
      %p251 = pneg %p156
      %p252 = scmp.lt.s32.totalorder %s18, 1
      %s253 = scalar_select %p252, %s18, 1
      %s254 = smul.addr %s253, 2
      %s255 = scalar_lea.vmem %s5, %s254
      %p256 = pneg %p185
      %p257 = pneg %p182
      %p258 = scmp.lt.s32.totalorder %s18, 1
      %s259 = scalar_select %p258, %s18, 1
      %s260 = smul.addr %s259, 2
      %s261 = scalar_lea.vmem %s6, %s260
      %p262 = scmp.lt.s32.totalorder %s18, 1
      %s263 = scalar_select %p262, %s18, 1
      %s264 = smul.addr %s263, 2
      %s265 = smul.addr %s264, 4
      %s266 = scalar_lea.vmem %s0, %s265
      %p267 = scmp.lt.s32.totalorder %s18, 1
      %s268 = scalar_select %p267, %s18, 1
      %s269 = smul.addr %s268, 2
      %s270 = smul.addr %s269, 4
      %s271 = scalar_lea.vmem %s3, %s270
      %p272 = scmp.lt.s32.totalorder %s18, 1
      %s273 = scalar_select %p272, %s18, 1
      %s274 = smul.addr %s273, 2
      %s275 = smul.addr %s274, 4
      %s276 = scalar_lea.vmem %s4, %s275
      %p277 = scmp.lt.s32.totalorder %s18, 1
      %s278 = scalar_select %p277, %s18, 1
      %s279 = smul.addr %s278, 2
      %s280 = scalar_lea.vmem %s5, %s279
      %p281 = scmp.lt.s32.totalorder %s18, 1
      %s282 = scalar_select %p281, %s18, 1
      %s283 = smul.addr %s282, 2
      %s284 = scalar_lea.vmem %s6, %s283
      %v286 = vld [vmem:[%s266] sm:$0xf]
      %v287 = vld [vmem:[%s266 + $0x4] sm:$0xf]
      %v288 = vld [vmem:[%s2] sm:$0xf]
      %v289 = vld [vmem:[%s2 + $0x4] sm:$0xf]
      %v290 = vld [vmem:[%s2 + $0x8] sm:$0xf]
      %v291 = vld [vmem:[%s2 + $0xc] sm:$0xf]
      %v292 = vld [vmem:[%s2 + $0x10] sm:$0xf]
      %v293 = vld [vmem:[%s2 + $0x14] sm:$0xf]
      %v294 = vld [vmem:[%s2 + $0x18] sm:$0xf]
      %v295 = vld [vmem:[%s2 + $0x1c] sm:$0xf]
      %v296 = vld [vmem:[%s2 + $0x20] sm:$0xf]
      %v297 = vld [vmem:[%s2 + $0x24] sm:$0xf]
      %v298 = vld [vmem:[%s2 + $0x28] sm:$0xf]
      %v299 = vld [vmem:[%s2 + $0x2c] sm:$0xf]
      %v300 = vld [vmem:[%s2 + $0x30] sm:$0xf]
      %v301 = vld [vmem:[%s2 + $0x34] sm:$0xf]
      %v302 = vld [vmem:[%s2 + $0x38] sm:$0xf]
      %v303 = vld [vmem:[%s2 + $0x3c] sm:$0xf]
      %v306 = vunpack.c.l.b16 %v286
      %v307 = vunpack.c.l.b16 %v287
      %v308 = vpack.c.b16 %v307, %v306
      %v326 = vunpack.c.l.b16 %v288
      %v327 = vunpack.c.l.b16 %v289
      %v328 = vunpack.c.l.b16 %v290
      %v329 = vunpack.c.l.b16 %v291
      %v330 = vunpack.c.l.b16 %v292
      %v331 = vunpack.c.l.b16 %v293
      %v332 = vunpack.c.l.b16 %v294
      %v333 = vunpack.c.l.b16 %v295
      %v334 = vunpack.c.l.b16 %v296
      %v335 = vunpack.c.l.b16 %v297
      %v336 = vunpack.c.l.b16 %v298
      %v337 = vunpack.c.l.b16 %v299
      %v338 = vunpack.c.l.b16 %v300
      %v339 = vunpack.c.l.b16 %v301
      %v340 = vunpack.c.l.b16 %v302
      %v341 = vunpack.c.l.b16 %v303
      %v342 = vpack.c.b16 %v327, %v326
      %v343 = vpack.c.b16 %v329, %v328
      %v344 = vpack.c.b16 %v331, %v330
      %v345 = vpack.c.b16 %v333, %v332
      %v346 = vpack.c.b16 %v335, %v334
      %v347 = vpack.c.b16 %v337, %v336
      %v348 = vpack.c.b16 %v339, %v338
      %v349 = vpack.c.b16 %v341, %v340
      %358 = vmatprep.subr.bf16.mxu0 0
      %359 = vmatpush1.bf16.msra.mxu0 %v342
      %360 = vmatprep.subr.bf16.mxu0 0
      %361 = vmatpush1.bf16.msra.mxu0 %v343
      %362 = vmatprep.subr.bf16.mxu0 0
      %363 = vmatpush1.bf16.msra.mxu0 %v344
      %364 = vmatprep.subr.bf16.mxu0 0
      %365 = vmatpush1.bf16.msra.mxu0 %v345
      %366 = vmatprep.subr.bf16.mxu0 0
      %367 = vmatpush1.bf16.msra.mxu0 %v346
      %368 = vmatprep.subr.bf16.mxu0 0
      %369 = vmatpush1.bf16.msra.mxu0 %v347
      %370 = vmatprep.subr.bf16.mxu0 0
      %371 = vmatpush1.bf16.msra.mxu0 %v348
      %372 = vmatprep.subr.bf16.mxu0 0
      %373 = vmatpush1.bf16.msra.mxu0 %v349
      %374 = vmatprep.subr.bf16.mxu0 0
      %375 = vmatpush1.bf16.msra.mxu0 0
      %376 = vmatprep.subr.bf16.mxu0 0
      %377 = vmatpush1.bf16.msra.mxu0 0
      %378 = vmatprep.subr.bf16.mxu0 0
      %379 = vmatpush1.bf16.msra.mxu0 0
      %380 = vmatprep.subr.bf16.mxu0 0
      %381 = vmatpush1.bf16.msra.mxu0 0
      %382 = vmatprep.subr.bf16.mxu0 0
      %383 = vmatpush1.bf16.msra.mxu0 0
      %384 = vmatprep.subr.bf16.mxu0 0
      %385 = vmatpush1.bf16.msra.mxu0 0
      %386 = vmatprep.subr.bf16.mxu0 0
      %387 = vmatpush1.bf16.msra.mxu0 0
      %388 = vmatprep.subr.bf16.mxu0 0
      %389 = vmatpush1.bf16.msra.mxu0 0
      %390 = vmatprep.mubr.bf16.mxu0 0
      %391 = vmatmul.mubr.bf16.gmra.mrb[0].mxu0 %v308
      %v392 = vpop.f32.mrb[0].mxu0
      %v393 = vadd.f32 0.0, %v392
      %v394 = vpop.f32.mrb[0].mxu0
      %v395 = vpop.f32.mrb[0].mxu0
      %v396 = vadd.f32 0.0, %v395
      %v397 = vpop.f32.mrb[0].mxu0
      %398 = vdwg.mxu0
      %399 = vst [vmem:[#allocation2] sm:$0xf] 0
      %400 = vst [vmem:[#allocation2 + $0x8] sm:$0xf0] 0
      %v401 = vpack.c.b16 %v306, %v306
      %v402 = vpack.c.b16 %v307, %v307
      %405 = vst [vmem:[#allocation2] sm:$0xf0] %v401
      %406 = vst [vmem:[#allocation2 + $0x8] sm:$0xf] %v402
      %v407 = vld [vmem:[#allocation2] sm:$0xfc]
      %v408 = vld [vmem:[#allocation2 + $0x8] sm:$0x7]
      %v409 = vld [vmem:[%s1] sm:$0xf]
      %v410 = vld [vmem:[%s1 + $0x4] sm:$0xf]
      %v411 = vld [vmem:[%s1 + $0x8] sm:$0xf]
      %v412 = vld [vmem:[%s1 + $0xc] sm:$0xf]
      %v413 = vld [vmem:[%s1 + $0x10] sm:$0xf]
      %v414 = vld [vmem:[%s1 + $0x14] sm:$0xf]
      %v415 = vld [vmem:[%s1 + $0x18] sm:$0xf]
      %v416 = vld [vmem:[%s1 + $0x1c] sm:$0xf]
      %v417 = vld [vmem:[%s1 + $0x20] sm:$0xf]
      %v418 = vld [vmem:[%s1 + $0x24] sm:$0xf]
      %v419 = vld [vmem:[%s1 + $0x28] sm:$0xf]
      %v420 = vld [vmem:[%s1 + $0x2c] sm:$0xf]
      %v421 = vld [vmem:[%s1 + $0x30] sm:$0xf]
      %v422 = vld [vmem:[%s1 + $0x34] sm:$0xf]
      %v423 = vld [vmem:[%s1 + $0x38] sm:$0xf]
      %v424 = vld [vmem:[%s1 + $0x3c] sm:$0xf]
      %v425 = vld [vmem:[#allocation2] sm:$0xf8]
      %s426 = scalar_lea.vmem %s1, 64
      %v427 = vld [vmem:[%s426] sm:$0xf]
      %v428 = vld [vmem:[%s426 + $0x4] sm:$0xf]
      %v429 = vld [vmem:[%s426 + $0x8] sm:$0xf]
      %v430 = vld [vmem:[%s426 + $0xc] sm:$0xf]
      %v431 = vld [vmem:[%s426 + $0x10] sm:$0xf]
      %v432 = vld [vmem:[%s426 + $0x14] sm:$0xf]
      %v433 = vld [vmem:[%s426 + $0x18] sm:$0xf]
      %v434 = vld [vmem:[%s426 + $0x1c] sm:$0xf]
      %v435 = vld [vmem:[%s426 + $0x20] sm:$0xf]
      %v436 = vld [vmem:[%s426 + $0x24] sm:$0xf]
      %v437 = vld [vmem:[%s426 + $0x28] sm:$0xf]
      %v438 = vld [vmem:[%s426 + $0x2c] sm:$0xf]
      %v439 = vld [vmem:[%s426 + $0x30] sm:$0xf]
      %v440 = vld [vmem:[%s426 + $0x34] sm:$0xf]
      %v441 = vld [vmem:[%s426 + $0x38] sm:$0xf]
      %v442 = vld [vmem:[%s426 + $0x3c] sm:$0xf]
      %vm445 = vcmask 1044480
      %v446 = vrot.slane %v425, 3
      %v447 = vrot.slane %v408, 3
      %v448 = vsel %vm445, %v446, %v447
      %v466 = vunpack.c.l.b16 %v427
      %v467 = vunpack.c.l.b16 %v428
      %v468 = vunpack.c.l.b16 %v429
      %v469 = vunpack.c.l.b16 %v430
      %v470 = vunpack.c.l.b16 %v431
      %v471 = vunpack.c.l.b16 %v432
      %v472 = vunpack.c.l.b16 %v433
      %v473 = vunpack.c.l.b16 %v434
      %v474 = vunpack.c.l.b16 %v435
      %v475 = vunpack.c.l.b16 %v436
      %v476 = vunpack.c.l.b16 %v437
      %v477 = vunpack.c.l.b16 %v438
      %v478 = vunpack.c.l.b16 %v439
      %v479 = vunpack.c.l.b16 %v440
      %v480 = vunpack.c.l.b16 %v441
      %v481 = vunpack.c.l.b16 %v442
      %v482 = vpack.c.b16 %v467, %v466
      %v483 = vpack.c.b16 %v469, %v468
      %v484 = vpack.c.b16 %v471, %v470
      %v485 = vpack.c.b16 %v473, %v472
      %v486 = vpack.c.b16 %v475, %v474
      %v487 = vpack.c.b16 %v477, %v476
      %v488 = vpack.c.b16 %v479, %v478
      %v489 = vpack.c.b16 %v481, %v480
      %498 = vmatprep.subr.bf16.mxu0 0
      %499 = vmatpush1.bf16.msra.mxu0 %v482
      %500 = vmatprep.subr.bf16.mxu0 0
      %501 = vmatpush1.bf16.msra.mxu0 %v483
      %502 = vmatprep.subr.bf16.mxu0 0
      %503 = vmatpush1.bf16.msra.mxu0 %v484
      %504 = vmatprep.subr.bf16.mxu0 0
      %505 = vmatpush1.bf16.msra.mxu0 %v485
      %506 = vmatprep.subr.bf16.mxu0 0
      %507 = vmatpush1.bf16.msra.mxu0 %v486
      %508 = vmatprep.subr.bf16.mxu0 0
      %509 = vmatpush1.bf16.msra.mxu0 %v487
      %510 = vmatprep.subr.bf16.mxu0 0
      %511 = vmatpush1.bf16.msra.mxu0 %v488
      %512 = vmatprep.subr.bf16.mxu0 0
      %513 = vmatpush1.bf16.msra.mxu0 %v489
      %514 = vmatprep.subr.bf16.mxu0 0
      %515 = vmatpush1.bf16.msra.mxu0 0
      %516 = vmatprep.subr.bf16.mxu0 0
      %517 = vmatpush1.bf16.msra.mxu0 0
      %518 = vmatprep.subr.bf16.mxu0 0
      %519 = vmatpush1.bf16.msra.mxu0 0
      %520 = vmatprep.subr.bf16.mxu0 0
      %521 = vmatpush1.bf16.msra.mxu0 0
      %522 = vmatprep.subr.bf16.mxu0 0
      %523 = vmatpush1.bf16.msra.mxu0 0
      %524 = vmatprep.subr.bf16.mxu0 0
      %525 = vmatpush1.bf16.msra.mxu0 0
      %526 = vmatprep.subr.bf16.mxu0 0
      %527 = vmatpush1.bf16.msra.mxu0 0
      %528 = vmatprep.subr.bf16.mxu0 0
      %529 = vmatpush1.bf16.msra.mxu0 0
      %530 = vmatprep.mubr.bf16.mxu0 0
      %531 = vmatmul.mubr.bf16.gmra.mrb[0].mxu0 %v448
      %v532 = vpop.f32.mrb[0].mxu0
      %v533 = vadd.f32 0.0, %v532
      %v534 = vpop.f32.mrb[0].mxu0
      %v535 = vpop.f32.mrb[0].mxu0
      %v536 = vadd.f32 0.0, %v535
      %v537 = vpop.f32.mrb[0].mxu0
      %538 = vdwg.mxu0
      %vm539 = vsmask.f32 5376
      %v541 = vshrl.u32 %v407, 16
      %v543 = vrot.slane %v541, 2
      %v544 = vshll.u32 %v407, 16
      %v546 = vrot.slane %v544, 3
      %v547 = vor.u32 %v543, %v546
      %v549 = vshrl.u32 %v408, 16
      %v551 = vrot.slane %v549, 2
      %v552 = vshll.u32 %v408, 16
      %v554 = vrot.slane %v552, 3
      %v555 = vor.u32 %v551, %v554
      %v556 = vsel %vm539, %v547, %v555
      %v574 = vunpack.c.l.b16 %v409
      %v575 = vunpack.c.l.b16 %v410
      %v576 = vunpack.c.l.b16 %v411
      %v577 = vunpack.c.l.b16 %v412
      %v578 = vunpack.c.l.b16 %v413
      %v579 = vunpack.c.l.b16 %v414
      %v580 = vunpack.c.l.b16 %v415
      %v581 = vunpack.c.l.b16 %v416
      %v582 = vunpack.c.l.b16 %v417
      %v583 = vunpack.c.l.b16 %v418
      %v584 = vunpack.c.l.b16 %v419
      %v585 = vunpack.c.l.b16 %v420
      %v586 = vunpack.c.l.b16 %v421
      %v587 = vunpack.c.l.b16 %v422
      %v588 = vunpack.c.l.b16 %v423
      %v589 = vunpack.c.l.b16 %v424
      %v590 = vpack.c.b16 %v575, %v574
      %v591 = vpack.c.b16 %v577, %v576
      %v592 = vpack.c.b16 %v579, %v578
      %v593 = vpack.c.b16 %v581, %v580
      %v594 = vpack.c.b16 %v583, %v582
      %v595 = vpack.c.b16 %v585, %v584
      %v596 = vpack.c.b16 %v587, %v586
      %v597 = vpack.c.b16 %v589, %v588
      %606 = vmatprep.subr.bf16.mxu0 0
      %607 = vmatpush1.bf16.msra.mxu0 %v590
      %608 = vmatprep.subr.bf16.mxu0 0
      %609 = vmatpush1.bf16.msra.mxu0 %v591
      %610 = vmatprep.subr.bf16.mxu0 0
      %611 = vmatpush1.bf16.msra.mxu0 %v592
      %612 = vmatprep.subr.bf16.mxu0 0
      %613 = vmatpush1.bf16.msra.mxu0 %v593
      %614 = vmatprep.subr.bf16.mxu0 0
      %615 = vmatpush1.bf16.msra.mxu0 %v594
      %616 = vmatprep.subr.bf16.mxu0 0
      %617 = vmatpush1.bf16.msra.mxu0 %v595
      %618 = vmatprep.subr.bf16.mxu0 0
      %619 = vmatpush1.bf16.msra.mxu0 %v596
      %620 = vmatprep.subr.bf16.mxu0 0
      %621 = vmatpush1.bf16.msra.mxu0 %v597
      %622 = vmatprep.subr.bf16.mxu0 0
      %623 = vmatpush1.bf16.msra.mxu0 0
      %624 = vmatprep.subr.bf16.mxu0 0
      %625 = vmatpush1.bf16.msra.mxu0 0
      %626 = vmatprep.subr.bf16.mxu0 0
      %627 = vmatpush1.bf16.msra.mxu0 0
      %628 = vmatprep.subr.bf16.mxu0 0
      %629 = vmatpush1.bf16.msra.mxu0 0
      %630 = vmatprep.subr.bf16.mxu0 0
      %631 = vmatpush1.bf16.msra.mxu0 0
      %632 = vmatprep.subr.bf16.mxu0 0
      %633 = vmatpush1.bf16.msra.mxu0 0
      %634 = vmatprep.subr.bf16.mxu0 0
      %635 = vmatpush1.bf16.msra.mxu0 0
      %636 = vmatprep.subr.bf16.mxu0 0
      %637 = vmatpush1.bf16.msra.mxu0 0
      %638 = vmatprep.mubr.bf16.mxu0 0
      %639 = vmatmul.mubr.bf16.gmra.mrb[0].mxu0 %v556
      %v640 = vpop.f32.mrb[0].mxu0
      %v641 = vadd.f32 %v533, %v640
      %v642 = vpop.f32.mrb[0].mxu0
      %v643 = vpop.f32.mrb[0].mxu0
      %v644 = vadd.f32 %v536, %v643
      %v645 = vpop.f32.mrb[0].mxu0
      %646 = vdwg.mxu0
      %v647 = vld [vmem:[#allocation2 + $0x8] sm:$0xf]
      %s648 = scalar_lea.vmem %s1, 128
      %v649 = vld [vmem:[%s648] sm:$0xf]
      %v650 = vld [vmem:[%s648 + $0x4] sm:$0xf]
      %v651 = vld [vmem:[%s648 + $0x8] sm:$0xf]
      %v652 = vld [vmem:[%s648 + $0xc] sm:$0xf]
      %v653 = vld [vmem:[%s648 + $0x10] sm:$0xf]
      %v654 = vld [vmem:[%s648 + $0x14] sm:$0xf]
      %v655 = vld [vmem:[%s648 + $0x18] sm:$0xf]
      %v656 = vld [vmem:[%s648 + $0x1c] sm:$0xf]
      %v657 = vld [vmem:[%s648 + $0x20] sm:$0xf]
      %v658 = vld [vmem:[%s648 + $0x24] sm:$0xf]
      %v659 = vld [vmem:[%s648 + $0x28] sm:$0xf]
      %v660 = vld [vmem:[%s648 + $0x2c] sm:$0xf]
      %v661 = vld [vmem:[%s648 + $0x30] sm:$0xf]
      %v662 = vld [vmem:[%s648 + $0x34] sm:$0xf]
      %v663 = vld [vmem:[%s648 + $0x38] sm:$0xf]
      %v664 = vld [vmem:[%s648 + $0x3c] sm:$0xf]
      %vm665 = vsmask.f32 4352
      %v667 = vshrl.u32 %v425, 16
      %v669 = vrot.slane %v667, 3
      %v670 = vshll.u32 %v425, 16
      %v672 = vrot.slane %v670, 4
      %v673 = vor.u32 %v669, %v672
      %v675 = vshrl.u32 %v647, 16
      %v677 = vrot.slane %v675, 3
      %v678 = vshll.u32 %v647, 16
      %v680 = vrot.slane %v678, 4
      %v681 = vor.u32 %v677, %v680
      %v682 = vsel %vm665, %v673, %v681
      %v700 = vunpack.c.l.b16 %v649
      %v701 = vunpack.c.l.b16 %v650
      %v702 = vunpack.c.l.b16 %v651
      %v703 = vunpack.c.l.b16 %v652
      %v704 = vunpack.c.l.b16 %v653
      %v705 = vunpack.c.l.b16 %v654
      %v706 = vunpack.c.l.b16 %v655
      %v707 = vunpack.c.l.b16 %v656
      %v708 = vunpack.c.l.b16 %v657
      %v709 = vunpack.c.l.b16 %v658
      %v710 = vunpack.c.l.b16 %v659
      %v711 = vunpack.c.l.b16 %v660
      %v712 = vunpack.c.l.b16 %v661
      %v713 = vunpack.c.l.b16 %v662
      %v714 = vunpack.c.l.b16 %v663
      %v715 = vunpack.c.l.b16 %v664
      %v716 = vpack.c.b16 %v701, %v700
      %v717 = vpack.c.b16 %v703, %v702
      %v718 = vpack.c.b16 %v705, %v704
      %v719 = vpack.c.b16 %v707, %v706
      %v720 = vpack.c.b16 %v709, %v708
      %v721 = vpack.c.b16 %v711, %v710
      %v722 = vpack.c.b16 %v713, %v712
      %v723 = vpack.c.b16 %v715, %v714
      %732 = vmatprep.subr.bf16.mxu0 0
      %733 = vmatpush1.bf16.msra.mxu0 %v716
      %734 = vmatprep.subr.bf16.mxu0 0
      %735 = vmatpush1.bf16.msra.mxu0 %v717
      %736 = vmatprep.subr.bf16.mxu0 0
      %737 = vmatpush1.bf16.msra.mxu0 %v718
      %738 = vmatprep.subr.bf16.mxu0 0
      %739 = vmatpush1.bf16.msra.mxu0 %v719
      %740 = vmatprep.subr.bf16.mxu0 0
      %741 = vmatpush1.bf16.msra.mxu0 %v720
      %742 = vmatprep.subr.bf16.mxu0 0
      %743 = vmatpush1.bf16.msra.mxu0 %v721
      %744 = vmatprep.subr.bf16.mxu0 0
      %745 = vmatpush1.bf16.msra.mxu0 %v722
      %746 = vmatprep.subr.bf16.mxu0 0
      %747 = vmatpush1.bf16.msra.mxu0 %v723
      %748 = vmatprep.subr.bf16.mxu0 0
      %749 = vmatpush1.bf16.msra.mxu0 0
      %750 = vmatprep.subr.bf16.mxu0 0
      %751 = vmatpush1.bf16.msra.mxu0 0
      %752 = vmatprep.subr.bf16.mxu0 0
      %753 = vmatpush1.bf16.msra.mxu0 0
      %754 = vmatprep.subr.bf16.mxu0 0
      %755 = vmatpush1.bf16.msra.mxu0 0
      %756 = vmatprep.subr.bf16.mxu0 0
      %757 = vmatpush1.bf16.msra.mxu0 0
      %758 = vmatprep.subr.bf16.mxu0 0
      %759 = vmatpush1.bf16.msra.mxu0 0
      %760 = vmatprep.subr.bf16.mxu0 0
      %761 = vmatpush1.bf16.msra.mxu0 0
      %762 = vmatprep.subr.bf16.mxu0 0
      %763 = vmatpush1.bf16.msra.mxu0 0
      %764 = vmatprep.mubr.bf16.mxu0 0
      %765 = vmatmul.mubr.bf16.gmra.mrb[0].mxu0 %v682
      %v766 = vpop.f32.mrb[0].mxu0
      %v767 = vadd.f32 0.0, %v766
      %v768 = vpop.f32.mrb[0].mxu0
      %v769 = vpop.f32.mrb[0].mxu0
      %v770 = vadd.f32 0.0, %v769
      %v771 = vpop.f32.mrb[0].mxu0
      %772 = vdwg.mxu0
      %v773 = vadd.f32 %v641, %v767
      %v774 = vadd.f32 %v644, %v770
      %v775 = vld [vmem:[#allocation2] sm:$0xf0]
      %s776 = scalar_lea.vmem %s1, 192
      %v777 = vld [vmem:[%s776] sm:$0xf]
      %v778 = vld [vmem:[%s776 + $0x4] sm:$0xf]
      %v779 = vld [vmem:[%s776 + $0x8] sm:$0xf]
      %v780 = vld [vmem:[%s776 + $0xc] sm:$0xf]
      %v781 = vld [vmem:[%s776 + $0x10] sm:$0xf]
      %v782 = vld [vmem:[%s776 + $0x14] sm:$0xf]
      %v783 = vld [vmem:[%s776 + $0x18] sm:$0xf]
      %v784 = vld [vmem:[%s776 + $0x1c] sm:$0xf]
      %v785 = vld [vmem:[%s776 + $0x20] sm:$0xf]
      %v786 = vld [vmem:[%s776 + $0x24] sm:$0xf]
      %v787 = vld [vmem:[%s776 + $0x28] sm:$0xf]
      %v788 = vld [vmem:[%s776 + $0x2c] sm:$0xf]
      %v789 = vld [vmem:[%s776 + $0x30] sm:$0xf]
      %v790 = vld [vmem:[%s776 + $0x34] sm:$0xf]
      %v791 = vld [vmem:[%s776 + $0x38] sm:$0xf]
      %v792 = vld [vmem:[%s776 + $0x3c] sm:$0xf]
      %vm795 = vcmask 1043456
      %v796 = vrot.slane %v775, 4
      %v797 = vrot.slane %v647, 4
      %v798 = vsel %vm795, %v796, %v797
      %v816 = vunpack.c.l.b16 %v777
      %v817 = vunpack.c.l.b16 %v778
      %v818 = vunpack.c.l.b16 %v779
      %v819 = vunpack.c.l.b16 %v780
      %v820 = vunpack.c.l.b16 %v781
      %v821 = vunpack.c.l.b16 %v782
      %v822 = vunpack.c.l.b16 %v783
      %v823 = vunpack.c.l.b16 %v784
      %v824 = vunpack.c.l.b16 %v785
      %v825 = vunpack.c.l.b16 %v786
      %v826 = vunpack.c.l.b16 %v787
      %v827 = vunpack.c.l.b16 %v788
      %v828 = vunpack.c.l.b16 %v789
      %v829 = vunpack.c.l.b16 %v790
      %v830 = vunpack.c.l.b16 %v791
      %v831 = vunpack.c.l.b16 %v792
      %v832 = vpack.c.b16 %v817, %v816
      %v833 = vpack.c.b16 %v819, %v818
      %v834 = vpack.c.b16 %v821, %v820
      %v835 = vpack.c.b16 %v823, %v822
      %v836 = vpack.c.b16 %v825, %v824
      %v837 = vpack.c.b16 %v827, %v826
      %v838 = vpack.c.b16 %v829, %v828
      %v839 = vpack.c.b16 %v831, %v830
      %848 = vmatprep.subr.bf16.mxu0 0
      %849 = vmatpush1.bf16.msra.mxu0 %v832
      %850 = vmatprep.subr.bf16.mxu0 0
      %851 = vmatpush1.bf16.msra.mxu0 %v833
      %852 = vmatprep.subr.bf16.mxu0 0
      %853 = vmatpush1.bf16.msra.mxu0 %v834
      %854 = vmatprep.subr.bf16.mxu0 0
      %855 = vmatpush1.bf16.msra.mxu0 %v835
      %856 = vmatprep.subr.bf16.mxu0 0
      %857 = vmatpush1.bf16.msra.mxu0 %v836
      %858 = vmatprep.subr.bf16.mxu0 0
      %859 = vmatpush1.bf16.msra.mxu0 %v837
      %860 = vmatprep.subr.bf16.mxu0 0
      %861 = vmatpush1.bf16.msra.mxu0 %v838
      %862 = vmatprep.subr.bf16.mxu0 0
      %863 = vmatpush1.bf16.msra.mxu0 %v839
      %864 = vmatprep.subr.bf16.mxu0 0
      %865 = vmatpush1.bf16.msra.mxu0 0
      %866 = vmatprep.subr.bf16.mxu0 0
      %867 = vmatpush1.bf16.msra.mxu0 0
      %868 = vmatprep.subr.bf16.mxu0 0
      %869 = vmatpush1.bf16.msra.mxu0 0
      %870 = vmatprep.subr.bf16.mxu0 0
      %871 = vmatpush1.bf16.msra.mxu0 0
      %872 = vmatprep.subr.bf16.mxu0 0
      %873 = vmatpush1.bf16.msra.mxu0 0
      %874 = vmatprep.subr.bf16.mxu0 0
      %875 = vmatpush1.bf16.msra.mxu0 0
      %876 = vmatprep.subr.bf16.mxu0 0
      %877 = vmatpush1.bf16.msra.mxu0 0
      %878 = vmatprep.subr.bf16.mxu0 0
      %879 = vmatpush1.bf16.msra.mxu0 0
      %880 = vmatprep.mubr.bf16.mxu0 0
      %881 = vmatmul.mubr.bf16.gmra.mrb[0].mxu0 %v798
      %v882 = vpop.f32.mrb[0].mxu0
      %v883 = vadd.f32 0.0, %v882
      %v884 = vpop.f32.mrb[0].mxu0
      %v885 = vpop.f32.mrb[0].mxu0
      %v886 = vadd.f32 0.0, %v885
      %v887 = vpop.f32.mrb[0].mxu0
      %888 = vdwg.mxu0
      %v889 = vadd.f32 %v773, %v883
      %v890 = vadd.f32 %v774, %v886
      %v891 = vld [vmem:[#allocation2 + $0x8] sm:$0x1f]
      %s892 = scalar_lea.vmem %s1, 256
      %v893 = vld [vmem:[%s892] sm:$0xf]
      %v894 = vld [vmem:[%s892 + $0x4] sm:$0xf]
      %v895 = vld [vmem:[%s892 + $0x8] sm:$0xf]
      %v896 = vld [vmem:[%s892 + $0xc] sm:$0xf]
      %v897 = vld [vmem:[%s892 + $0x10] sm:$0xf]
      %v898 = vld [vmem:[%s892 + $0x14] sm:$0xf]
      %v899 = vld [vmem:[%s892 + $0x18] sm:$0xf]
      %v900 = vld [vmem:[%s892 + $0x1c] sm:$0xf]
      %v901 = vld [vmem:[%s892 + $0x20] sm:$0xf]
      %v902 = vld [vmem:[%s892 + $0x24] sm:$0xf]
      %v903 = vld [vmem:[%s892 + $0x28] sm:$0xf]
      %v904 = vld [vmem:[%s892 + $0x2c] sm:$0xf]
      %v905 = vld [vmem:[%s892 + $0x30] sm:$0xf]
      %v906 = vld [vmem:[%s892 + $0x34] sm:$0xf]
      %v907 = vld [vmem:[%s892 + $0x38] sm:$0xf]
      %v908 = vld [vmem:[%s892 + $0x3c] sm:$0xf]
      %vm909 = vsmask.f32 3328
      %v911 = vshrl.u32 %v775, 16
      %v913 = vrot.slane %v911, 4
      %v914 = vshll.u32 %v775, 16
      %v916 = vrot.slane %v914, 5
      %v917 = vor.u32 %v913, %v916
      %v919 = vshrl.u32 %v891, 16
      %v921 = vrot.slane %v919, 4
      %v922 = vshll.u32 %v891, 16
      %v924 = vrot.slane %v922, 5
      %v925 = vor.u32 %v921, %v924
      %v926 = vsel %vm909, %v917, %v925
      %v944 = vunpack.c.l.b16 %v893
      %v945 = vunpack.c.l.b16 %v894
      %v946 = vunpack.c.l.b16 %v895
      %v947 = vunpack.c.l.b16 %v896
      %v948 = vunpack.c.l.b16 %v897
      %v949 = vunpack.c.l.b16 %v898
      %v950 = vunpack.c.l.b16 %v899
      %v951 = vunpack.c.l.b16 %v900
      %v952 = vunpack.c.l.b16 %v901
      %v953 = vunpack.c.l.b16 %v902
      %v954 = vunpack.c.l.b16 %v903
      %v955 = vunpack.c.l.b16 %v904
      %v956 = vunpack.c.l.b16 %v905
      %v957 = vunpack.c.l.b16 %v906
      %v958 = vunpack.c.l.b16 %v907
      %v959 = vunpack.c.l.b16 %v908
      %v960 = vpack.c.b16 %v945, %v944
      %v961 = vpack.c.b16 %v947, %v946
      %v962 = vpack.c.b16 %v949, %v948
      %v963 = vpack.c.b16 %v951, %v950
      %v964 = vpack.c.b16 %v953, %v952
      %v965 = vpack.c.b16 %v955, %v954
      %v966 = vpack.c.b16 %v957, %v956
      %v967 = vpack.c.b16 %v959, %v958
      %976 = vmatprep.subr.bf16.mxu0 0
      %977 = vmatpush1.bf16.msra.mxu0 %v960
      %978 = vmatprep.subr.bf16.mxu0 0
      %979 = vmatpush1.bf16.msra.mxu0 %v961
      %980 = vmatprep.subr.bf16.mxu0 0
      %981 = vmatpush1.bf16.msra.mxu0 %v962
      %982 = vmatprep.subr.bf16.mxu0 0
      %983 = vmatpush1.bf16.msra.mxu0 %v963
      %984 = vmatprep.subr.bf16.mxu0 0
      %985 = vmatpush1.bf16.msra.mxu0 %v964
      %986 = vmatprep.subr.bf16.mxu0 0
      %987 = vmatpush1.bf16.msra.mxu0 %v965
      %988 = vmatprep.subr.bf16.mxu0 0
      %989 = vmatpush1.bf16.msra.mxu0 %v966
      %990 = vmatprep.subr.bf16.mxu0 0
      %991 = vmatpush1.bf16.msra.mxu0 %v967
      %992 = vmatprep.subr.bf16.mxu0 0
      %993 = vmatpush1.bf16.msra.mxu0 0
      %994 = vmatprep.subr.bf16.mxu0 0
      %995 = vmatpush1.bf16.msra.mxu0 0
      %996 = vmatprep.subr.bf16.mxu0 0
      %997 = vmatpush1.bf16.msra.mxu0 0
      %998 = vmatprep.subr.bf16.mxu0 0
      %999 = vmatpush1.bf16.msra.mxu0 0
      %1000 = vmatprep.subr.bf16.mxu0 0
      %1001 = vmatpush1.bf16.msra.mxu0 0
      %1002 = vmatprep.subr.bf16.mxu0 0
      %1003 = vmatpush1.bf16.msra.mxu0 0
      %1004 = vmatprep.subr.bf16.mxu0 0
      %1005 = vmatpush1.bf16.msra.mxu0 0
      %1006 = vmatprep.subr.bf16.mxu0 0
      %1007 = vmatpush1.bf16.msra.mxu0 0
      %1008 = vmatprep.mubr.bf16.mxu0 0
      %1009 = vmatmul.mubr.bf16.gmra.mrb[0].mxu0 %v926
      %v1010 = vpop.f32.mrb[0].mxu0
      %v1011 = vadd.f32 0.0, %v1010
      %v1012 = vpop.f32.mrb[0].mxu0
      %v1013 = vpop.f32.mrb[0].mxu0
      %v1014 = vadd.f32 0.0, %v1013
      %v1015 = vpop.f32.mrb[0].mxu0
      %1016 = vdwg.mxu0
      %v1017 = vadd.f32 %v889, %v1011
      %v1018 = vadd.f32 %v890, %v1014
      %v1019 = vld [vmem:[#allocation2] sm:$0xe0]
      %s1020 = scalar_lea.vmem %s1, 320
      %v1021 = vld [vmem:[%s1020] sm:$0xf]
      %v1022 = vld [vmem:[%s1020 + $0x4] sm:$0xf]
      %v1023 = vld [vmem:[%s1020 + $0x8] sm:$0xf]
      %v1024 = vld [vmem:[%s1020 + $0xc] sm:$0xf]
      %v1025 = vld [vmem:[%s1020 + $0x10] sm:$0xf]
      %v1026 = vld [vmem:[%s1020 + $0x14] sm:$0xf]
      %v1027 = vld [vmem:[%s1020 + $0x18] sm:$0xf]
      %v1028 = vld [vmem:[%s1020 + $0x1c] sm:$0xf]
      %v1029 = vld [vmem:[%s1020 + $0x20] sm:$0xf]
      %v1030 = vld [vmem:[%s1020 + $0x24] sm:$0xf]
      %v1031 = vld [vmem:[%s1020 + $0x28] sm:$0xf]
      %v1032 = vld [vmem:[%s1020 + $0x2c] sm:$0xf]
      %v1033 = vld [vmem:[%s1020 + $0x30] sm:$0xf]
      %v1034 = vld [vmem:[%s1020 + $0x34] sm:$0xf]
      %v1035 = vld [vmem:[%s1020 + $0x38] sm:$0xf]
      %v1036 = vld [vmem:[%s1020 + $0x3c] sm:$0xf]
      %vm1039 = vcmask 1042432
      %v1040 = vrot.slane %v1019, 5
      %v1041 = vrot.slane %v891, 5
      %v1042 = vsel %vm1039, %v1040, %v1041
      %v1060 = vunpack.c.l.b16 %v1021
      %v1061 = vunpack.c.l.b16 %v1022
      %v1062 = vunpack.c.l.b16 %v1023
      %v1063 = vunpack.c.l.b16 %v1024
      %v1064 = vunpack.c.l.b16 %v1025
      %v1065 = vunpack.c.l.b16 %v1026
      %v1066 = vunpack.c.l.b16 %v1027
      %v1067 = vunpack.c.l.b16 %v1028
      %v1068 = vunpack.c.l.b16 %v1029
      %v1069 = vunpack.c.l.b16 %v1030
      %v1070 = vunpack.c.l.b16 %v1031
      %v1071 = vunpack.c.l.b16 %v1032
      %v1072 = vunpack.c.l.b16 %v1033
      %v1073 = vunpack.c.l.b16 %v1034
      %v1074 = vunpack.c.l.b16 %v1035
      %v1075 = vunpack.c.l.b16 %v1036
      %v1076 = vpack.c.b16 %v1061, %v1060
      %v1077 = vpack.c.b16 %v1063, %v1062
      %v1078 = vpack.c.b16 %v1065, %v1064
      %v1079 = vpack.c.b16 %v1067, %v1066
      %v1080 = vpack.c.b16 %v1069, %v1068
      %v1081 = vpack.c.b16 %v1071, %v1070
      %v1082 = vpack.c.b16 %v1073, %v1072
      %v1083 = vpack.c.b16 %v1075, %v1074
      %1092 = vmatprep.subr.bf16.mxu0 0
      %1093 = vmatpush1.bf16.msra.mxu0 %v1076
      %1094 = vmatprep.subr.bf16.mxu0 0
      %1095 = vmatpush1.bf16.msra.mxu0 %v1077
      %1096 = vmatprep.subr.bf16.mxu0 0
      %1097 = vmatpush1.bf16.msra.mxu0 %v1078
      %1098 = vmatprep.subr.bf16.mxu0 0
      %1099 = vmatpush1.bf16.msra.mxu0 %v1079
      %1100 = vmatprep.subr.bf16.mxu0 0
      %1101 = vmatpush1.bf16.msra.mxu0 %v1080
      %1102 = vmatprep.subr.bf16.mxu0 0
      %1103 = vmatpush1.bf16.msra.mxu0 %v1081
      %1104 = vmatprep.subr.bf16.mxu0 0
      %1105 = vmatpush1.bf16.msra.mxu0 %v1082
      %1106 = vmatprep.subr.bf16.mxu0 0
      %1107 = vmatpush1.bf16.msra.mxu0 %v1083
      %1108 = vmatprep.subr.bf16.mxu0 0
      %1109 = vmatpush1.bf16.msra.mxu0 0
      %1110 = vmatprep.subr.bf16.mxu0 0
      %1111 = vmatpush1.bf16.msra.mxu0 0
      %1112 = vmatprep.subr.bf16.mxu0 0
      %1113 = vmatpush1.bf16.msra.mxu0 0
      %1114 = vmatprep.subr.bf16.mxu0 0
      %1115 = vmatpush1.bf16.msra.mxu0 0
      %1116 = vmatprep.subr.bf16.mxu0 0
      %1117 = vmatpush1.bf16.msra.mxu0 0
      %1118 = vmatprep.subr.bf16.mxu0 0
      %1119 = vmatpush1.bf16.msra.mxu0 0
      %1120 = vmatprep.subr.bf16.mxu0 0
      %1121 = vmatpush1.bf16.msra.mxu0 0
      %1122 = vmatprep.subr.bf16.mxu0 0
      %1123 = vmatpush1.bf16.msra.mxu0 0
      %1124 = vmatprep.mubr.bf16.mxu0 0
      %1125 = vmatmul.mubr.bf16.gmra.mrb[0].mxu0 %v1042
      %v1126 = vpop.f32.mrb[0].mxu0
      %v1127 = vadd.f32 0.0, %v1126
      %v1128 = vpop.f32.mrb[0].mxu0
      %v1129 = vpop.f32.mrb[0].mxu0
      %v1130 = vadd.f32 0.0, %v1129
      %v1131 = vpop.f32.mrb[0].mxu0
      %1132 = vdwg.mxu0
      %v1133 = vadd.f32 %v1017, %v1127
      %v1134 = vadd.f32 %v1018, %v1130
      %v1135 = vld [vmem:[#allocation2 + $0x8] sm:$0x3f]
      %s1136 = scalar_lea.vmem %s1, 384
      %v1137 = vld [vmem:[%s1136] sm:$0xf]
      %v1138 = vld [vmem:[%s1136 + $0x4] sm:$0xf]
      %v1139 = vld [vmem:[%s1136 + $0x8] sm:$0xf]
      %v1140 = vld [vmem:[%s1136 + $0xc] sm:$0xf]
      %v1141 = vld [vmem:[%s1136 + $0x10] sm:$0xf]
      %v1142 = vld [vmem:[%s1136 + $0x14] sm:$0xf]
      %v1143 = vld [vmem:[%s1136 + $0x18] sm:$0xf]
      %v1144 = vld [vmem:[%s1136 + $0x1c] sm:$0xf]
      %v1145 = vld [vmem:[%s1136 + $0x20] sm:$0xf]
      %v1146 = vld [vmem:[%s1136 + $0x24] sm:$0xf]
      %v1147 = vld [vmem:[%s1136 + $0x28] sm:$0xf]
      %v1148 = vld [vmem:[%s1136 + $0x2c] sm:$0xf]
      %v1149 = vld [vmem:[%s1136 + $0x30] sm:$0xf]
      %v1150 = vld [vmem:[%s1136 + $0x34] sm:$0xf]
      %v1151 = vld [vmem:[%s1136 + $0x38] sm:$0xf]
      %v1152 = vld [vmem:[%s1136 + $0x3c] sm:$0xf]
      %vm1153 = vsmask.f32 2304
      %v1155 = vshrl.u32 %v1019, 16
      %v1157 = vrot.slane %v1155, 5
      %v1158 = vshll.u32 %v1019, 16
      %v1160 = vrot.slane %v1158, 6
      %v1161 = vor.u32 %v1157, %v1160
      %v1163 = vshrl.u32 %v1135, 16
      %v1165 = vrot.slane %v1163, 5
      %v1166 = vshll.u32 %v1135, 16
      %v1168 = vrot.slane %v1166, 6
      %v1169 = vor.u32 %v1165, %v1168
      %v1170 = vsel %vm1153, %v1161, %v1169
      %v1188 = vunpack.c.l.b16 %v1137
      %v1189 = vunpack.c.l.b16 %v1138
      %v1190 = vunpack.c.l.b16 %v1139
      %v1191 = vunpack.c.l.b16 %v1140
      %v1192 = vunpack.c.l.b16 %v1141
      %v1193 = vunpack.c.l.b16 %v1142
      %v1194 = vunpack.c.l.b16 %v1143
      %v1195 = vunpack.c.l.b16 %v1144
      %v1196 = vunpack.c.l.b16 %v1145
      %v1197 = vunpack.c.l.b16 %v1146
      %v1198 = vunpack.c.l.b16 %v1147
      %v1199 = vunpack.c.l.b16 %v1148
      %v1200 = vunpack.c.l.b16 %v1149
      %v1201 = vunpack.c.l.b16 %v1150
      %v1202 = vunpack.c.l.b16 %v1151
      %v1203 = vunpack.c.l.b16 %v1152
      %v1204 = vpack.c.b16 %v1189, %v1188
      %v1205 = vpack.c.b16 %v1191, %v1190
      %v1206 = vpack.c.b16 %v1193, %v1192
      %v1207 = vpack.c.b16 %v1195, %v1194
      %v1208 = vpack.c.b16 %v1197, %v1196
      %v1209 = vpack.c.b16 %v1199, %v1198
      %v1210 = vpack.c.b16 %v1201, %v1200
      %v1211 = vpack.c.b16 %v1203, %v1202
      %1220 = vmatprep.subr.bf16.mxu0 0
      %1221 = vmatpush1.bf16.msra.mxu0 %v1204
      %1222 = vmatprep.subr.bf16.mxu0 0
      %1223 = vmatpush1.bf16.msra.mxu0 %v1205
      %1224 = vmatprep.subr.bf16.mxu0 0
      %1225 = vmatpush1.bf16.msra.mxu0 %v1206
      %1226 = vmatprep.subr.bf16.mxu0 0
      %1227 = vmatpush1.bf16.msra.mxu0 %v1207
      %1228 = vmatprep.subr.bf16.mxu0 0
      %1229 = vmatpush1.bf16.msra.mxu0 %v1208
      %1230 = vmatprep.subr.bf16.mxu0 0
      %1231 = vmatpush1.bf16.msra.mxu0 %v1209
      %1232 = vmatprep.subr.bf16.mxu0 0
      %1233 = vmatpush1.bf16.msra.mxu0 %v1210
      %1234 = vmatprep.subr.bf16.mxu0 0
      %1235 = vmatpush1.bf16.msra.mxu0 %v1211
      %1236 = vmatprep.subr.bf16.mxu0 0
      %1237 = vmatpush1.bf16.msra.mxu0 0
      %1238 = vmatprep.subr.bf16.mxu0 0
      %1239 = vmatpush1.bf16.msra.mxu0 0
      %1240 = vmatprep.subr.bf16.mxu0 0
      %1241 = vmatpush1.bf16.msra.mxu0 0
      %1242 = vmatprep.subr.bf16.mxu0 0
      %1243 = vmatpush1.bf16.msra.mxu0 0
      %1244 = vmatprep.subr.bf16.mxu0 0
      %1245 = vmatpush1.bf16.msra.mxu0 0
      %1246 = vmatprep.subr.bf16.mxu0 0
      %1247 = vmatpush1.bf16.msra.mxu0 0
      %1248 = vmatprep.subr.bf16.mxu0 0
      %1249 = vmatpush1.bf16.msra.mxu0 0
      %1250 = vmatprep.subr.bf16.mxu0 0
      %1251 = vmatpush1.bf16.msra.mxu0 0
      %1252 = vmatprep.mubr.bf16.mxu0 0
      %1253 = vmatmul.mubr.bf16.gmra.mrb[0].mxu0 %v1170
      %v1254 = vpop.f32.mrb[0].mxu0
      %v1255 = vadd.f32 0.0, %v1254
      %v1256 = vpop.f32.mrb[0].mxu0
      %v1257 = vpop.f32.mrb[0].mxu0
      %v1258 = vadd.f32 0.0, %v1257
      %v1259 = vpop.f32.mrb[0].mxu0
      %1260 = vdwg.mxu0
      %v1261 = vadd.f32 %v1133, %v1255
      %v1262 = vadd.f32 %v1134, %v1258
      %v1263 = vpack.c.bf16 %v1262, %v1261
      %v1265 = vunpack.c.l.b16 %v1263
      %v1266 = vunpack.c.h.b16 %v1263
      %v1267 = vpack.c.b16 %v1265, %v1265
      %v1268 = vpack.c.b16 %v1266, %v1266
      %1271 = vst [vmem:[%s271] sm:$0xf] %v1267
      %1272 = vst [vmem:[%s271 + $0x4] sm:$0xf] %v1268
      %v1273 = vpack.c.bf16 %v396, %v393
      %v1275 = vunpack.c.l.b16 %v1273
      %v1276 = vunpack.c.h.b16 %v1273
      %v1277 = vpack.c.b16 %v1275, %v1275
      %v1278 = vpack.c.b16 %v1276, %v1276
      %1281 = vst [vmem:[%s276] sm:$0xf] %v1277
      %1282 = vst [vmem:[%s276 + $0x4] sm:$0xf] %v1278
      %v1283 = vadd.f32 %v1261, %v1262
      %v1284 = vrot.slane %v1283, 4
      %v1285 = vadd.f32 %v1283, %v1284
      %v1286 = vrot.slane %v1285, 2
      %v1287 = vadd.f32 %v1285, %v1286
      %v1288 = vrot.slane %v1287, 1
      %v1289 = vadd.f32 %v1287, %v1288
      %v1290 = vmul.f32 %v1261, %v1261
      %v1291 = vmul.f32 %v1262, %v1262
      %v1292 = vadd.f32 %v1290, %v1291
      %v1293 = vrot.slane %v1292, 4
      %v1294 = vadd.f32 %v1292, %v1293
      %v1295 = vrot.slane %v1294, 2
      %v1296 = vadd.f32 %v1294, %v1295
      %v1297 = vrot.slane %v1296, 1
      %v1298 = vadd.f32 %v1296, %v1297
      %vm1299 = vcmask 1040384
      %v1300 = vsel %vm1299, %v1289, %v1298
      %1301 = vst [vmem:[%s280] sm:$0x3] %v1300
      %v1302 = vadd.f32 %v393, %v396
      %v1303 = vrot.slane %v1302, 4
      %v1304 = vadd.f32 %v1302, %v1303
      %v1305 = vrot.slane %v1304, 2
      %v1306 = vadd.f32 %v1304, %v1305
      %v1307 = vrot.slane %v1306, 1
      %v1308 = vadd.f32 %v1306, %v1307
      %v1309 = vmul.f32 %v393, %v393
      %v1310 = vmul.f32 %v396, %v396
      %v1311 = vadd.f32 %v1309, %v1310
      %v1312 = vrot.slane %v1311, 4
      %v1313 = vadd.f32 %v1311, %v1312
      %v1314 = vrot.slane %v1313, 2
      %v1315 = vadd.f32 %v1313, %v1314
      %v1316 = vrot.slane %v1315, 1
      %v1317 = vadd.f32 %v1315, %v1316
      %v1318 = vsel %vm1299, %v1308, %v1317
      %1319 = vst [vmem:[%s284] sm:$0x3] %v1318
      %p1320 = scmp.lt.s32.totalorder %s18, 1
      %s1321 = scalar_select %p1320, %s18, 1
      %s1322 = smul.addr %s1321, 2
      %s1323 = smul.addr %s1322, 4
      %s1324 = scalar_lea.vmem %s3, %s1323
      %p1325 = scmp.lt.s32.totalorder %s18, 1
      %s1326 = scalar_select %p1325, %s18, 1
      %s1327 = smul.addr %s1326, 2
      %s1328 = smul.addr %s1327, 4
      %s1329 = scalar_lea.vmem %s4, %s1328
      %p1330 = scmp.lt.s32.totalorder %s18, 1
      %s1331 = scalar_select %p1330, %s18, 1
      %s1332 = smul.addr %s1331, 2
      %s1333 = scalar_lea.vmem %s5, %s1332
      %p1334 = scmp.lt.s32.totalorder %s18, 1
      %s1335 = scalar_select %p1334, %s18, 1
      %s1336 = smul.addr %s1335, 2
      %s1337 = scalar_lea.vmem %s6, %s1336
      // Predicated region
      $region33: #{resnet_block_forward.4} parent=31 // pred_check
        %p1338 = pneg %p104
      $region34: #{resnet_block_forward.4} parent=31 // pred_check_branch
        %1340 = sbr.rel (%p1338) target = $region36
      $region35: #{resnet_block_forward.4} parent=31 // pred_region
        _
      $region36: #{resnet_block_forward.4} parent=31 // pred_fallthru
        _
      // Predicated region
      $region37: #{resnet_block_forward.4} parent=31 // pred_check
        %p1341 = pneg %p130
      $region38: #{resnet_block_forward.4} parent=31 // pred_check_branch
        %1343 = sbr.rel (%p1341) target = $region40
      $region39: #{resnet_block_forward.4} parent=31 // pred_region
        _
      $region40: #{resnet_block_forward.4} parent=31 // pred_fallthru
        _
      // Predicated region
      $region41: #{resnet_block_forward.4} parent=31 // pred_check
        %p1344 = pneg %p156
      $region42: #{resnet_block_forward.4} parent=31 // pred_check_branch
        %1346 = sbr.rel (%p1344) target = $region44
      $region43: #{resnet_block_forward.4} parent=31 // pred_region
        _
      $region44: #{resnet_block_forward.4} parent=31 // pred_fallthru
        _
      // Predicated region
      $region45: #{resnet_block_forward.4} parent=31 // pred_check
        %p1347 = pneg %p182
      $region46: #{resnet_block_forward.4} parent=31 // pred_check_branch
        %1349 = sbr.rel (%p1347) target = $region48
      $region47: #{resnet_block_forward.4} parent=31 // pred_region
        _
      $region48: #{resnet_block_forward.4} parent=31 // pred_fallthru
        _
    $region32: #{resnet_block_forward.4} parent=5 // pred_fallthru
      _
    %p1350 = scmp.le.s32.totalorder 2, %s13
    // Predicated region
    $region49: #{resnet_block_forward.4} parent=5 // pred_check
      %p1351 = pneg %p1350
    $region50: #{resnet_block_forward.4} parent=5 // pred_check_branch
      %1353 = sbr.rel (%p1351) target = $region52
    $region51: #{resnet_block_forward.4} parent=5 // pred_region
      %s1354 = ssub.s32 %s13, 2
      // Predicated region
      $region53: #{resnet_block_forward.4} parent=51 // pred_check
        %p1355 = pneg %p110
      $region54: #{resnet_block_forward.4} parent=51 // pred_check_branch
        %1357 = sbr.rel (%p1355) target = $region56
      $region55: #{resnet_block_forward.4} parent=51 // pred_region
        %p1358 = scmp.lt.s32.totalorder %s19, 1
        %s1359 = scalar_select %p1358, %s19, 1
        %s1360 = smul.addr %s1359, 2
        %s1361 = smul.addr %s1360, 4
        %s1362 = scalar_lea.vmem %s3, %s1361
      $region56: #{resnet_block_forward.4} parent=51 // pred_fallthru
        _
      // Predicated region
      $region57: #{resnet_block_forward.4} parent=51 // pred_check
        %p1363 = pneg %p136
      $region58: #{resnet_block_forward.4} parent=51 // pred_check_branch
        %1365 = sbr.rel (%p1363) target = $region60
      $region59: #{resnet_block_forward.4} parent=51 // pred_region
        %p1366 = scmp.lt.s32.totalorder %s19, 1
        %s1367 = scalar_select %p1366, %s19, 1
        %s1368 = smul.addr %s1367, 2
        %s1369 = smul.addr %s1368, 4
        %s1370 = scalar_lea.vmem %s4, %s1369
      $region60: #{resnet_block_forward.4} parent=51 // pred_fallthru
        _
      // Predicated region
      $region61: #{resnet_block_forward.4} parent=51 // pred_check
        %p1371 = pneg %p162
      $region62: #{resnet_block_forward.4} parent=51 // pred_check_branch
        %1373 = sbr.rel (%p1371) target = $region64
      $region63: #{resnet_block_forward.4} parent=51 // pred_region
        %p1374 = scmp.lt.s32.totalorder %s19, 1
        %s1375 = scalar_select %p1374, %s19, 1
        %s1376 = smul.addr %s1375, 2
        %s1377 = scalar_lea.vmem %s5, %s1376
      $region64: #{resnet_block_forward.4} parent=51 // pred_fallthru
        _
      // Predicated region
      $region65: #{resnet_block_forward.4} parent=51 // pred_check
        %p1378 = pneg %p188
      $region66: #{resnet_block_forward.4} parent=51 // pred_check_branch
        %1380 = sbr.rel (%p1378) target = $region68
      $region67: #{resnet_block_forward.4} parent=51 // pred_region
        %p1381 = scmp.lt.s32.totalorder %s19, 1
        %s1382 = scalar_select %p1381, %s19, 1
        %s1383 = smul.addr %s1382, 2
        %s1384 = scalar_lea.vmem %s6, %s1383
      $region68: #{resnet_block_forward.4} parent=51 // pred_fallthru
        _
    $region52: #{resnet_block_forward.4} parent=5 // pred_fallthru
      _
  $region6: #{resnet_block_forward.4} parent=0 // loop_footer
    %s17 = sadd.s32 1, %s13
  $region7: #{resnet_block_forward.4} parent=0 // loop_footer_branch
    %12 = sbr.rel target = $region3
  $region8: #{resnet_block_forward.4} parent=0 // loop_exit
    _

</llo_original>
